<compile_context>
chip_gen: v7x
topology: tpu7x:2x2x1
jax: 0.10.0
libtpu: 0.0.40
codegen_flags: <defaults>
</compile_context>

<pallas_src>
import functools

import jax
import jax.numpy as jnp
from jax.experimental import pallas as pl
from jax.experimental.pallas import tpu as pltpu


def _ddff_fused_kernel(x_ref, w_ref, m_ref, b_ref, out_ref, *, H, W):
    """One batch element of the fused (conv1 ∘ scoring) pipeline.

    x_ref  : VMEM (1, C, HW)      raw channel slab, C = FS*CIN, HW = H*W
    w_ref  : VMEM (9, CO_PAD, C)  folded per-tap weights (rows >= 2 are zero)
    m_ref  : VMEM (9, HW)         per-tap zero-padding validity masks (f32 0/1)
    b_ref  : SMEM (2,)            folded bias (fgbg, coc)
    out_ref: VMEM (1, 2, HW)      row 0 = sigmoid(fgbg), row 1 = coc
    """
    HW = H * W
    x = x_ref[0]                                    # (C, HW) f32, read once
    co_pad = w_ref.shape[1]
    acc = jnp.zeros((co_pad, HW), jnp.float32)

    t = 0
    for kh in range(3):
        for kw in range(3):
            dh, dw = kh - 1, kw - 1
            off = dh * W + dw                       # want shifted[p] = x[:, p + off]
            if off == 0:
                xs = x
            else:
                # jnp.roll semantics: out[p] = in[(p - shift) mod HW] -> shift = -off.
                xs = pltpu.roll(x, shift=(-off) % HW, axis=1)
            part = jnp.dot(
                w_ref[t], xs,
                preferred_element_type=jnp.float32,
                precision=jax.lax.Precision.HIGHEST)        # (co_pad, HW) on MXU
            if off != 0:
                # Mask is per-lane only, so it commutes with the matmul:
                # w @ (mask*x) == mask * (w @ x) -> mask the small output instead.
                part = part * m_ref[t:t + 1, :]
            acc = acc + part
            t += 1

    out_ref[0, 0:1, :] = jax.nn.sigmoid(acc[0:1, :] + b_ref[0])   # fgbg
    out_ref[0, 1:2, :] = acc[1:2, :] + b_ref[1]                   # coc


def ddff_fgbg_coc_forward(x, w1, b1, ws):
    """x: (B, FS, CIN, H, W) f32; w1: (CO1, CIN, 3, 3); b1: (CO1,); ws: (CO_OUT, FS*CO1)."""
    B, FS, CIN, H, W = x.shape
    CO1 = w1.shape[0]
    CO_OUT = ws.shape[0]                 # 2 (fgbg, coc)
    HW = H * W
    C = FS * CIN                         # 30
    CO_PAD = 8                           # pad matmul M-dim only (not the output array)
    hi = jax.lax.Precision.HIGHEST

    # ---- fold scoring (1x1) into conv1: nine (CO, C) tap matrices + bias -----
    ws_r = ws.reshape(CO_OUT, FS, CO1)                        # [o, f, c]
    w_taps = jnp.einsum("ofc,cikl->klofi", ws_r, w1, precision=hi)  # (3,3,O,FS,CIN)
    w_taps = w_taps.reshape(9, CO_OUT, C)                     # tap t = kh*3 + kw
    w_taps = jnp.pad(w_taps, ((0, 0), (0, CO_PAD - CO_OUT), (0, 0)))
    b_eff = jnp.einsum("ofc,c->o", ws_r, b1, precision=hi)    # (CO_OUT,)

    # ---- per-tap zero-padding validity masks on the flattened HW axis --------
    pos = jnp.arange(HW, dtype=jnp.int32)
    row, col = pos // W, pos % W
    masks = []
    for kh in range(3):
        for kw in range(3):
            dh, dw = kh - 1, kw - 1
            ok = ((row + dh >= 0) & (row + dh < H) &
                  (col + dw >= 0) & (col + dw < W))
            masks.append(ok)
    masks = jnp.stack(masks, axis=0).astype(jnp.float32)      # (9, HW)

    # ---- raw channel slab: zero-copy reshape, no im2col in HBM ---------------
    x_slab = x.reshape(B, C, HW)

    kernel = functools.partial(_ddff_fused_kernel, H=H, W=W)
    out = pl.pallas_call(
        kernel,
        grid=(B,),
        in_specs=[
            pl.BlockSpec((1, C, HW), lambda b: (b, 0, 0)),         # raw slab
            pl.BlockSpec((9, CO_PAD, C), lambda b: (0, 0, 0)),     # folded taps
            pl.BlockSpec((9, HW), lambda b: (0, 0)),               # edge masks
            pl.BlockSpec(memory_space=pltpu.MemorySpace.SMEM),     # bias scalars
        ],
        out_specs=pl.BlockSpec((1, CO_OUT, HW), lambda b: (b, 0, 0)),
        out_shape=jax.ShapeDtypeStruct((B, CO_OUT, HW), jnp.float32),
        compiler_params=pltpu.CompilerParams(
            dimension_semantics=("parallel",)),    # v7x: 2 TCs share the batch
    )(x_slab, w_taps, masks, b_eff)

    fgbg = out[:, 0].reshape(B, 1, H, W)
    coc = out[:, 1].reshape(B, 1, H, W)
    return fgbg, coc


def ddff_fgbg_coc_reference(x, w1, b1, ws):
    """Pure-JAX reference mirroring the PyTorch forward."""
    B, FS, CIN, H, W = x.shape
    CO1 = w1.shape[0]
    xi = x.reshape(B * FS, CIN, H, W)
    y = jax.lax.conv_general_dilated(
        xi, w1, window_strides=(1, 1), padding=((1, 1), (1, 1)),
        dimension_numbers=("NCHW", "OIHW", "NCHW"),
        precision=jax.lax.Precision.HIGHEST)
    y = y + b1[None, :, None, None]
    y = y.reshape(B, FS * CO1, H, W)
    out = jnp.einsum("oc,bchw->bohw", ws, y,
                     precision=jax.lax.Precision.HIGHEST)
    fgbg = jax.nn.sigmoid(out[:, 0:1])
    coc = out[:, 1:2]
    return fgbg, coc


if __name__ == "__main__":
    B, FS, CIN, CO1, H, W = 2, 10, 3, 2, 16, 16   # FS=10 fixed by scoring conv (20 in-ch)

    key = jax.random.PRNGKey(0)
    k_w1, k_b1, k_ws, k_x = jax.random.split(key, 4)

    # Deterministic synthetic parameters (shapes from the module __init__):
    # conv1 = Conv2d(3, 2, 3, padding=1)     -> weight (2,3,3,3), bias (2,)
    # scoring = Conv2d(20, 2, 1, bias=False) -> weight (2,20,1,1) stored as (2,20)
    w1 = 0.1 * jax.random.normal(k_w1, (CO1, CIN, 3, 3), jnp.float32)
    b1 = 0.1 * jax.random.normal(k_b1, (CO1,), jnp.float32)
    ws = 0.1 * jax.random.normal(k_ws, (CO1, FS * CO1), jnp.float32)

    x = jax.random.normal(k_x, (B, FS, CIN, H, W), jnp.float32)

    fgbg, coc = jax.jit(ddff_fgbg_coc_forward)(x, w1, b1, ws)
    jax.block_until_ready((fgbg, coc))

    fgbg_ref, coc_ref = ddff_fgbg_coc_reference(x, w1, b1, ws)
    assert fgbg.shape == (B, 1, H, W) and coc.shape == (B, 1, H, W)
    assert jnp.allclose(fgbg, fgbg_ref, atol=1e-4, rtol=1e-4)
    assert jnp.allclose(coc, coc_ref, atol=1e-4, rtol=1e-4)

    print("KERNEL_OK")
</pallas_src>

<mosaic_0001>
module attributes {stable_mosaic.version = 11 : i64} {
  func.func @_ddff_fused_kernel(%arg0: i32, %arg1: memref<1x30x256xf32, #tpu.memory_space<vmem>>, %arg2: memref<9x8x30xf32, #tpu.memory_space<vmem>>, %arg3: memref<9x256xf32, #tpu.memory_space<vmem>>, %arg4: memref<2xf32, #tpu.memory_space<smem>>, %arg5: memref<1x2x256xf32, #tpu.memory_space<vmem>>) attributes {dimension_semantics = [#tpu.dimension_semantics<parallel>], iteration_bounds = array<i64: 2>, scalar_prefetch = 0 : i64, scratch_operands = 0 : i64, tpu.core_type = #tpu.core_type<tc>, window_params = [{transform_indices = @transform_0, window_bounds = array<i64: 1, 30, 256>}, {pipeline_mode = #tpu.pipeline_mode<synchronous>, transform_indices = @transform_1, window_bounds = array<i64: 9, 8, 30>}, {pipeline_mode = #tpu.pipeline_mode<synchronous>, transform_indices = @transform_2, window_bounds = array<i64: 9, 256>}, {transform_indices = @transform_3, window_bounds = array<i64: 2>}, {transform_indices = @transform_4, window_bounds = array<i64: 1, 2, 256>}]} {
    %c0 = arith.constant 0 : index
    %c0_0 = arith.constant 0 : index
    %c0_1 = arith.constant 0 : index
    %0 = vector.load %arg1[%c0, %c0_0, %c0_1] : memref<1x30x256xf32, #tpu.memory_space<vmem>>, vector<1x30x256xf32>
    %1 = vector.shape_cast %0 : vector<1x30x256xf32> to vector<30x256xf32>
    %cst = arith.constant 0.000000e+00 : f32
    %2 = vector.broadcast %cst : f32 to vector<8x256xf32>
    %c17_i32 = arith.constant 17 : i32
    %3 = tpu.dynamic_rotate %1 by %c17_i32 dim 1 : vector<30x256xf32>, i32 -> vector<30x256xf32>
    %c0_2 = arith.constant 0 : index
    %c0_3 = arith.constant 0 : index
    %c0_4 = arith.constant 0 : index
    %4 = vector.load %arg2[%c0_2, %c0_3, %c0_4] : memref<9x8x30xf32, #tpu.memory_space<vmem>>, vector<1x8x30xf32>
    %5 = vector.shape_cast %4 : vector<1x8x30xf32> to vector<8x30xf32>
    %cst_5 = arith.constant dense<0.000000e+00> : vector<8x256xf32>
    %6 = tpu.matmul %5, %3, %cst_5 {dimension_numbers = #tpu.dot_dimension_numbers<[1], [0], [0], [1], [0, 0, 1, 1], [], []>, precision = #tpu.contract_precision<fp32>} : vector<8x30xf32>, vector<30x256xf32>, vector<8x256xf32> -> vector<8x256xf32>
    %c0_6 = arith.constant 0 : index
    %c0_7 = arith.constant 0 : index
    %7 = vector.load %arg3[%c0_6, %c0_7] : memref<9x256xf32, #tpu.memory_space<vmem>>, vector<1x256xf32>
    %8 = vector.broadcast %7 : vector<1x256xf32> to vector<8x256xf32>
    %9 = arith.mulf %6, %8 : vector<8x256xf32>
    %10 = arith.addf %2, %9 : vector<8x256xf32>
    %c16_i32 = arith.constant 16 : i32
    %11 = tpu.dynamic_rotate %1 by %c16_i32 dim 1 : vector<30x256xf32>, i32 -> vector<30x256xf32>
    %c1 = arith.constant 1 : index
    %c0_8 = arith.constant 0 : index
    %c0_9 = arith.constant 0 : index
    %12 = vector.load %arg2[%c1, %c0_8, %c0_9] : memref<9x8x30xf32, #tpu.memory_space<vmem>>, vector<1x8x30xf32>
    %13 = vector.shape_cast %12 : vector<1x8x30xf32> to vector<8x30xf32>
    %cst_10 = arith.constant dense<0.000000e+00> : vector<8x256xf32>
    %14 = tpu.matmul %13, %11, %cst_10 {dimension_numbers = #tpu.dot_dimension_numbers<[1], [0], [0], [1], [0, 0, 1, 1], [], []>, precision = #tpu.contract_precision<fp32>} : vector<8x30xf32>, vector<30x256xf32>, vector<8x256xf32> -> vector<8x256xf32>
    %c1_11 = arith.constant 1 : index
    %c0_12 = arith.constant 0 : index
    %15 = vector.load %arg3[%c1_11, %c0_12] : memref<9x256xf32, #tpu.memory_space<vmem>>, vector<1x256xf32>
    %16 = vector.broadcast %15 : vector<1x256xf32> to vector<8x256xf32>
    %17 = arith.mulf %14, %16 : vector<8x256xf32>
    %18 = arith.addf %10, %17 : vector<8x256xf32>
    %c15_i32 = arith.constant 15 : i32
    %19 = tpu.dynamic_rotate %1 by %c15_i32 dim 1 : vector<30x256xf32>, i32 -> vector<30x256xf32>
    %c2 = arith.constant 2 : index
    %c0_13 = arith.constant 0 : index
    %c0_14 = arith.constant 0 : index
    %20 = vector.load %arg2[%c2, %c0_13, %c0_14] : memref<9x8x30xf32, #tpu.memory_space<vmem>>, vector<1x8x30xf32>
    %21 = vector.shape_cast %20 : vector<1x8x30xf32> to vector<8x30xf32>
    %cst_15 = arith.constant dense<0.000000e+00> : vector<8x256xf32>
    %22 = tpu.matmul %21, %19, %cst_15 {dimension_numbers = #tpu.dot_dimension_numbers<[1], [0], [0], [1], [0, 0, 1, 1], [], []>, precision = #tpu.contract_precision<fp32>} : vector<8x30xf32>, vector<30x256xf32>, vector<8x256xf32> -> vector<8x256xf32>
    %c2_16 = arith.constant 2 : index
    %c0_17 = arith.constant 0 : index
    %23 = vector.load %arg3[%c2_16, %c0_17] : memref<9x256xf32, #tpu.memory_space<vmem>>, vector<1x256xf32>
    %24 = vector.broadcast %23 : vector<1x256xf32> to vector<8x256xf32>
    %25 = arith.mulf %22, %24 : vector<8x256xf32>
    %26 = arith.addf %18, %25 : vector<8x256xf32>
    %c1_i32 = arith.constant 1 : i32
    %27 = tpu.dynamic_rotate %1 by %c1_i32 dim 1 : vector<30x256xf32>, i32 -> vector<30x256xf32>
    %c3 = arith.constant 3 : index
    %c0_18 = arith.constant 0 : index
    %c0_19 = arith.constant 0 : index
    %28 = vector.load %arg2[%c3, %c0_18, %c0_19] : memref<9x8x30xf32, #tpu.memory_space<vmem>>, vector<1x8x30xf32>
    %29 = vector.shape_cast %28 : vector<1x8x30xf32> to vector<8x30xf32>
    %cst_20 = arith.constant dense<0.000000e+00> : vector<8x256xf32>
    %30 = tpu.matmul %29, %27, %cst_20 {dimension_numbers = #tpu.dot_dimension_numbers<[1], [0], [0], [1], [0, 0, 1, 1], [], []>, precision = #tpu.contract_precision<fp32>} : vector<8x30xf32>, vector<30x256xf32>, vector<8x256xf32> -> vector<8x256xf32>
    %c3_21 = arith.constant 3 : index
    %c0_22 = arith.constant 0 : index
    %31 = vector.load %arg3[%c3_21, %c0_22] : memref<9x256xf32, #tpu.memory_space<vmem>>, vector<1x256xf32>
    %32 = vector.broadcast %31 : vector<1x256xf32> to vector<8x256xf32>
    %33 = arith.mulf %30, %32 : vector<8x256xf32>
    %34 = arith.addf %26, %33 : vector<8x256xf32>
    %c4 = arith.constant 4 : index
    %c0_23 = arith.constant 0 : index
    %c0_24 = arith.constant 0 : index
    %35 = vector.load %arg2[%c4, %c0_23, %c0_24] : memref<9x8x30xf32, #tpu.memory_space<vmem>>, vector<1x8x30xf32>
    %36 = vector.shape_cast %35 : vector<1x8x30xf32> to vector<8x30xf32>
    %cst_25 = arith.constant dense<0.000000e+00> : vector<8x256xf32>
    %37 = tpu.matmul %36, %1, %cst_25 {dimension_numbers = #tpu.dot_dimension_numbers<[1], [0], [0], [1], [0, 0, 1, 1], [], []>, precision = #tpu.contract_precision<fp32>} : vector<8x30xf32>, vector<30x256xf32>, vector<8x256xf32> -> vector<8x256xf32>
    %38 = arith.addf %34, %37 : vector<8x256xf32>
    %c255_i32 = arith.constant 255 : i32
    %39 = tpu.dynamic_rotate %1 by %c255_i32 dim 1 : vector<30x256xf32>, i32 -> vector<30x256xf32>
    %c5 = arith.constant 5 : index
    %c0_26 = arith.constant 0 : index
    %c0_27 = arith.constant 0 : index
    %40 = vector.load %arg2[%c5, %c0_26, %c0_27] : memref<9x8x30xf32, #tpu.memory_space<vmem>>, vector<1x8x30xf32>
    %41 = vector.shape_cast %40 : vector<1x8x30xf32> to vector<8x30xf32>
    %cst_28 = arith.constant dense<0.000000e+00> : vector<8x256xf32>
    %42 = tpu.matmul %41, %39, %cst_28 {dimension_numbers = #tpu.dot_dimension_numbers<[1], [0], [0], [1], [0, 0, 1, 1], [], []>, precision = #tpu.contract_precision<fp32>} : vector<8x30xf32>, vector<30x256xf32>, vector<8x256xf32> -> vector<8x256xf32>
    %c5_29 = arith.constant 5 : index
    %c0_30 = arith.constant 0 : index
    %43 = vector.load %arg3[%c5_29, %c0_30] : memref<9x256xf32, #tpu.memory_space<vmem>>, vector<1x256xf32>
    %44 = vector.broadcast %43 : vector<1x256xf32> to vector<8x256xf32>
    %45 = arith.mulf %42, %44 : vector<8x256xf32>
    %46 = arith.addf %38, %45 : vector<8x256xf32>
    %c241_i32 = arith.constant 241 : i32
    %47 = tpu.dynamic_rotate %1 by %c241_i32 dim 1 : vector<30x256xf32>, i32 -> vector<30x256xf32>
    %c6 = arith.constant 6 : index
    %c0_31 = arith.constant 0 : index
    %c0_32 = arith.constant 0 : index
    %48 = vector.load %arg2[%c6, %c0_31, %c0_32] : memref<9x8x30xf32, #tpu.memory_space<vmem>>, vector<1x8x30xf32>
    %49 = vector.shape_cast %48 : vector<1x8x30xf32> to vector<8x30xf32>
    %cst_33 = arith.constant dense<0.000000e+00> : vector<8x256xf32>
    %50 = tpu.matmul %49, %47, %cst_33 {dimension_numbers = #tpu.dot_dimension_numbers<[1], [0], [0], [1], [0, 0, 1, 1], [], []>, precision = #tpu.contract_precision<fp32>} : vector<8x30xf32>, vector<30x256xf32>, vector<8x256xf32> -> vector<8x256xf32>
    %c6_34 = arith.constant 6 : index
    %c0_35 = arith.constant 0 : index
    %51 = vector.load %arg3[%c6_34, %c0_35] : memref<9x256xf32, #tpu.memory_space<vmem>>, vector<1x256xf32>
    %52 = vector.broadcast %51 : vector<1x256xf32> to vector<8x256xf32>
    %53 = arith.mulf %50, %52 : vector<8x256xf32>
    %54 = arith.addf %46, %53 : vector<8x256xf32>
    %c240_i32 = arith.constant 240 : i32
    %55 = tpu.dynamic_rotate %1 by %c240_i32 dim 1 : vector<30x256xf32>, i32 -> vector<30x256xf32>
    %c7 = arith.constant 7 : index
    %c0_36 = arith.constant 0 : index
    %c0_37 = arith.constant 0 : index
    %56 = vector.load %arg2[%c7, %c0_36, %c0_37] : memref<9x8x30xf32, #tpu.memory_space<vmem>>, vector<1x8x30xf32>
    %57 = vector.shape_cast %56 : vector<1x8x30xf32> to vector<8x30xf32>
    %cst_38 = arith.constant dense<0.000000e+00> : vector<8x256xf32>
    %58 = tpu.matmul %57, %55, %cst_38 {dimension_numbers = #tpu.dot_dimension_numbers<[1], [0], [0], [1], [0, 0, 1, 1], [], []>, precision = #tpu.contract_precision<fp32>} : vector<8x30xf32>, vector<30x256xf32>, vector<8x256xf32> -> vector<8x256xf32>
    %c7_39 = arith.constant 7 : index
    %c0_40 = arith.constant 0 : index
    %59 = vector.load %arg3[%c7_39, %c0_40] : memref<9x256xf32, #tpu.memory_space<vmem>>, vector<1x256xf32>
    %60 = vector.broadcast %59 : vector<1x256xf32> to vector<8x256xf32>
    %61 = arith.mulf %58, %60 : vector<8x256xf32>
    %62 = arith.addf %54, %61 : vector<8x256xf32>
    %c239_i32 = arith.constant 239 : i32
    %63 = tpu.dynamic_rotate %1 by %c239_i32 dim 1 : vector<30x256xf32>, i32 -> vector<30x256xf32>
    %c8 = arith.constant 8 : index
    %c0_41 = arith.constant 0 : index
    %c0_42 = arith.constant 0 : index
    %64 = vector.load %arg2[%c8, %c0_41, %c0_42] : memref<9x8x30xf32, #tpu.memory_space<vmem>>, vector<1x8x30xf32>
    %65 = vector.shape_cast %64 : vector<1x8x30xf32> to vector<8x30xf32>
    %cst_43 = arith.constant dense<0.000000e+00> : vector<8x256xf32>
    %66 = tpu.matmul %65, %63, %cst_43 {dimension_numbers = #tpu.dot_dimension_numbers<[1], [0], [0], [1], [0, 0, 1, 1], [], []>, precision = #tpu.contract_precision<fp32>} : vector<8x30xf32>, vector<30x256xf32>, vector<8x256xf32> -> vector<8x256xf32>
    %c8_44 = arith.constant 8 : index
    %c0_45 = arith.constant 0 : index
    %67 = vector.load %arg3[%c8_44, %c0_45] : memref<9x256xf32, #tpu.memory_space<vmem>>, vector<1x256xf32>
    %68 = vector.broadcast %67 : vector<1x256xf32> to vector<8x256xf32>
    %69 = arith.mulf %66, %68 : vector<8x256xf32>
    %70 = arith.addf %62, %69 : vector<8x256xf32>
    %71 = vector.extract_strided_slice %70 {offsets = [0, 0], sizes = [1, 256], strides = [1, 1]} : vector<8x256xf32> to vector<1x256xf32>
    %c0_46 = arith.constant 0 : index
    %72 = memref.load %arg4[%c0_46] : memref<2xf32, #tpu.memory_space<smem>>
    %73 = vector.broadcast %72 : f32 to vector<1x256xf32>
    %74 = arith.addf %71, %73 : vector<1x256xf32>
    %75 = arith.negf %74 : vector<1x256xf32>
    %76 = math.exp %75 : vector<1x256xf32>
    %cst_47 = arith.constant 1.000000e+00 : f32
    %77 = vector.broadcast %cst_47 : f32 to vector<1x256xf32>
    %78 = arith.addf %77, %76 : vector<1x256xf32>
    %79 = arith.divf %77, %78 : vector<1x256xf32>
    %c0_48 = arith.constant 0 : index
    %c0_49 = arith.constant 0 : index
    %c0_50 = arith.constant 0 : index
    %80 = vector.load %arg5[%c0_48, %c0_49, %c0_50] : memref<1x2x256xf32, #tpu.memory_space<vmem>>, vector<1x1x256xf32>
    %81 = vector.shape_cast %80 : vector<1x1x256xf32> to vector<1x256xf32>
    %82 = vector.shape_cast %79 : vector<1x256xf32> to vector<1x1x256xf32>
    tpu.vector_store %arg5[%c0_48, %c0_49, %c0_50], %82 {strides = array<i32>} : memref<1x2x256xf32, #tpu.memory_space<vmem>>, vector<1x1x256xf32>,
    %83 = vector.extract_strided_slice %70 {offsets = [1, 0], sizes = [1, 256], strides = [1, 1]} : vector<8x256xf32> to vector<1x256xf32>
    %c1_51 = arith.constant 1 : index
    %84 = memref.load %arg4[%c1_51] : memref<2xf32, #tpu.memory_space<smem>>
    %85 = vector.broadcast %84 : f32 to vector<1x256xf32>
    %86 = arith.addf %83, %85 : vector<1x256xf32>
    %c0_52 = arith.constant 0 : index
    %c1_53 = arith.constant 1 : index
    %c0_54 = arith.constant 0 : index
    %87 = vector.load %arg5[%c0_52, %c1_53, %c0_54] : memref<1x2x256xf32, #tpu.memory_space<vmem>>, vector<1x1x256xf32>
    %88 = vector.shape_cast %87 : vector<1x1x256xf32> to vector<1x256xf32>
    %89 = vector.shape_cast %86 : vector<1x256xf32> to vector<1x1x256xf32>
    tpu.vector_store %arg5[%c0_52, %c1_53, %c0_54], %89 {strides = array<i32>} : memref<1x2x256xf32, #tpu.memory_space<vmem>>, vector<1x1x256xf32>,
    return
  }
  func.func @transform_0(%arg0: i32) -> (i32, i32, i32) {
    %c0_i32 = arith.constant 0 : i32
    %c0_i32_0 = arith.constant 0 : i32
    %c0_i32_1 = arith.constant 0 : i32
    return %arg0, %c0_i32, %c0_i32_0 : i32, i32, i32
  }
  func.func @transform_1(%arg0: i32) -> (i32, i32, i32) {
    %c0_i32 = arith.constant 0 : i32
    %c0_i32_0 = arith.constant 0 : i32
    %c0_i32_1 = arith.constant 0 : i32
    %c0_i32_2 = arith.constant 0 : i32
    return %c0_i32, %c0_i32_0, %c0_i32_1 : i32, i32, i32
  }
  func.func @transform_2(%arg0: i32) -> (i32, i32) {
    %c0_i32 = arith.constant 0 : i32
    %c0_i32_0 = arith.constant 0 : i32
    %c0_i32_1 = arith.constant 0 : i32
    return %c0_i32, %c0_i32_0 : i32, i32
  }
  func.func @transform_3(%arg0: i32) -> i32 {
    %c0_i32 = arith.constant 0 : i32
    %c0_i32_0 = arith.constant 0 : i32
    return %c0_i32 : i32
  }
  func.func @transform_4(%arg0: i32) -> (i32, i32, i32) {
    %c0_i32 = arith.constant 0 : i32
    %c0_i32_0 = arith.constant 0 : i32
    %c0_i32_1 = arith.constant 0 : i32
    return %arg0, %c0_i32, %c0_i32_0 : i32, i32, i32
  }
}

</mosaic_0001>

<llo_original>
// kernel: squeeze.2
$region0: #{squeeze.2}
  %s0 = inlined_call_operand.vmem [shape: f32[2,256], index: 0, kind: input, shape index: {}]
  %s1 = inlined_call_operand.hbm [shape: f32[2,1,16,16], index: 1, kind: output, shape index: {}]
  $region1: #{squeeze.2} parent=0
    #allocation0 [shape = 'u8[16384]{0}', space=vmem, size = 0x4000, scoped, tag = 'operand span for operand 1']
    #allocation1 [shape = 's32[1]{0}', space=sflag, size = 0x4, scoped, tag = 'scoped memory for squeeze.2']
    #allocation2 [shape = 'u8[8192]{0}', space=vmem, size = 0x2000, scoped, tag = 'scoped mem for input reshape']
    %2 = vsyncpa [#allocation1], 0
    %s4 = sshllo.u32 0, 2
    %s5 = scalar_lea.vmem %s0, 2
    %v6 = vld [vmem:[%s5] sm:%s4]
    %s7 = scalar_lea.vmem [#allocation2], 8
    %8 = vst [vmem:[%s7] sm:%s4] %v6
    %v9 = vld [vmem:[%s0] sm:%s4]
    %10 = vst [vmem:[#allocation2] sm:%s4] %v9
    %v11 = vld [vmem:[#allocation2] sm:$0x3]
    %vm12 = vcmask 130048
    %13 = vst.msk [vmem:[#allocation0] ss:$16 sm:$0x3] %vm12, %v11
    %s14 = scalar_lea.vmem [#allocation2], 8
    %v15 = vld [vmem:[%s14] sm:$0x3]
    %vm16 = vcmask 130048
    %s17 = scalar_lea.vmem [#allocation0], 8
    %18 = vst.msk [vmem:[%s17] ss:$16 sm:$0x3] %vm16, %v15
    %v19 = vld.sshfl [vmem:[#allocation2] sm:$0xff pattern:$0x99999180]
    %20 = vrot.lane.b32.xlu0 %v19, 112
    %v21 = vpop.permute.xlu0 %20
    %vm22 = vcmask 130048
    %s23 = scalar_lea.vmem [#allocation0], 1
    %24 = vst.msk [vmem:[%s23] ss:$8 sm:$0xf] %vm22, %v21
    %v25 = vld.sshfl [vmem:[#allocation2] sm:$0xff pattern:$0x99999180]
    %26 = vrot.lane.b32.xlu0 %v25, 96
    %v27 = vpop.permute.xlu0 %26
    %vm28 = vcmask 130048
    %s29 = scalar_lea.vmem [#allocation0], 2
    %30 = vst.msk [vmem:[%s29] ss:$8 sm:$0xf] %vm28, %v27
    %v31 = vld.sshfl [vmem:[#allocation2] sm:$0xff pattern:$0x99999180]
    %32 = vrot.lane.b32.xlu0 %v31, 80
    %v33 = vpop.permute.xlu0 %32
    %vm34 = vcmask 130048
    %s35 = scalar_lea.vmem [#allocation0], 3
    %36 = vst.msk [vmem:[%s35] ss:$8 sm:$0xf] %vm34, %v33
    %v37 = vld.sshfl [vmem:[#allocation2] sm:$0xff pattern:$0x99999180]
    %38 = vrot.lane.b32.xlu0 %v37, 64
    %v39 = vpop.permute.xlu0 %38
    %vm40 = vcmask 130048
    %s41 = scalar_lea.vmem [#allocation0], 4
    %42 = vst.msk [vmem:[%s41] ss:$8 sm:$0xf] %vm40, %v39
    %v43 = vld.sshfl [vmem:[#allocation2] sm:$0xff pattern:$0x99999180]
    %44 = vrot.lane.b32.xlu0 %v43, 48
    %v45 = vpop.permute.xlu0 %44
    %vm46 = vcmask 130048
    %s47 = scalar_lea.vmem [#allocation0], 5
    %48 = vst.msk [vmem:[%s47] ss:$8 sm:$0xf] %vm46, %v45
    %v49 = vld.sshfl [vmem:[#allocation2] sm:$0xff pattern:$0x99999180]
    %50 = vrot.lane.b32.xlu0 %v49, 32
    %v51 = vpop.permute.xlu0 %50
    %vm52 = vcmask 130048
    %s53 = scalar_lea.vmem [#allocation0], 6
    %54 = vst.msk [vmem:[%s53] ss:$8 sm:$0xf] %vm52, %v51
    %v55 = vld.sshfl [vmem:[#allocation2] sm:$0xff pattern:$0x99999180]
    %56 = vrot.lane.b32.xlu0 %v55, 16
    %v57 = vpop.permute.xlu0 %56
    %vm58 = vcmask 130048
    %s59 = scalar_lea.vmem [#allocation0], 7
    %60 = vst.msk [vmem:[%s59] ss:$8 sm:$0xf] %vm58, %v57
    %s62 = ssub.s32 512, 512
    %63 = vsyncadd [#allocation1], %s62
    %s65 = sshll.u32 [#allocation0], 4
    %s66 = int_to_ptr.vmem [resolvable:$true] %s65
    %68 = dma.vmem_to_hbm [thread:$0]  %s66, 512, %s1, [#allocation1]
    %69 = dma.done [#allocation1], 512
    %70 = vsyncpa [#allocation1], 1

// kernel: ddff_fgbg_coc_forward.1
$region0: #{ddff_fgbg_coc_forward.1}
  #allocation0 [shape = 'u32[]', space=smem, size = 0x4, offset = 0x4, fixed_abs, tag = 'smem constant byte address 0x4 - core index']
  #allocation1 [shape = 'u32[144,128]{1,0:T(1,128)}', space=vmem, size = 0x12000, scoped, tag = 'internal scratch']
  %s0 = inlined_call_operand.vmem [shape: f32[2,30,256], index: 0, kind: input, shape index: {}]
  %s1 = inlined_call_operand.vmem [shape: f32[9,8,30], index: 1, kind: input, shape index: {}]
  %s2 = inlined_call_operand.vmem [shape: f32[9,256], index: 2, kind: input, shape index: {}]
  %s3 = inlined_call_operand.vmem [shape: f32[2], index: 3, kind: input, shape index: {}]
  %s4 = inlined_call_operand.vmem [shape: f32[2,2,256], index: 4, kind: output, shape index: {}]
  %s5 = sld [smem:[#allocation0]]
  $region53: #{ddff_fgbg_coc_forward.1} parent=0
    _
  %s7 = ssub.s32 1, %s5
  %s8 = scalar_select 0, %s7, %s5
  $region1: #{ddff_fgbg_coc_forward.1} parent=0
    #allocation2 [shape = 'u8[512]{0}', space=smem, size = 0x200, scoped, tag = 'input window, operand 3, single buffered']
    #allocation3 [shape = 's32[2]{0}', space=sflag, size = 0x8, scoped, tag = 'scoped memory for ddff_fgbg_coc_forward.1']
    %9 = vsyncpa [#allocation3], 0
    loop: start=0, step=1, limit=4
    $region2: #{ddff_fgbg_coc_forward.1} parent=1 // loop_pre_header
      _
    $region3: #{ddff_fgbg_coc_forward.1} parent=1 // loop_header
      %s11 = sphi 0, %s15
      %p12 = scmp.ge.s32.totalorder %s11, 4
      %s21 = sphi 0, %s23
      %s24 = sphi 0, %s21
      %s25 = sphi 0, %s24
      %s41 = sphi 0, %s25
      %s45 = sphi 0, %s45
      %s47 = sphi 0, %s45
      %s48 = sphi 0, %s47
      %s62 = sphi 0, %s48
      %s66 = sphi 0, %s66
      %s68 = sphi 0, %s66
      %s69 = sphi 0, %s68
      %s83 = sphi 0, %s69
      %s87 = sphi 0, %s87
      %s89 = sphi 0, %s87
      %s90 = sphi 0, %s89
      %s104 = sphi 0, %s90
      %s110 = sphi 0, %s112
      %s113 = sphi 0, %s110
      %s114 = sphi 0, %s113
      %s130 = sphi 0, %s114
    $region4: #{ddff_fgbg_coc_forward.1} parent=1 // loop_header_branch
      %14 = sbr.rel (%p12) target = $region8
    $region5: #{ddff_fgbg_coc_forward.1} parent=1 // loop_body
      %s16 = ssub.s32 %s11, 1
      %s17 = ssub.s32 %s11, 2
      %s18 = sadd.s32 %s11, 1
      %s19 = ssub.s32 %s11, %s18
      %p20 = scmp.eq.s32.totalorder %s19, 0
      %s22 = sadd.s32 %s21, 1
      %s23 = scalar_select %p20, %s21, %s22
      %p26 = pneg %p20
      %p27 = scmp.eq.s32.totalorder %s11, 1
      %p28 = por %p26, %p27
      %p29 = scmp.ne.s32.totalorder %s21, %s24
      %p30 = scmp.eq.s32.totalorder %s11, 0
      %p31 = por %p29, %p30
      %p32 = scmp.ne.s32.totalorder %s21, %s24
      %p33 = scmp.eq.s32.totalorder %s16, 1
      %p34 = por %p32, %p33
      %p35 = scmp.ne.s32.totalorder %s24, %s25
      %p36 = scmp.eq.s32.totalorder %s16, 0
      %p37 = por %p35, %p36
      %p38 = scmp.ne.s32.totalorder %s24, %s25
      %p39 = scmp.eq.s32.totalorder %s17, 1
      %p40 = por %p38, %p39
      %p42 = scmp.ne.s32.totalorder %s25, %s41
      %p43 = scmp.eq.s32.totalorder %s17, 0
      %p44 = por %p42, %p43
      %s46 = sadd.s32 %s45, 1
      %p49 = scmp.eq.s32.totalorder %s11, 1
      %p50 = scmp.ne.s32.totalorder %s45, %s47
      %p51 = scmp.eq.s32.totalorder %s11, 0
      %p52 = por %p50, %p51
      %p53 = scmp.ne.s32.totalorder %s45, %s47
      %p54 = scmp.eq.s32.totalorder %s16, 1
      %p55 = por %p53, %p54
      %p56 = scmp.ne.s32.totalorder %s47, %s48
      %p57 = scmp.eq.s32.totalorder %s16, 0
      %p58 = por %p56, %p57
      %p59 = scmp.ne.s32.totalorder %s47, %s48
      %p60 = scmp.eq.s32.totalorder %s17, 1
      %p61 = por %p59, %p60
      %p63 = scmp.ne.s32.totalorder %s48, %s62
      %p64 = scmp.eq.s32.totalorder %s17, 0
      %p65 = por %p63, %p64
      %s67 = sadd.s32 %s66, 1
      %p70 = scmp.eq.s32.totalorder %s11, 1
      %p71 = scmp.ne.s32.totalorder %s66, %s68
      %p72 = scmp.eq.s32.totalorder %s11, 0
      %p73 = por %p71, %p72
      %p74 = scmp.ne.s32.totalorder %s66, %s68
      %p75 = scmp.eq.s32.totalorder %s16, 1
      %p76 = por %p74, %p75
      %p77 = scmp.ne.s32.totalorder %s68, %s69
      %p78 = scmp.eq.s32.totalorder %s16, 0
      %p79 = por %p77, %p78
      %p80 = scmp.ne.s32.totalorder %s68, %s69
      %p81 = scmp.eq.s32.totalorder %s17, 1
      %p82 = por %p80, %p81
      %p84 = scmp.ne.s32.totalorder %s69, %s83
      %p85 = scmp.eq.s32.totalorder %s17, 0
      %p86 = por %p84, %p85
      %s88 = sadd.s32 %s87, 1
      %p91 = scmp.eq.s32.totalorder %s11, 1
      %p92 = scmp.ne.s32.totalorder %s87, %s89
      %p93 = scmp.eq.s32.totalorder %s11, 0
      %p94 = por %p92, %p93
      %p95 = scmp.ne.s32.totalorder %s87, %s89
      %p96 = scmp.eq.s32.totalorder %s16, 1
      %p97 = por %p95, %p96
      %p98 = scmp.ne.s32.totalorder %s89, %s90
      %p99 = scmp.eq.s32.totalorder %s16, 0
      %p100 = por %p98, %p99
      %p101 = scmp.ne.s32.totalorder %s89, %s90
      %p102 = scmp.eq.s32.totalorder %s17, 1
      %p103 = por %p101, %p102
      %p105 = scmp.ne.s32.totalorder %s90, %s104
      %p106 = scmp.eq.s32.totalorder %s17, 0
      %p107 = por %p105, %p106
      %s108 = ssub.s32 %s11, %s18
      %p109 = scmp.eq.s32.totalorder %s108, 0
      %s111 = sadd.s32 %s110, 1
      %s112 = scalar_select %p109, %s110, %s111
      %p115 = pneg %p109
      %p116 = scmp.eq.s32.totalorder %s11, 1
      %p117 = por %p115, %p116
      %p118 = scmp.ne.s32.totalorder %s110, %s113
      %p119 = scmp.eq.s32.totalorder %s11, 0
      %p120 = por %p118, %p119
      %p121 = scmp.ne.s32.totalorder %s110, %s113
      %p122 = scmp.eq.s32.totalorder %s16, 1
      %p123 = por %p121, %p122
      %p124 = scmp.ne.s32.totalorder %s113, %s114
      %p125 = scmp.eq.s32.totalorder %s16, 0
      %p126 = por %p124, %p125
      %p127 = scmp.ne.s32.totalorder %s113, %s114
      %p128 = scmp.eq.s32.totalorder %s17, 1
      %p129 = por %p127, %p128
      %p131 = scmp.ne.s32.totalorder %s114, %s130
      %p132 = scmp.eq.s32.totalorder %s17, 0
      %p133 = por %p131, %p132
      %p134 = scmp.le.s32.totalorder 1, %s11
      %p135 = scmp.lt.s32.totalorder %s11, 3
      %p136 = pnand %p134, %p135
      %p137 = pneg %p136
      // Predicated region
      $region9: #{ddff_fgbg_coc_forward.1} parent=5 // pred_check
        _
      $region10: #{ddff_fgbg_coc_forward.1} parent=5 // pred_check_branch
        %139 = sbr.rel (%p136) target = $region12
      $region11: #{ddff_fgbg_coc_forward.1} parent=5 // pred_region
        %s140 = ssub.s32 %s11, 1
        // Predicated region
        $region13: #{ddff_fgbg_coc_forward.1} parent=11 // pred_check
          %p141 = pneg %p58
        $region14: #{ddff_fgbg_coc_forward.1} parent=11 // pred_check_branch
          %143 = sbr.rel (%p141) target = $region16
        $region15: #{ddff_fgbg_coc_forward.1} parent=11 // pred_region
          _
        $region16: #{ddff_fgbg_coc_forward.1} parent=11 // pred_fallthru
          _
        // Predicated region
        $region17: #{ddff_fgbg_coc_forward.1} parent=11 // pred_check
          %p144 = pneg %p79
        $region18: #{ddff_fgbg_coc_forward.1} parent=11 // pred_check_branch
          %146 = sbr.rel (%p144) target = $region20
        $region19: #{ddff_fgbg_coc_forward.1} parent=11 // pred_region
          _
        $region20: #{ddff_fgbg_coc_forward.1} parent=11 // pred_fallthru
          _
        // Predicated region
        $region21: #{ddff_fgbg_coc_forward.1} parent=11 // pred_check
          %p147 = pneg %p100
        $region22: #{ddff_fgbg_coc_forward.1} parent=11 // pred_check_branch
          %149 = sbr.rel (%p147) target = $region24
        $region23: #{ddff_fgbg_coc_forward.1} parent=11 // pred_region
          %s151 = ssub.s32 16, 16
          %152 = vsyncadd [#allocation3], %s151
          %s154 = sshll.u32 %s3, 4
          %s155 = int_to_ptr.vmem [resolvable:$true] %s154
          %157 = dma.vmem_to_smem %s155, 16, [#allocation2], [#allocation3]
        $region24: #{ddff_fgbg_coc_forward.1} parent=11 // pred_fallthru
          _
      $region12: #{ddff_fgbg_coc_forward.1} parent=5 // pred_fallthru
        _
      %p158 = scmp.lt.s32.totalorder %s11, 2
      // Predicated region
      $region25: #{ddff_fgbg_coc_forward.1} parent=5 // pred_check
        %p159 = pneg %p158
      $region26: #{ddff_fgbg_coc_forward.1} parent=5 // pred_check_branch
        %161 = sbr.rel (%p159) target = $region28
      $region27: #{ddff_fgbg_coc_forward.1} parent=5 // pred_region
        // Predicated region
        $region29: #{ddff_fgbg_coc_forward.1} parent=27 // pred_check
          %p162 = pneg %p31
        $region30: #{ddff_fgbg_coc_forward.1} parent=27 // pred_check_branch
          %164 = sbr.rel (%p162) target = $region32
        $region31: #{ddff_fgbg_coc_forward.1} parent=27 // pred_region
          %p165 = scmp.lt.s32.totalorder %s11, 1
          %s166 = scalar_select %p165, %s11, 1
          %s167 = smul.addr %s166, 8
          %s168 = smul.addr %s167, 8
          %s169 = scalar_lea.vmem %s0, %s168
        $region32: #{ddff_fgbg_coc_forward.1} parent=27 // pred_fallthru
          _
      $region28: #{ddff_fgbg_coc_forward.1} parent=5 // pred_fallthru
        _
      %p170 = scmp.le.s32.totalorder 1, %s11
      %p171 = scmp.lt.s32.totalorder %s11, 3
      %p172 = pnand %p170, %p171
      %p173 = pneg %p172
      // Predicated region
      $region33: #{ddff_fgbg_coc_forward.1} parent=5 // pred_check
        _
      $region34: #{ddff_fgbg_coc_forward.1} parent=5 // pred_check_branch
        %175 = sbr.rel (%p172) target = $region36
      $region35: #{ddff_fgbg_coc_forward.1} parent=5 // pred_region
        %s176 = ssub.s32 %s11, 1
        // Predicated region
        $region37: #{ddff_fgbg_coc_forward.1} parent=35 // pred_check
          %p177 = pneg %p100
        $region38: #{ddff_fgbg_coc_forward.1} parent=35 // pred_check_branch
          %179 = sbr.rel (%p177) target = $region40
        $region39: #{ddff_fgbg_coc_forward.1} parent=35 // pred_region
          %180 = dma.done [#allocation3], 16
        $region40: #{ddff_fgbg_coc_forward.1} parent=35 // pred_fallthru
          _
        %181 = sfence
        %p182 = scmp.lt.s32.totalorder %s16, 1
        %s183 = scalar_select %p182, %s16, 1
        %s184 = smul.addr %s183, 8
        %s185 = smul.addr %s184, 8
        %s186 = scalar_lea.vmem %s0, %s185
        %p187 = pneg %p37
        %p188 = pneg %p34
        %p189 = pneg %p58
        %p190 = pneg %p55
        %p191 = pneg %p79
        %p192 = pneg %p76
        %p193 = pneg %p100
        %p194 = pneg %p97
        %p195 = pneg %p126
        %p196 = pneg %p123
        %p197 = scmp.lt.s32.totalorder %s16, 1
        %s198 = scalar_select %p197, %s16, 1
        %s199 = smul.addr %s198, 2
        %s200 = smul.addr %s199, 2
        %s201 = scalar_lea.vmem %s4, %s200
        %p202 = scmp.lt.s32.totalorder %s16, 1
        %s203 = scalar_select %p202, %s16, 1
        %s204 = smul.addr %s203, 8
        %s205 = smul.addr %s204, 8
        %s206 = scalar_lea.vmem %s0, %s205
        %p207 = scmp.lt.s32.totalorder %s16, 1
        %s208 = scalar_select %p207, %s16, 1
        %s209 = smul.addr %s208, 2
        %s210 = smul.addr %s209, 2
        %s211 = scalar_lea.vmem %s4, %s210
        %v212 = vld [vmem:[%s206] sm:$0xff]
        %v213 = vld [vmem:[%s206 + $0x8] sm:$0xff]
        %v214 = vld [vmem:[%s206 + $0x10] sm:$0xff]
        %v215 = vld [vmem:[%s206 + $0x18] sm:$0xff]
        %v216 = vld [vmem:[%s206 + $0x20] sm:$0xff]
        %v217 = vld [vmem:[%s206 + $0x28] sm:$0xff]
        %v218 = vld [vmem:[%s206 + $0x30] sm:$0x3f]
        %v219 = vld [vmem:[%s206 + $0x38] sm:$0x3f]
        %220 = vrot.lane.b32.xlu0 %v212, 17
        %v221 = vpop.permute.xlu0 %220
        %222 = vrot.lane.b32.xlu0 %v214, 17
        %v223 = vpop.permute.xlu0 %222
        %224 = vrot.lane.b32.xlu0 %v216, 17
        %v225 = vpop.permute.xlu0 %224
        %226 = vrot.lane.b32.xlu0 %v218, 17
        %v227 = vpop.permute.xlu0 %226
        %228 = vrot.lane.b32.xlu0 %v213, 17
        %v229 = vpop.permute.xlu0 %228
        %230 = vrot.lane.b32.xlu0 %v215, 17
        %v231 = vpop.permute.xlu0 %230
        %232 = vrot.lane.b32.xlu0 %v217, 17
        %v233 = vpop.permute.xlu0 %232
        %234 = vrot.lane.b32.xlu0 %v219, 17
        %v235 = vpop.permute.xlu0 %234
        %v236 = vlaneseq
        %v237 = vand.u32 %v236, 127
        %vm238 = vcmp.lt.s32.totalorder %v237, 17
        %v239 = vsel %vm238, %v221, %v229
        %v240 = vsel %vm238, %v223, %v231
        %v241 = vsel %vm238, %v225, %v233
        %v242 = vsel %vm238, %v227, %v235
        %v243 = vsel %vm238, %v229, %v221
        %v244 = vsel %vm238, %v231, %v223
        %v245 = vsel %vm238, %v233, %v225
        %v246 = vsel %vm238, %v235, %v227
        %v247 = vld [vmem:[%s1] sm:$0xff]
        %vm248 = vcmask 244736
        %v250 = vsel %vm248, %v247, 0
        %vm252 = vcmask 1045504
        %v254 = vsel %vm252, %v246, 0
        %v257 = vsel %vm252, %v242, 0
        %v259 = vand.u32 %v239, 4294901760
        %260 = vmatprep.subr.mxu0 %v259
        %v261 = vand.u32 %v243, 4294901760
        %262 = vmatpush1.msra.mxu0 %v261
        %v263 = vand.u32 %v240, 4294901760
        %264 = vmatprep.subr.mxu0 %v263
        %v265 = vand.u32 %v244, 4294901760
        %266 = vmatpush1.msra.mxu0 %v265
        %v267 = vand.u32 %v241, 4294901760
        %268 = vmatprep.subr.mxu0 %v267
        %v269 = vand.u32 %v245, 4294901760
        %270 = vmatpush1.msra.mxu0 %v269
        %v271 = vand.u32 %v257, 4294901760
        %272 = vmatprep.subr.mxu0 %v271
        %v273 = vand.u32 %v254, 4294901760
        %274 = vmatpush1.msra.mxu0 %v273
        %275 = vmatprep.subr.mxu0 0.0
        %276 = vmatpush1.msra.mxu0 0.0
        %277 = vmatprep.subr.mxu0 0.0
        %278 = vmatpush1.msra.mxu0 0.0
        %279 = vmatprep.subr.mxu0 0.0
        %280 = vmatpush1.msra.mxu0 0.0
        %281 = vmatprep.subr.mxu0 0.0
        %282 = vmatpush1.msra.mxu0 0.0
        %283 = vmatprep.subr.mxu0 0.0
        %284 = vmatpush1.msra.mxu0 0.0
        %285 = vmatprep.subr.mxu0 0.0
        %286 = vmatpush1.msra.mxu0 0.0
        %287 = vmatprep.subr.mxu0 0.0
        %288 = vmatpush1.msra.mxu0 0.0
        %289 = vmatprep.subr.mxu0 0.0
        %290 = vmatpush1.msra.mxu0 0.0
        %291 = vmatprep.subr.mxu0 0.0
        %292 = vmatpush1.msra.mxu0 0.0
        %293 = vmatprep.subr.mxu0 0.0
        %294 = vmatpush1.msra.mxu0 0.0
        %295 = vmatprep.subr.mxu0 0.0
        %296 = vmatpush1.msra.mxu0 0.0
        %297 = vmatprep.subr.mxu0 0.0
        %298 = vmatpush1.msra.mxu0 0.0
        %299 = vmatprep.subr.mxu0 0.0
        %300 = vmatpush1.msra.mxu0 0.0
        %301 = vmatprep.subr.mxu0 0.0
        %302 = vmatpush1.msra.mxu0 0.0
        %303 = vmatprep.subr.mxu0 0.0
        %304 = vmatpush1.msra.mxu0 0.0
        %305 = vmatprep.subr.mxu0 0.0
        %306 = vmatpush1.msra.mxu0 0.0
        %307 = vmatprep.subr.mxu0 0.0
        %308 = vmatpush1.msra.mxu0 0.0
        %309 = vmatprep.subr.mxu0 0.0
        %310 = vmatpush1.msra.mxu0 0.0
        %311 = vmatprep.subr.mxu0 0.0
        %312 = vmatpush1.msra.mxu0 0.0
        %313 = vmatprep.subr.mxu0 0.0
        %314 = vmatpush1.msra.mxu0 0.0
        %315 = vmatprep.subr.mxu0 0.0
        %316 = vmatpush1.msra.mxu0 0.0
        %317 = vmatprep.subr.mxu0 0.0
        %318 = vmatpush1.msra.mxu0 0.0
        %319 = vmatprep.subr.mxu0 0.0
        %320 = vmatpush1.msra.mxu0 0.0
        %321 = vmatprep.subr.mxu0 0.0
        %322 = vmatpush1.msra.mxu0 0.0
        %323 = vmatprep.subr.mxu0 0.0
        %324 = vmatpush1.msra.mxu0 0.0
        %325 = vmatprep.subr.mxu0 0.0
        %326 = vmatpush1.msra.mxu0 0.0
        %327 = vmatprep.subr.mxu0 0.0
        %328 = vmatpush1.msra.mxu0 0.0
        %329 = vmatprep.subr.mxu0 0.0
        %330 = vmatpush1.msra.mxu0 0.0
        %331 = vmatprep.mubr.f32.mxu0 0.0
        %v332 = vand.u32 %v250, 4294901760
        %v333 = vsub.f32 %v250, %v332
        %v334 = vand.u32 %v333, 4294901760
        %v335 = vsub.f32 %v333, %v334
        %v336 = vand.u32 %v335, 4294901760
        %337 = vmatmul.mubr.f32.gmra.mrb[0].mxu0 %v336
        %v338 = vpop.f32.mrb[0].mxu0
        %v339 = vadd.f32 0.0, %v338
        %v340 = vpop.f32.mrb[0].mxu0
        %v341 = vadd.f32 0.0, %v340
        %342 = vdwg.mxu0
        %v343 = vand.u32 %v239, 4294901760
        %v344 = vsub.f32 %v239, %v343
        %v345 = vand.u32 %v344, 4294901760
        %v346 = vsub.f32 %v344, %v345
        %v347 = vand.u32 %v346, 4294901760
        %348 = vmatprep.subr.mxu0 %v347
        %v349 = vand.u32 %v243, 4294901760
        %v350 = vsub.f32 %v243, %v349
        %v351 = vand.u32 %v350, 4294901760
        %v352 = vsub.f32 %v350, %v351
        %v353 = vand.u32 %v352, 4294901760
        %354 = vmatpush1.msra.mxu0 %v353
        %v355 = vand.u32 %v240, 4294901760
        %v356 = vsub.f32 %v240, %v355
        %v357 = vand.u32 %v356, 4294901760
        %v358 = vsub.f32 %v356, %v357
        %v359 = vand.u32 %v358, 4294901760
        %360 = vmatprep.subr.mxu0 %v359
        %v361 = vand.u32 %v244, 4294901760
        %v362 = vsub.f32 %v244, %v361
        %v363 = vand.u32 %v362, 4294901760
        %v364 = vsub.f32 %v362, %v363
        %v365 = vand.u32 %v364, 4294901760
        %366 = vmatpush1.msra.mxu0 %v365
        %v367 = vand.u32 %v241, 4294901760
        %v368 = vsub.f32 %v241, %v367
        %v369 = vand.u32 %v368, 4294901760
        %v370 = vsub.f32 %v368, %v369
        %v371 = vand.u32 %v370, 4294901760
        %372 = vmatprep.subr.mxu0 %v371
        %v373 = vand.u32 %v245, 4294901760
        %v374 = vsub.f32 %v245, %v373
        %v375 = vand.u32 %v374, 4294901760
        %v376 = vsub.f32 %v374, %v375
        %v377 = vand.u32 %v376, 4294901760
        %378 = vmatpush1.msra.mxu0 %v377
        %v379 = vand.u32 %v257, 4294901760
        %v380 = vsub.f32 %v257, %v379
        %v381 = vand.u32 %v380, 4294901760
        %v382 = vsub.f32 %v380, %v381
        %v383 = vand.u32 %v382, 4294901760
        %384 = vmatprep.subr.mxu0 %v383
        %v385 = vand.u32 %v254, 4294901760
        %v386 = vsub.f32 %v254, %v385
        %v387 = vand.u32 %v386, 4294901760
        %v388 = vsub.f32 %v386, %v387
        %v389 = vand.u32 %v388, 4294901760
        %390 = vmatpush1.msra.mxu0 %v389
        %391 = vmatprep.subr.mxu0 0.0
        %392 = vmatpush1.msra.mxu0 0.0
        %393 = vmatprep.subr.mxu0 0.0
        %394 = vmatpush1.msra.mxu0 0.0
        %395 = vmatprep.subr.mxu0 0.0
        %396 = vmatpush1.msra.mxu0 0.0
        %397 = vmatprep.subr.mxu0 0.0
        %398 = vmatpush1.msra.mxu0 0.0
        %399 = vmatprep.subr.mxu0 0.0
        %400 = vmatpush1.msra.mxu0 0.0
        %401 = vmatprep.subr.mxu0 0.0
        %402 = vmatpush1.msra.mxu0 0.0
        %403 = vmatprep.subr.mxu0 0.0
        %404 = vmatpush1.msra.mxu0 0.0
        %405 = vmatprep.subr.mxu0 0.0
        %406 = vmatpush1.msra.mxu0 0.0
        %407 = vmatprep.subr.mxu0 0.0
        %408 = vmatpush1.msra.mxu0 0.0
        %409 = vmatprep.subr.mxu0 0.0
        %410 = vmatpush1.msra.mxu0 0.0
        %411 = vmatprep.subr.mxu0 0.0
        %412 = vmatpush1.msra.mxu0 0.0
        %413 = vmatprep.subr.mxu0 0.0
        %414 = vmatpush1.msra.mxu0 0.0
        %415 = vmatprep.subr.mxu0 0.0
        %416 = vmatpush1.msra.mxu0 0.0
        %417 = vmatprep.subr.mxu0 0.0
        %418 = vmatpush1.msra.mxu0 0.0
        %419 = vmatprep.subr.mxu0 0.0
        %420 = vmatpush1.msra.mxu0 0.0
        %421 = vmatprep.subr.mxu0 0.0
        %422 = vmatpush1.msra.mxu0 0.0
        %423 = vmatprep.subr.mxu0 0.0
        %424 = vmatpush1.msra.mxu0 0.0
        %425 = vmatprep.subr.mxu0 0.0
        %426 = vmatpush1.msra.mxu0 0.0
        %427 = vmatprep.subr.mxu0 0.0
        %428 = vmatpush1.msra.mxu0 0.0
        %429 = vmatprep.subr.mxu0 0.0
        %430 = vmatpush1.msra.mxu0 0.0
        %431 = vmatprep.subr.mxu0 0.0
        %432 = vmatpush1.msra.mxu0 0.0
        %433 = vmatprep.subr.mxu0 0.0
        %434 = vmatpush1.msra.mxu0 0.0
        %435 = vmatprep.subr.mxu0 0.0
        %436 = vmatpush1.msra.mxu0 0.0
        %437 = vmatprep.subr.mxu0 0.0
        %438 = vmatpush1.msra.mxu0 0.0
        %439 = vmatprep.subr.mxu0 0.0
        %440 = vmatpush1.msra.mxu0 0.0
        %441 = vmatprep.subr.mxu0 0.0
        %442 = vmatpush1.msra.mxu0 0.0
        %443 = vmatprep.subr.mxu0 0.0
        %444 = vmatpush1.msra.mxu0 0.0
        %445 = vmatprep.subr.mxu0 0.0
        %446 = vmatpush1.msra.mxu0 0.0
        %447 = vmatprep.mubr.f32.mxu0 0.0
        %v448 = vand.u32 %v250, 4294901760
        %449 = vmatmul.mubr.f32.gmra.mrb[0].mxu0 %v448
        %v450 = vpop.f32.mrb[0].mxu0
        %v451 = vadd.f32 %v339, %v450
        %v452 = vpop.f32.mrb[0].mxu0
        %v453 = vadd.f32 %v341, %v452
        %454 = vdwg.mxu0
        %v455 = vand.u32 %v239, 4294901760
        %v456 = vsub.f32 %v239, %v455
        %457 = vmatprep.subr.mxu0 %v456
        %v458 = vand.u32 %v243, 4294901760
        %v459 = vsub.f32 %v243, %v458
        %460 = vmatpush1.msra.mxu0 %v459
        %v461 = vand.u32 %v240, 4294901760
        %v462 = vsub.f32 %v240, %v461
        %463 = vmatprep.subr.mxu0 %v462
        %v464 = vand.u32 %v244, 4294901760
        %v465 = vsub.f32 %v244, %v464
        %466 = vmatpush1.msra.mxu0 %v465
        %v467 = vand.u32 %v241, 4294901760
        %v468 = vsub.f32 %v241, %v467
        %469 = vmatprep.subr.mxu0 %v468
        %v470 = vand.u32 %v245, 4294901760
        %v471 = vsub.f32 %v245, %v470
        %472 = vmatpush1.msra.mxu0 %v471
        %v473 = vand.u32 %v257, 4294901760
        %v474 = vsub.f32 %v257, %v473
        %475 = vmatprep.subr.mxu0 %v474
        %v476 = vand.u32 %v254, 4294901760
        %v477 = vsub.f32 %v254, %v476
        %478 = vmatpush1.msra.mxu0 %v477
        %479 = vmatprep.subr.mxu0 0.0
        %480 = vmatpush1.msra.mxu0 0.0
        %481 = vmatprep.subr.mxu0 0.0
        %482 = vmatpush1.msra.mxu0 0.0
        %483 = vmatprep.subr.mxu0 0.0
        %484 = vmatpush1.msra.mxu0 0.0
        %485 = vmatprep.subr.mxu0 0.0
        %486 = vmatpush1.msra.mxu0 0.0
        %487 = vmatprep.subr.mxu0 0.0
        %488 = vmatpush1.msra.mxu0 0.0
        %489 = vmatprep.subr.mxu0 0.0
        %490 = vmatpush1.msra.mxu0 0.0
        %491 = vmatprep.subr.mxu0 0.0
        %492 = vmatpush1.msra.mxu0 0.0
        %493 = vmatprep.subr.mxu0 0.0
        %494 = vmatpush1.msra.mxu0 0.0
        %495 = vmatprep.subr.mxu0 0.0
        %496 = vmatpush1.msra.mxu0 0.0
        %497 = vmatprep.subr.mxu0 0.0
        %498 = vmatpush1.msra.mxu0 0.0
        %499 = vmatprep.subr.mxu0 0.0
        %500 = vmatpush1.msra.mxu0 0.0
        %501 = vmatprep.subr.mxu0 0.0
        %502 = vmatpush1.msra.mxu0 0.0
        %503 = vmatprep.subr.mxu0 0.0
        %504 = vmatpush1.msra.mxu0 0.0
        %505 = vmatprep.subr.mxu0 0.0
        %506 = vmatpush1.msra.mxu0 0.0
        %507 = vmatprep.subr.mxu0 0.0
        %508 = vmatpush1.msra.mxu0 0.0
        %509 = vmatprep.subr.mxu0 0.0
        %510 = vmatpush1.msra.mxu0 0.0
        %511 = vmatprep.subr.mxu0 0.0
        %512 = vmatpush1.msra.mxu0 0.0
        %513 = vmatprep.subr.mxu0 0.0
        %514 = vmatpush1.msra.mxu0 0.0
        %515 = vmatprep.subr.mxu0 0.0
        %516 = vmatpush1.msra.mxu0 0.0
        %517 = vmatprep.subr.mxu0 0.0
        %518 = vmatpush1.msra.mxu0 0.0
        %519 = vmatprep.subr.mxu0 0.0
        %520 = vmatpush1.msra.mxu0 0.0
        %521 = vmatprep.subr.mxu0 0.0
        %522 = vmatpush1.msra.mxu0 0.0
        %523 = vmatprep.subr.mxu0 0.0
        %524 = vmatpush1.msra.mxu0 0.0
        %525 = vmatprep.subr.mxu0 0.0
        %526 = vmatpush1.msra.mxu0 0.0
        %527 = vmatprep.subr.mxu0 0.0
        %528 = vmatpush1.msra.mxu0 0.0
        %529 = vmatprep.subr.mxu0 0.0
        %530 = vmatpush1.msra.mxu0 0.0
        %531 = vmatprep.subr.mxu0 0.0
        %532 = vmatpush1.msra.mxu0 0.0
        %533 = vmatprep.subr.mxu0 0.0
        %534 = vmatpush1.msra.mxu0 0.0
        %535 = vmatprep.mubr.f32.mxu0 0.0
        %v536 = vand.u32 %v250, 4294901760
        %v537 = vsub.f32 %v250, %v536
        %538 = vmatmul.mubr.f32.gmra.mrb[0].mxu0 %v537
        %v539 = vpop.f32.mrb[0].mxu0
        %v540 = vadd.f32 %v451, %v539
        %v541 = vpop.f32.mrb[0].mxu0
        %v542 = vadd.f32 %v453, %v541
        %543 = vdwg.mxu0
        %v544 = vand.u32 %v239, 4294901760
        %545 = vmatprep.subr.mxu0 %v544
        %v546 = vand.u32 %v243, 4294901760
        %547 = vmatpush1.msra.mxu0 %v546
        %v548 = vand.u32 %v240, 4294901760
        %549 = vmatprep.subr.mxu0 %v548
        %v550 = vand.u32 %v244, 4294901760
        %551 = vmatpush1.msra.mxu0 %v550
        %v552 = vand.u32 %v241, 4294901760
        %553 = vmatprep.subr.mxu0 %v552
        %v554 = vand.u32 %v245, 4294901760
        %555 = vmatpush1.msra.mxu0 %v554
        %v556 = vand.u32 %v257, 4294901760
        %557 = vmatprep.subr.mxu0 %v556
        %v558 = vand.u32 %v254, 4294901760
        %559 = vmatpush1.msra.mxu0 %v558
        %560 = vmatprep.subr.mxu0 0.0
        %561 = vmatpush1.msra.mxu0 0.0
        %562 = vmatprep.subr.mxu0 0.0
        %563 = vmatpush1.msra.mxu0 0.0
        %564 = vmatprep.subr.mxu0 0.0
        %565 = vmatpush1.msra.mxu0 0.0
        %566 = vmatprep.subr.mxu0 0.0
        %567 = vmatpush1.msra.mxu0 0.0
        %568 = vmatprep.subr.mxu0 0.0
        %569 = vmatpush1.msra.mxu0 0.0
        %570 = vmatprep.subr.mxu0 0.0
        %571 = vmatpush1.msra.mxu0 0.0
        %572 = vmatprep.subr.mxu0 0.0
        %573 = vmatpush1.msra.mxu0 0.0
        %574 = vmatprep.subr.mxu0 0.0
        %575 = vmatpush1.msra.mxu0 0.0
        %576 = vmatprep.subr.mxu0 0.0
        %577 = vmatpush1.msra.mxu0 0.0
        %578 = vmatprep.subr.mxu0 0.0
        %579 = vmatpush1.msra.mxu0 0.0
        %580 = vmatprep.subr.mxu0 0.0
        %581 = vmatpush1.msra.mxu0 0.0
        %582 = vmatprep.subr.mxu0 0.0
        %583 = vmatpush1.msra.mxu0 0.0
        %584 = vmatprep.subr.mxu0 0.0
        %585 = vmatpush1.msra.mxu0 0.0
        %586 = vmatprep.subr.mxu0 0.0
        %587 = vmatpush1.msra.mxu0 0.0
        %588 = vmatprep.subr.mxu0 0.0
        %589 = vmatpush1.msra.mxu0 0.0
        %590 = vmatprep.subr.mxu0 0.0
        %591 = vmatpush1.msra.mxu0 0.0
        %592 = vmatprep.subr.mxu0 0.0
        %593 = vmatpush1.msra.mxu0 0.0
        %594 = vmatprep.subr.mxu0 0.0
        %595 = vmatpush1.msra.mxu0 0.0
        %596 = vmatprep.subr.mxu0 0.0
        %597 = vmatpush1.msra.mxu0 0.0
        %598 = vmatprep.subr.mxu0 0.0
        %599 = vmatpush1.msra.mxu0 0.0
        %600 = vmatprep.subr.mxu0 0.0
        %601 = vmatpush1.msra.mxu0 0.0
        %602 = vmatprep.subr.mxu0 0.0
        %603 = vmatpush1.msra.mxu0 0.0
        %604 = vmatprep.subr.mxu0 0.0
        %605 = vmatpush1.msra.mxu0 0.0
        %606 = vmatprep.subr.mxu0 0.0
        %607 = vmatpush1.msra.mxu0 0.0
        %608 = vmatprep.subr.mxu0 0.0
        %609 = vmatpush1.msra.mxu0 0.0
        %610 = vmatprep.subr.mxu0 0.0
        %611 = vmatpush1.msra.mxu0 0.0
        %612 = vmatprep.subr.mxu0 0.0
        %613 = vmatpush1.msra.mxu0 0.0
        %614 = vmatprep.subr.mxu0 0.0
        %615 = vmatpush1.msra.mxu0 0.0
        %616 = vmatprep.mubr.f32.mxu0 0.0
        %v617 = vand.u32 %v250, 4294901760
        %v618 = vsub.f32 %v250, %v617
        %v619 = vand.u32 %v618, 4294901760
        %620 = vmatmul.mubr.f32.gmra.mrb[0].mxu0 %v619
        %v621 = vpop.f32.mrb[0].mxu0
        %v622 = vadd.f32 %v540, %v621
        %v623 = vpop.f32.mrb[0].mxu0
        %v624 = vadd.f32 %v542, %v623
        %625 = vdwg.mxu0
        %v626 = vand.u32 %v239, 4294901760
        %v627 = vsub.f32 %v239, %v626
        %v628 = vand.u32 %v627, 4294901760
        %629 = vmatprep.subr.mxu0 %v628
        %v630 = vand.u32 %v243, 4294901760
        %v631 = vsub.f32 %v243, %v630
        %v632 = vand.u32 %v631, 4294901760
        %633 = vmatpush1.msra.mxu0 %v632
        %v634 = vand.u32 %v240, 4294901760
        %v635 = vsub.f32 %v240, %v634
        %v636 = vand.u32 %v635, 4294901760
        %637 = vmatprep.subr.mxu0 %v636
        %v638 = vand.u32 %v244, 4294901760
        %v639 = vsub.f32 %v244, %v638
        %v640 = vand.u32 %v639, 4294901760
        %641 = vmatpush1.msra.mxu0 %v640
        %v642 = vand.u32 %v241, 4294901760
        %v643 = vsub.f32 %v241, %v642
        %v644 = vand.u32 %v643, 4294901760
        %645 = vmatprep.subr.mxu0 %v644
        %v646 = vand.u32 %v245, 4294901760
        %v647 = vsub.f32 %v245, %v646
        %v648 = vand.u32 %v647, 4294901760
        %649 = vmatpush1.msra.mxu0 %v648
        %v650 = vand.u32 %v257, 4294901760
        %v651 = vsub.f32 %v257, %v650
        %v652 = vand.u32 %v651, 4294901760
        %653 = vmatprep.subr.mxu0 %v652
        %v654 = vand.u32 %v254, 4294901760
        %v655 = vsub.f32 %v254, %v654
        %v656 = vand.u32 %v655, 4294901760
        %657 = vmatpush1.msra.mxu0 %v656
        %658 = vmatprep.subr.mxu0 0.0
        %659 = vmatpush1.msra.mxu0 0.0
        %660 = vmatprep.subr.mxu0 0.0
        %661 = vmatpush1.msra.mxu0 0.0
        %662 = vmatprep.subr.mxu0 0.0
        %663 = vmatpush1.msra.mxu0 0.0
        %664 = vmatprep.subr.mxu0 0.0
        %665 = vmatpush1.msra.mxu0 0.0
        %666 = vmatprep.subr.mxu0 0.0
        %667 = vmatpush1.msra.mxu0 0.0
        %668 = vmatprep.subr.mxu0 0.0
        %669 = vmatpush1.msra.mxu0 0.0
        %670 = vmatprep.subr.mxu0 0.0
        %671 = vmatpush1.msra.mxu0 0.0
        %672 = vmatprep.subr.mxu0 0.0
        %673 = vmatpush1.msra.mxu0 0.0
        %674 = vmatprep.subr.mxu0 0.0
        %675 = vmatpush1.msra.mxu0 0.0
        %676 = vmatprep.subr.mxu0 0.0
        %677 = vmatpush1.msra.mxu0 0.0
        %678 = vmatprep.subr.mxu0 0.0
        %679 = vmatpush1.msra.mxu0 0.0
        %680 = vmatprep.subr.mxu0 0.0
        %681 = vmatpush1.msra.mxu0 0.0
        %682 = vmatprep.subr.mxu0 0.0
        %683 = vmatpush1.msra.mxu0 0.0
        %684 = vmatprep.subr.mxu0 0.0
        %685 = vmatpush1.msra.mxu0 0.0
        %686 = vmatprep.subr.mxu0 0.0
        %687 = vmatpush1.msra.mxu0 0.0
        %688 = vmatprep.subr.mxu0 0.0
        %689 = vmatpush1.msra.mxu0 0.0
        %690 = vmatprep.subr.mxu0 0.0
        %691 = vmatpush1.msra.mxu0 0.0
        %692 = vmatprep.subr.mxu0 0.0
        %693 = vmatpush1.msra.mxu0 0.0
        %694 = vmatprep.subr.mxu0 0.0
        %695 = vmatpush1.msra.mxu0 0.0
        %696 = vmatprep.subr.mxu0 0.0
        %697 = vmatpush1.msra.mxu0 0.0
        %698 = vmatprep.subr.mxu0 0.0
        %699 = vmatpush1.msra.mxu0 0.0
        %700 = vmatprep.subr.mxu0 0.0
        %701 = vmatpush1.msra.mxu0 0.0
        %702 = vmatprep.subr.mxu0 0.0
        %703 = vmatpush1.msra.mxu0 0.0
        %704 = vmatprep.subr.mxu0 0.0
        %705 = vmatpush1.msra.mxu0 0.0
        %706 = vmatprep.subr.mxu0 0.0
        %707 = vmatpush1.msra.mxu0 0.0
        %708 = vmatprep.subr.mxu0 0.0
        %709 = vmatpush1.msra.mxu0 0.0
        %710 = vmatprep.subr.mxu0 0.0
        %711 = vmatpush1.msra.mxu0 0.0
        %712 = vmatprep.subr.mxu0 0.0
        %713 = vmatpush1.msra.mxu0 0.0
        %714 = vmatprep.mubr.f32.mxu0 0.0
        %v715 = vand.u32 %v250, 4294901760
        %716 = vmatmul.mubr.f32.gmra.mrb[0].mxu0 %v715
        %v717 = vpop.f32.mrb[0].mxu0
        %v718 = vadd.f32 %v622, %v717
        %v719 = vpop.f32.mrb[0].mxu0
        %v720 = vadd.f32 %v624, %v719
        %721 = vdwg.mxu0
        %v722 = vand.u32 %v239, 4294901760
        %723 = vmatprep.subr.mxu0 %v722
        %v724 = vand.u32 %v243, 4294901760
        %725 = vmatpush1.msra.mxu0 %v724
        %v726 = vand.u32 %v240, 4294901760
        %727 = vmatprep.subr.mxu0 %v726
        %v728 = vand.u32 %v244, 4294901760
        %729 = vmatpush1.msra.mxu0 %v728
        %v730 = vand.u32 %v241, 4294901760
        %731 = vmatprep.subr.mxu0 %v730
        %v732 = vand.u32 %v245, 4294901760
        %733 = vmatpush1.msra.mxu0 %v732
        %v734 = vand.u32 %v257, 4294901760
        %735 = vmatprep.subr.mxu0 %v734
        %v736 = vand.u32 %v254, 4294901760
        %737 = vmatpush1.msra.mxu0 %v736
        %738 = vmatprep.subr.mxu0 0.0
        %739 = vmatpush1.msra.mxu0 0.0
        %740 = vmatprep.subr.mxu0 0.0
        %741 = vmatpush1.msra.mxu0 0.0
        %742 = vmatprep.subr.mxu0 0.0
        %743 = vmatpush1.msra.mxu0 0.0
        %744 = vmatprep.subr.mxu0 0.0
        %745 = vmatpush1.msra.mxu0 0.0
        %746 = vmatprep.subr.mxu0 0.0
        %747 = vmatpush1.msra.mxu0 0.0
        %748 = vmatprep.subr.mxu0 0.0
        %749 = vmatpush1.msra.mxu0 0.0
        %750 = vmatprep.subr.mxu0 0.0
        %751 = vmatpush1.msra.mxu0 0.0
        %752 = vmatprep.subr.mxu0 0.0
        %753 = vmatpush1.msra.mxu0 0.0
        %754 = vmatprep.subr.mxu0 0.0
        %755 = vmatpush1.msra.mxu0 0.0
        %756 = vmatprep.subr.mxu0 0.0
        %757 = vmatpush1.msra.mxu0 0.0
        %758 = vmatprep.subr.mxu0 0.0
        %759 = vmatpush1.msra.mxu0 0.0
        %760 = vmatprep.subr.mxu0 0.0
        %761 = vmatpush1.msra.mxu0 0.0
        %762 = vmatprep.subr.mxu0 0.0
        %763 = vmatpush1.msra.mxu0 0.0
        %764 = vmatprep.subr.mxu0 0.0
        %765 = vmatpush1.msra.mxu0 0.0
        %766 = vmatprep.subr.mxu0 0.0
        %767 = vmatpush1.msra.mxu0 0.0
        %768 = vmatprep.subr.mxu0 0.0
        %769 = vmatpush1.msra.mxu0 0.0
        %770 = vmatprep.subr.mxu0 0.0
        %771 = vmatpush1.msra.mxu0 0.0
        %772 = vmatprep.subr.mxu0 0.0
        %773 = vmatpush1.msra.mxu0 0.0
        %774 = vmatprep.subr.mxu0 0.0
        %775 = vmatpush1.msra.mxu0 0.0
        %776 = vmatprep.subr.mxu0 0.0
        %777 = vmatpush1.msra.mxu0 0.0
        %778 = vmatprep.subr.mxu0 0.0
        %779 = vmatpush1.msra.mxu0 0.0
        %780 = vmatprep.subr.mxu0 0.0
        %781 = vmatpush1.msra.mxu0 0.0
        %782 = vmatprep.subr.mxu0 0.0
        %783 = vmatpush1.msra.mxu0 0.0
        %784 = vmatprep.subr.mxu0 0.0
        %785 = vmatpush1.msra.mxu0 0.0
        %786 = vmatprep.subr.mxu0 0.0
        %787 = vmatpush1.msra.mxu0 0.0
        %788 = vmatprep.subr.mxu0 0.0
        %789 = vmatpush1.msra.mxu0 0.0
        %790 = vmatprep.subr.mxu0 0.0
        %791 = vmatpush1.msra.mxu0 0.0
        %792 = vmatprep.subr.mxu0 0.0
        %793 = vmatpush1.msra.mxu0 0.0
        %794 = vmatprep.mubr.f32.mxu0 0.0
        %v795 = vand.u32 %v250, 4294901760
        %796 = vmatmul.mubr.f32.gmra.mrb[0].mxu0 %v795
        %v797 = vpop.f32.mrb[0].mxu0
        %v798 = vadd.f32 %v718, %v797
        %v799 = vpop.f32.mrb[0].mxu0
        %v800 = vadd.f32 %v720, %v799
        %801 = vdwg.mxu0
        %v802 = vld [vmem:[%s2] ss:$8 sm:$0x3]
        %v804 = vlaneseq
        %v805 = vshrl.u32 %v804, 7
        %v806 = vsub.s32 0, %v805
        %v807 = vrot.slane %v802, %v806
        %v808 = vlaneseq
        %v809 = vshrl.u32 %v808, 7
        %v810 = vsub.s32 1, %v809
        %v811 = vrot.slane %v802, %v810
        %v814 = vmul.f32 %v798, %v807
        %v815 = vmul.f32 %v800, %v811
        %v816 = vadd.f32 %v814, 0.0
        %v817 = vadd.f32 %v815, 0.0
        %818 = vrot.lane.b32.xlu0 %v212, 16
        %v819 = vpop.permute.xlu0 %818
        %820 = vrot.lane.b32.xlu0 %v214, 16
        %v821 = vpop.permute.xlu0 %820
        %822 = vrot.lane.b32.xlu0 %v216, 16
        %v823 = vpop.permute.xlu0 %822
        %824 = vrot.lane.b32.xlu0 %v218, 16
        %v825 = vpop.permute.xlu0 %824
        %826 = vrot.lane.b32.xlu0 %v213, 16
        %v827 = vpop.permute.xlu0 %826
        %828 = vrot.lane.b32.xlu0 %v215, 16
        %v829 = vpop.permute.xlu0 %828
        %830 = vrot.lane.b32.xlu0 %v217, 16
        %v831 = vpop.permute.xlu0 %830
        %832 = vrot.lane.b32.xlu0 %v219, 16
        %v833 = vpop.permute.xlu0 %832
        %vm834 = vcmp.lt.s32.totalorder %v237, 16
        %v835 = vsel %vm834, %v819, %v827
        %v836 = vsel %vm834, %v821, %v829
        %v837 = vsel %vm834, %v823, %v831
        %v838 = vsel %vm834, %v825, %v833
        %v839 = vsel %vm834, %v827, %v819
        %v840 = vsel %vm834, %v829, %v821
        %v841 = vsel %vm834, %v831, %v823
        %v842 = vsel %vm834, %v833, %v825
        %s843 = scalar_lea.vmem %s1, 8
        %v844 = vld [vmem:[%s843] sm:$0xff]
        %v846 = vsel %vm248, %v844, 0
        %v849 = vsel %vm252, %v842, 0
        %v852 = vsel %vm252, %v838, 0
        %v854 = vand.u32 %v835, 4294901760
        %855 = vmatprep.subr.mxu0 %v854
        %v856 = vand.u32 %v839, 4294901760
        %857 = vmatpush1.msra.mxu0 %v856
        %v858 = vand.u32 %v836, 4294901760
        %859 = vmatprep.subr.mxu0 %v858
        %v860 = vand.u32 %v840, 4294901760
        %861 = vmatpush1.msra.mxu0 %v860
        %v862 = vand.u32 %v837, 4294901760
        %863 = vmatprep.subr.mxu0 %v862
        %v864 = vand.u32 %v841, 4294901760
        %865 = vmatpush1.msra.mxu0 %v864
        %v866 = vand.u32 %v852, 4294901760
        %867 = vmatprep.subr.mxu0 %v866
        %v868 = vand.u32 %v849, 4294901760
        %869 = vmatpush1.msra.mxu0 %v868
        %870 = vmatprep.subr.mxu0 0.0
        %871 = vmatpush1.msra.mxu0 0.0
        %872 = vmatprep.subr.mxu0 0.0
        %873 = vmatpush1.msra.mxu0 0.0
        %874 = vmatprep.subr.mxu0 0.0
        %875 = vmatpush1.msra.mxu0 0.0
        %876 = vmatprep.subr.mxu0 0.0
        %877 = vmatpush1.msra.mxu0 0.0
        %878 = vmatprep.subr.mxu0 0.0
        %879 = vmatpush1.msra.mxu0 0.0
        %880 = vmatprep.subr.mxu0 0.0
        %881 = vmatpush1.msra.mxu0 0.0
        %882 = vmatprep.subr.mxu0 0.0
        %883 = vmatpush1.msra.mxu0 0.0
        %884 = vmatprep.subr.mxu0 0.0
        %885 = vmatpush1.msra.mxu0 0.0
        %886 = vmatprep.subr.mxu0 0.0
        %887 = vmatpush1.msra.mxu0 0.0
        %888 = vmatprep.subr.mxu0 0.0
        %889 = vmatpush1.msra.mxu0 0.0
        %890 = vmatprep.subr.mxu0 0.0
        %891 = vmatpush1.msra.mxu0 0.0
        %892 = vmatprep.subr.mxu0 0.0
        %893 = vmatpush1.msra.mxu0 0.0
        %894 = vmatprep.subr.mxu0 0.0
        %895 = vmatpush1.msra.mxu0 0.0
        %896 = vmatprep.subr.mxu0 0.0
        %897 = vmatpush1.msra.mxu0 0.0
        %898 = vmatprep.subr.mxu0 0.0
        %899 = vmatpush1.msra.mxu0 0.0
        %900 = vmatprep.subr.mxu0 0.0
        %901 = vmatpush1.msra.mxu0 0.0
        %902 = vmatprep.subr.mxu0 0.0
        %903 = vmatpush1.msra.mxu0 0.0
        %904 = vmatprep.subr.mxu0 0.0
        %905 = vmatpush1.msra.mxu0 0.0
        %906 = vmatprep.subr.mxu0 0.0
        %907 = vmatpush1.msra.mxu0 0.0
        %908 = vmatprep.subr.mxu0 0.0
        %909 = vmatpush1.msra.mxu0 0.0
        %910 = vmatprep.subr.mxu0 0.0
        %911 = vmatpush1.msra.mxu0 0.0
        %912 = vmatprep.subr.mxu0 0.0
        %913 = vmatpush1.msra.mxu0 0.0
        %914 = vmatprep.subr.mxu0 0.0
        %915 = vmatpush1.msra.mxu0 0.0
        %916 = vmatprep.subr.mxu0 0.0
        %917 = vmatpush1.msra.mxu0 0.0
        %918 = vmatprep.subr.mxu0 0.0
        %919 = vmatpush1.msra.mxu0 0.0
        %920 = vmatprep.subr.mxu0 0.0
        %921 = vmatpush1.msra.mxu0 0.0
        %922 = vmatprep.subr.mxu0 0.0
        %923 = vmatpush1.msra.mxu0 0.0
        %924 = vmatprep.subr.mxu0 0.0
        %925 = vmatpush1.msra.mxu0 0.0
        %926 = vmatprep.mubr.f32.mxu0 0.0
        %v927 = vand.u32 %v846, 4294901760
        %v928 = vsub.f32 %v846, %v927
        %v929 = vand.u32 %v928, 4294901760
        %v930 = vsub.f32 %v928, %v929
        %v931 = vand.u32 %v930, 4294901760
        %932 = vmatmul.mubr.f32.gmra.mrb[0].mxu0 %v931
        %v933 = vpop.f32.mrb[0].mxu0
        %v934 = vadd.f32 0.0, %v933
        %v935 = vpop.f32.mrb[0].mxu0
        %v936 = vadd.f32 0.0, %v935
        %937 = vdwg.mxu0
        %v938 = vand.u32 %v835, 4294901760
        %v939 = vsub.f32 %v835, %v938
        %v940 = vand.u32 %v939, 4294901760
        %v941 = vsub.f32 %v939, %v940
        %v942 = vand.u32 %v941, 4294901760
        %943 = vmatprep.subr.mxu0 %v942
        %v944 = vand.u32 %v839, 4294901760
        %v945 = vsub.f32 %v839, %v944
        %v946 = vand.u32 %v945, 4294901760
        %v947 = vsub.f32 %v945, %v946
        %v948 = vand.u32 %v947, 4294901760
        %949 = vmatpush1.msra.mxu0 %v948
        %v950 = vand.u32 %v836, 4294901760
        %v951 = vsub.f32 %v836, %v950
        %v952 = vand.u32 %v951, 4294901760
        %v953 = vsub.f32 %v951, %v952
        %v954 = vand.u32 %v953, 4294901760
        %955 = vmatprep.subr.mxu0 %v954
        %v956 = vand.u32 %v840, 4294901760
        %v957 = vsub.f32 %v840, %v956
        %v958 = vand.u32 %v957, 4294901760
        %v959 = vsub.f32 %v957, %v958
        %v960 = vand.u32 %v959, 4294901760
        %961 = vmatpush1.msra.mxu0 %v960
        %v962 = vand.u32 %v837, 4294901760
        %v963 = vsub.f32 %v837, %v962
        %v964 = vand.u32 %v963, 4294901760
        %v965 = vsub.f32 %v963, %v964
        %v966 = vand.u32 %v965, 4294901760
        %967 = vmatprep.subr.mxu0 %v966
        %v968 = vand.u32 %v841, 4294901760
        %v969 = vsub.f32 %v841, %v968
        %v970 = vand.u32 %v969, 4294901760
        %v971 = vsub.f32 %v969, %v970
        %v972 = vand.u32 %v971, 4294901760
        %973 = vmatpush1.msra.mxu0 %v972
        %v974 = vand.u32 %v852, 4294901760
        %v975 = vsub.f32 %v852, %v974
        %v976 = vand.u32 %v975, 4294901760
        %v977 = vsub.f32 %v975, %v976
        %v978 = vand.u32 %v977, 4294901760
        %979 = vmatprep.subr.mxu0 %v978
        %v980 = vand.u32 %v849, 4294901760
        %v981 = vsub.f32 %v849, %v980
        %v982 = vand.u32 %v981, 4294901760
        %v983 = vsub.f32 %v981, %v982
        %v984 = vand.u32 %v983, 4294901760
        %985 = vmatpush1.msra.mxu0 %v984
        %986 = vmatprep.subr.mxu0 0.0
        %987 = vmatpush1.msra.mxu0 0.0
        %988 = vmatprep.subr.mxu0 0.0
        %989 = vmatpush1.msra.mxu0 0.0
        %990 = vmatprep.subr.mxu0 0.0
        %991 = vmatpush1.msra.mxu0 0.0
        %992 = vmatprep.subr.mxu0 0.0
        %993 = vmatpush1.msra.mxu0 0.0
        %994 = vmatprep.subr.mxu0 0.0
        %995 = vmatpush1.msra.mxu0 0.0
        %996 = vmatprep.subr.mxu0 0.0
        %997 = vmatpush1.msra.mxu0 0.0
        %998 = vmatprep.subr.mxu0 0.0
        %999 = vmatpush1.msra.mxu0 0.0
        %1000 = vmatprep.subr.mxu0 0.0
        %1001 = vmatpush1.msra.mxu0 0.0
        %1002 = vmatprep.subr.mxu0 0.0
        %1003 = vmatpush1.msra.mxu0 0.0
        %1004 = vmatprep.subr.mxu0 0.0
        %1005 = vmatpush1.msra.mxu0 0.0
        %1006 = vmatprep.subr.mxu0 0.0
        %1007 = vmatpush1.msra.mxu0 0.0
        %1008 = vmatprep.subr.mxu0 0.0
        %1009 = vmatpush1.msra.mxu0 0.0
        %1010 = vmatprep.subr.mxu0 0.0
        %1011 = vmatpush1.msra.mxu0 0.0
        %1012 = vmatprep.subr.mxu0 0.0
        %1013 = vmatpush1.msra.mxu0 0.0
        %1014 = vmatprep.subr.mxu0 0.0
        %1015 = vmatpush1.msra.mxu0 0.0
        %1016 = vmatprep.subr.mxu0 0.0
        %1017 = vmatpush1.msra.mxu0 0.0
        %1018 = vmatprep.subr.mxu0 0.0
        %1019 = vmatpush1.msra.mxu0 0.0
        %1020 = vmatprep.subr.mxu0 0.0
        %1021 = vmatpush1.msra.mxu0 0.0
        %1022 = vmatprep.subr.mxu0 0.0
        %1023 = vmatpush1.msra.mxu0 0.0
        %1024 = vmatprep.subr.mxu0 0.0
        %1025 = vmatpush1.msra.mxu0 0.0
        %1026 = vmatprep.subr.mxu0 0.0
        %1027 = vmatpush1.msra.mxu0 0.0
        %1028 = vmatprep.subr.mxu0 0.0
        %1029 = vmatpush1.msra.mxu0 0.0
        %1030 = vmatprep.subr.mxu0 0.0
        %1031 = vmatpush1.msra.mxu0 0.0
        %1032 = vmatprep.subr.mxu0 0.0
        %1033 = vmatpush1.msra.mxu0 0.0
        %1034 = vmatprep.subr.mxu0 0.0
        %1035 = vmatpush1.msra.mxu0 0.0
        %1036 = vmatprep.subr.mxu0 0.0
        %1037 = vmatpush1.msra.mxu0 0.0
        %1038 = vmatprep.subr.mxu0 0.0
        %1039 = vmatpush1.msra.mxu0 0.0
        %1040 = vmatprep.subr.mxu0 0.0
        %1041 = vmatpush1.msra.mxu0 0.0
        %1042 = vmatprep.mubr.f32.mxu0 0.0
        %v1043 = vand.u32 %v846, 4294901760
        %1044 = vmatmul.mubr.f32.gmra.mrb[0].mxu0 %v1043
        %v1045 = vpop.f32.mrb[0].mxu0
        %v1046 = vadd.f32 %v934, %v1045
        %v1047 = vpop.f32.mrb[0].mxu0
        %v1048 = vadd.f32 %v936, %v1047
        %1049 = vdwg.mxu0
        %v1050 = vand.u32 %v835, 4294901760
        %v1051 = vsub.f32 %v835, %v1050
        %1052 = vmatprep.subr.mxu0 %v1051
        %v1053 = vand.u32 %v839, 4294901760
        %v1054 = vsub.f32 %v839, %v1053
        %1055 = vmatpush1.msra.mxu0 %v1054
        %v1056 = vand.u32 %v836, 4294901760
        %v1057 = vsub.f32 %v836, %v1056
        %1058 = vmatprep.subr.mxu0 %v1057
        %v1059 = vand.u32 %v840, 4294901760
        %v1060 = vsub.f32 %v840, %v1059
        %1061 = vmatpush1.msra.mxu0 %v1060
        %v1062 = vand.u32 %v837, 4294901760
        %v1063 = vsub.f32 %v837, %v1062
        %1064 = vmatprep.subr.mxu0 %v1063
        %v1065 = vand.u32 %v841, 4294901760
        %v1066 = vsub.f32 %v841, %v1065
        %1067 = vmatpush1.msra.mxu0 %v1066
        %v1068 = vand.u32 %v852, 4294901760
        %v1069 = vsub.f32 %v852, %v1068
        %1070 = vmatprep.subr.mxu0 %v1069
        %v1071 = vand.u32 %v849, 4294901760
        %v1072 = vsub.f32 %v849, %v1071
        %1073 = vmatpush1.msra.mxu0 %v1072
        %1074 = vmatprep.subr.mxu0 0.0
        %1075 = vmatpush1.msra.mxu0 0.0
        %1076 = vmatprep.subr.mxu0 0.0
        %1077 = vmatpush1.msra.mxu0 0.0
        %1078 = vmatprep.subr.mxu0 0.0
        %1079 = vmatpush1.msra.mxu0 0.0
        %1080 = vmatprep.subr.mxu0 0.0
        %1081 = vmatpush1.msra.mxu0 0.0
        %1082 = vmatprep.subr.mxu0 0.0
        %1083 = vmatpush1.msra.mxu0 0.0
        %1084 = vmatprep.subr.mxu0 0.0
        %1085 = vmatpush1.msra.mxu0 0.0
        %1086 = vmatprep.subr.mxu0 0.0
        %1087 = vmatpush1.msra.mxu0 0.0
        %1088 = vmatprep.subr.mxu0 0.0
        %1089 = vmatpush1.msra.mxu0 0.0
        %1090 = vmatprep.subr.mxu0 0.0
        %1091 = vmatpush1.msra.mxu0 0.0
        %1092 = vmatprep.subr.mxu0 0.0
        %1093 = vmatpush1.msra.mxu0 0.0
        %1094 = vmatprep.subr.mxu0 0.0
        %1095 = vmatpush1.msra.mxu0 0.0
        %1096 = vmatprep.subr.mxu0 0.0
        %1097 = vmatpush1.msra.mxu0 0.0
        %1098 = vmatprep.subr.mxu0 0.0
        %1099 = vmatpush1.msra.mxu0 0.0
        %1100 = vmatprep.subr.mxu0 0.0
        %1101 = vmatpush1.msra.mxu0 0.0
        %1102 = vmatprep.subr.mxu0 0.0
        %1103 = vmatpush1.msra.mxu0 0.0
        %1104 = vmatprep.subr.mxu0 0.0
        %1105 = vmatpush1.msra.mxu0 0.0
        %1106 = vmatprep.subr.mxu0 0.0
        %1107 = vmatpush1.msra.mxu0 0.0
        %1108 = vmatprep.subr.mxu0 0.0
        %1109 = vmatpush1.msra.mxu0 0.0
        %1110 = vmatprep.subr.mxu0 0.0
        %1111 = vmatpush1.msra.mxu0 0.0
        %1112 = vmatprep.subr.mxu0 0.0
        %1113 = vmatpush1.msra.mxu0 0.0
        %1114 = vmatprep.subr.mxu0 0.0
        %1115 = vmatpush1.msra.mxu0 0.0
        %1116 = vmatprep.subr.mxu0 0.0
        %1117 = vmatpush1.msra.mxu0 0.0
        %1118 = vmatprep.subr.mxu0 0.0
        %1119 = vmatpush1.msra.mxu0 0.0
        %1120 = vmatprep.subr.mxu0 0.0
        %1121 = vmatpush1.msra.mxu0 0.0
        %1122 = vmatprep.subr.mxu0 0.0
        %1123 = vmatpush1.msra.mxu0 0.0
        %1124 = vmatprep.subr.mxu0 0.0
        %1125 = vmatpush1.msra.mxu0 0.0
        %1126 = vmatprep.subr.mxu0 0.0
        %1127 = vmatpush1.msra.mxu0 0.0
        %1128 = vmatprep.subr.mxu0 0.0
        %1129 = vmatpush1.msra.mxu0 0.0
        %1130 = vmatprep.mubr.f32.mxu0 0.0
        %v1131 = vand.u32 %v846, 4294901760
        %v1132 = vsub.f32 %v846, %v1131
        %1133 = vmatmul.mubr.f32.gmra.mrb[0].mxu0 %v1132
        %v1134 = vpop.f32.mrb[0].mxu0
        %v1135 = vadd.f32 %v1046, %v1134
        %v1136 = vpop.f32.mrb[0].mxu0
        %v1137 = vadd.f32 %v1048, %v1136
        %1138 = vdwg.mxu0
        %v1139 = vand.u32 %v835, 4294901760
        %1140 = vmatprep.subr.mxu0 %v1139
        %v1141 = vand.u32 %v839, 4294901760
        %1142 = vmatpush1.msra.mxu0 %v1141
        %v1143 = vand.u32 %v836, 4294901760
        %1144 = vmatprep.subr.mxu0 %v1143
        %v1145 = vand.u32 %v840, 4294901760
        %1146 = vmatpush1.msra.mxu0 %v1145
        %v1147 = vand.u32 %v837, 4294901760
        %1148 = vmatprep.subr.mxu0 %v1147
        %v1149 = vand.u32 %v841, 4294901760
        %1150 = vmatpush1.msra.mxu0 %v1149
        %v1151 = vand.u32 %v852, 4294901760
        %1152 = vmatprep.subr.mxu0 %v1151
        %v1153 = vand.u32 %v849, 4294901760
        %1154 = vmatpush1.msra.mxu0 %v1153
        %1155 = vmatprep.subr.mxu0 0.0
        %1156 = vmatpush1.msra.mxu0 0.0
        %1157 = vmatprep.subr.mxu0 0.0
        %1158 = vmatpush1.msra.mxu0 0.0
        %1159 = vmatprep.subr.mxu0 0.0
        %1160 = vmatpush1.msra.mxu0 0.0
        %1161 = vmatprep.subr.mxu0 0.0
        %1162 = vmatpush1.msra.mxu0 0.0
        %1163 = vmatprep.subr.mxu0 0.0
        %1164 = vmatpush1.msra.mxu0 0.0
        %1165 = vmatprep.subr.mxu0 0.0
        %1166 = vmatpush1.msra.mxu0 0.0
        %1167 = vmatprep.subr.mxu0 0.0
        %1168 = vmatpush1.msra.mxu0 0.0
        %1169 = vmatprep.subr.mxu0 0.0
        %1170 = vmatpush1.msra.mxu0 0.0
        %1171 = vmatprep.subr.mxu0 0.0
        %1172 = vmatpush1.msra.mxu0 0.0
        %1173 = vmatprep.subr.mxu0 0.0
        %1174 = vmatpush1.msra.mxu0 0.0
        %1175 = vmatprep.subr.mxu0 0.0
        %1176 = vmatpush1.msra.mxu0 0.0
        %1177 = vmatprep.subr.mxu0 0.0
        %1178 = vmatpush1.msra.mxu0 0.0
        %1179 = vmatprep.subr.mxu0 0.0
        %1180 = vmatpush1.msra.mxu0 0.0
        %1181 = vmatprep.subr.mxu0 0.0
        %1182 = vmatpush1.msra.mxu0 0.0
        %1183 = vmatprep.subr.mxu0 0.0
        %1184 = vmatpush1.msra.mxu0 0.0
        %1185 = vmatprep.subr.mxu0 0.0
        %1186 = vmatpush1.msra.mxu0 0.0
        %1187 = vmatprep.subr.mxu0 0.0
        %1188 = vmatpush1.msra.mxu0 0.0
        %1189 = vmatprep.subr.mxu0 0.0
        %1190 = vmatpush1.msra.mxu0 0.0
        %1191 = vmatprep.subr.mxu0 0.0
        %1192 = vmatpush1.msra.mxu0 0.0
        %1193 = vmatprep.subr.mxu0 0.0
        %1194 = vmatpush1.msra.mxu0 0.0
        %1195 = vmatprep.subr.mxu0 0.0
        %1196 = vmatpush1.msra.mxu0 0.0
        %1197 = vmatprep.subr.mxu0 0.0
        %1198 = vmatpush1.msra.mxu0 0.0
        %1199 = vmatprep.subr.mxu0 0.0
        %1200 = vmatpush1.msra.mxu0 0.0
        %1201 = vmatprep.subr.mxu0 0.0
        %1202 = vmatpush1.msra.mxu0 0.0
        %1203 = vmatprep.subr.mxu0 0.0
        %1204 = vmatpush1.msra.mxu0 0.0
        %1205 = vmatprep.subr.mxu0 0.0
        %1206 = vmatpush1.msra.mxu0 0.0
        %1207 = vmatprep.subr.mxu0 0.0
        %1208 = vmatpush1.msra.mxu0 0.0
        %1209 = vmatprep.subr.mxu0 0.0
        %1210 = vmatpush1.msra.mxu0 0.0
        %1211 = vmatprep.mubr.f32.mxu0 0.0
        %v1212 = vand.u32 %v846, 4294901760
        %v1213 = vsub.f32 %v846, %v1212
        %v1214 = vand.u32 %v1213, 4294901760
        %1215 = vmatmul.mubr.f32.gmra.mrb[0].mxu0 %v1214
        %v1216 = vpop.f32.mrb[0].mxu0
        %v1217 = vadd.f32 %v1135, %v1216
        %v1218 = vpop.f32.mrb[0].mxu0
        %v1219 = vadd.f32 %v1137, %v1218
        %1220 = vdwg.mxu0
        %v1221 = vand.u32 %v835, 4294901760
        %v1222 = vsub.f32 %v835, %v1221
        %v1223 = vand.u32 %v1222, 4294901760
        %1224 = vmatprep.subr.mxu0 %v1223
        %v1225 = vand.u32 %v839, 4294901760
        %v1226 = vsub.f32 %v839, %v1225
        %v1227 = vand.u32 %v1226, 4294901760
        %1228 = vmatpush1.msra.mxu0 %v1227
        %v1229 = vand.u32 %v836, 4294901760
        %v1230 = vsub.f32 %v836, %v1229
        %v1231 = vand.u32 %v1230, 4294901760
        %1232 = vmatprep.subr.mxu0 %v1231
        %v1233 = vand.u32 %v840, 4294901760
        %v1234 = vsub.f32 %v840, %v1233
        %v1235 = vand.u32 %v1234, 4294901760
        %1236 = vmatpush1.msra.mxu0 %v1235
        %v1237 = vand.u32 %v837, 4294901760
        %v1238 = vsub.f32 %v837, %v1237
        %v1239 = vand.u32 %v1238, 4294901760
        %1240 = vmatprep.subr.mxu0 %v1239
        %v1241 = vand.u32 %v841, 4294901760
        %v1242 = vsub.f32 %v841, %v1241
        %v1243 = vand.u32 %v1242, 4294901760
        %1244 = vmatpush1.msra.mxu0 %v1243
        %v1245 = vand.u32 %v852, 4294901760
        %v1246 = vsub.f32 %v852, %v1245
        %v1247 = vand.u32 %v1246, 4294901760
        %1248 = vmatprep.subr.mxu0 %v1247
        %v1249 = vand.u32 %v849, 4294901760
        %v1250 = vsub.f32 %v849, %v1249
        %v1251 = vand.u32 %v1250, 4294901760
        %1252 = vmatpush1.msra.mxu0 %v1251
        %1253 = vmatprep.subr.mxu0 0.0
        %1254 = vmatpush1.msra.mxu0 0.0
        %1255 = vmatprep.subr.mxu0 0.0
        %1256 = vmatpush1.msra.mxu0 0.0
        %1257 = vmatprep.subr.mxu0 0.0
        %1258 = vmatpush1.msra.mxu0 0.0
        %1259 = vmatprep.subr.mxu0 0.0
        %1260 = vmatpush1.msra.mxu0 0.0
        %1261 = vmatprep.subr.mxu0 0.0
        %1262 = vmatpush1.msra.mxu0 0.0
        %1263 = vmatprep.subr.mxu0 0.0
        %1264 = vmatpush1.msra.mxu0 0.0
        %1265 = vmatprep.subr.mxu0 0.0
        %1266 = vmatpush1.msra.mxu0 0.0
        %1267 = vmatprep.subr.mxu0 0.0
        %1268 = vmatpush1.msra.mxu0 0.0
        %1269 = vmatprep.subr.mxu0 0.0
        %1270 = vmatpush1.msra.mxu0 0.0
        %1271 = vmatprep.subr.mxu0 0.0
        %1272 = vmatpush1.msra.mxu0 0.0
        %1273 = vmatprep.subr.mxu0 0.0
        %1274 = vmatpush1.msra.mxu0 0.0
        %1275 = vmatprep.subr.mxu0 0.0
        %1276 = vmatpush1.msra.mxu0 0.0
        %1277 = vmatprep.subr.mxu0 0.0
        %1278 = vmatpush1.msra.mxu0 0.0
        %1279 = vmatprep.subr.mxu0 0.0
        %1280 = vmatpush1.msra.mxu0 0.0
        %1281 = vmatprep.subr.mxu0 0.0
        %1282 = vmatpush1.msra.mxu0 0.0
        %1283 = vmatprep.subr.mxu0 0.0
        %1284 = vmatpush1.msra.mxu0 0.0
        %1285 = vmatprep.subr.mxu0 0.0
        %1286 = vmatpush1.msra.mxu0 0.0
        %1287 = vmatprep.subr.mxu0 0.0
        %1288 = vmatpush1.msra.mxu0 0.0
        %1289 = vmatprep.subr.mxu0 0.0
        %1290 = vmatpush1.msra.mxu0 0.0
        %1291 = vmatprep.subr.mxu0 0.0
        %1292 = vmatpush1.msra.mxu0 0.0
        %1293 = vmatprep.subr.mxu0 0.0
        %1294 = vmatpush1.msra.mxu0 0.0
        %1295 = vmatprep.subr.mxu0 0.0
        %1296 = vmatpush1.msra.mxu0 0.0
        %1297 = vmatprep.subr.mxu0 0.0
        %1298 = vmatpush1.msra.mxu0 0.0
        %1299 = vmatprep.subr.mxu0 0.0
        %1300 = vmatpush1.msra.mxu0 0.0
        %1301 = vmatprep.subr.mxu0 0.0
        %1302 = vmatpush1.msra.mxu0 0.0
        %1303 = vmatprep.subr.mxu0 0.0
        %1304 = vmatpush1.msra.mxu0 0.0
        %1305 = vmatprep.subr.mxu0 0.0
        %1306 = vmatpush1.msra.mxu0 0.0
        %1307 = vmatprep.subr.mxu0 0.0
        %1308 = vmatpush1.msra.mxu0 0.0
        %1309 = vmatprep.mubr.f32.mxu0 0.0
        %v1310 = vand.u32 %v846, 4294901760
        %1311 = vmatmul.mubr.f32.gmra.mrb[0].mxu0 %v1310
        %v1312 = vpop.f32.mrb[0].mxu0
        %v1313 = vadd.f32 %v1217, %v1312
        %v1314 = vpop.f32.mrb[0].mxu0
        %v1315 = vadd.f32 %v1219, %v1314
        %1316 = vdwg.mxu0
        %v1317 = vand.u32 %v835, 4294901760
        %1318 = vmatprep.subr.mxu0 %v1317
        %v1319 = vand.u32 %v839, 4294901760
        %1320 = vmatpush1.msra.mxu0 %v1319
        %v1321 = vand.u32 %v836, 4294901760
        %1322 = vmatprep.subr.mxu0 %v1321
        %v1323 = vand.u32 %v840, 4294901760
        %1324 = vmatpush1.msra.mxu0 %v1323
        %v1325 = vand.u32 %v837, 4294901760
        %1326 = vmatprep.subr.mxu0 %v1325
        %v1327 = vand.u32 %v841, 4294901760
        %1328 = vmatpush1.msra.mxu0 %v1327
        %v1329 = vand.u32 %v852, 4294901760
        %1330 = vmatprep.subr.mxu0 %v1329
        %v1331 = vand.u32 %v849, 4294901760
        %1332 = vmatpush1.msra.mxu0 %v1331
        %1333 = vmatprep.subr.mxu0 0.0
        %1334 = vmatpush1.msra.mxu0 0.0
        %1335 = vmatprep.subr.mxu0 0.0
        %1336 = vmatpush1.msra.mxu0 0.0
        %1337 = vmatprep.subr.mxu0 0.0
        %1338 = vmatpush1.msra.mxu0 0.0
        %1339 = vmatprep.subr.mxu0 0.0
        %1340 = vmatpush1.msra.mxu0 0.0
        %1341 = vmatprep.subr.mxu0 0.0
        %1342 = vmatpush1.msra.mxu0 0.0
        %1343 = vmatprep.subr.mxu0 0.0
        %1344 = vmatpush1.msra.mxu0 0.0
        %1345 = vmatprep.subr.mxu0 0.0
        %1346 = vmatpush1.msra.mxu0 0.0
        %1347 = vmatprep.subr.mxu0 0.0
        %1348 = vmatpush1.msra.mxu0 0.0
        %1349 = vmatprep.subr.mxu0 0.0
        %1350 = vmatpush1.msra.mxu0 0.0
        %1351 = vmatprep.subr.mxu0 0.0
        %1352 = vmatpush1.msra.mxu0 0.0
        %1353 = vmatprep.subr.mxu0 0.0
        %1354 = vmatpush1.msra.mxu0 0.0
        %1355 = vmatprep.subr.mxu0 0.0
        %1356 = vmatpush1.msra.mxu0 0.0
        %1357 = vmatprep.subr.mxu0 0.0
        %1358 = vmatpush1.msra.mxu0 0.0
        %1359 = vmatprep.subr.mxu0 0.0
        %1360 = vmatpush1.msra.mxu0 0.0
        %1361 = vmatprep.subr.mxu0 0.0
        %1362 = vmatpush1.msra.mxu0 0.0
        %1363 = vmatprep.subr.mxu0 0.0
        %1364 = vmatpush1.msra.mxu0 0.0
        %1365 = vmatprep.subr.mxu0 0.0
        %1366 = vmatpush1.msra.mxu0 0.0
        %1367 = vmatprep.subr.mxu0 0.0
        %1368 = vmatpush1.msra.mxu0 0.0
        %1369 = vmatprep.subr.mxu0 0.0
        %1370 = vmatpush1.msra.mxu0 0.0
        %1371 = vmatprep.subr.mxu0 0.0
        %1372 = vmatpush1.msra.mxu0 0.0
        %1373 = vmatprep.subr.mxu0 0.0
        %1374 = vmatpush1.msra.mxu0 0.0
        %1375 = vmatprep.subr.mxu0 0.0
        %1376 = vmatpush1.msra.mxu0 0.0
        %1377 = vmatprep.subr.mxu0 0.0
        %1378 = vmatpush1.msra.mxu0 0.0
        %1379 = vmatprep.subr.mxu0 0.0
        %1380 = vmatpush1.msra.mxu0 0.0
        %1381 = vmatprep.subr.mxu0 0.0
        %1382 = vmatpush1.msra.mxu0 0.0
        %1383 = vmatprep.subr.mxu0 0.0
        %1384 = vmatpush1.msra.mxu0 0.0
        %1385 = vmatprep.subr.mxu0 0.0
        %1386 = vmatpush1.msra.mxu0 0.0
        %1387 = vmatprep.subr.mxu0 0.0
        %1388 = vmatpush1.msra.mxu0 0.0
        %1389 = vmatprep.mubr.f32.mxu0 0.0
        %v1390 = vand.u32 %v846, 4294901760
        %1391 = vmatmul.mubr.f32.gmra.mrb[0].mxu0 %v1390
        %v1392 = vpop.f32.mrb[0].mxu0
        %v1393 = vadd.f32 %v1313, %v1392
        %v1394 = vpop.f32.mrb[0].mxu0
        %v1395 = vadd.f32 %v1315, %v1394
        %1396 = vdwg.mxu0
        %s1397 = scalar_lea.vmem %s2, 1
        %v1398 = vld [vmem:[%s1397] ss:$8 sm:$0x3]
        %v1400 = vlaneseq
        %v1401 = vshrl.u32 %v1400, 7
        %v1402 = vsub.s32 0, %v1401
        %v1403 = vrot.slane %v1398, %v1402
        %v1404 = vlaneseq
        %v1405 = vshrl.u32 %v1404, 7
        %v1406 = vsub.s32 1, %v1405
        %v1407 = vrot.slane %v1398, %v1406
        %v1410 = vmul.f32 %v1393, %v1403
        %v1411 = vmul.f32 %v1395, %v1407
        %v1412 = vadd.f32 %v816, %v1410
        %v1413 = vadd.f32 %v817, %v1411
        %1414 = vrot.lane.b32.xlu0 %v212, 15
        %v1415 = vpop.permute.xlu0 %1414
        %1416 = vrot.lane.b32.xlu0 %v214, 15
        %v1417 = vpop.permute.xlu0 %1416
        %1418 = vrot.lane.b32.xlu0 %v216, 15
        %v1419 = vpop.permute.xlu0 %1418
        %1420 = vrot.lane.b32.xlu0 %v218, 15
        %v1421 = vpop.permute.xlu0 %1420
        %1422 = vrot.lane.b32.xlu0 %v213, 15
        %v1423 = vpop.permute.xlu0 %1422
        %1424 = vrot.lane.b32.xlu0 %v215, 15
        %v1425 = vpop.permute.xlu0 %1424
        %1426 = vrot.lane.b32.xlu0 %v217, 15
        %v1427 = vpop.permute.xlu0 %1426
        %1428 = vrot.lane.b32.xlu0 %v219, 15
        %v1429 = vpop.permute.xlu0 %1428
        %vm1430 = vcmp.lt.s32.totalorder %v237, 15
        %v1431 = vsel %vm1430, %v1415, %v1423
        %v1432 = vsel %vm1430, %v1417, %v1425
        %v1433 = vsel %vm1430, %v1419, %v1427
        %v1434 = vsel %vm1430, %v1421, %v1429
        %v1435 = vsel %vm1430, %v1423, %v1415
        %v1436 = vsel %vm1430, %v1425, %v1417
        %v1437 = vsel %vm1430, %v1427, %v1419
        %v1438 = vsel %vm1430, %v1429, %v1421
        %s1439 = scalar_lea.vmem %s1, 16
        %v1440 = vld [vmem:[%s1439] sm:$0xff]
        %v1442 = vsel %vm248, %v1440, 0
        %v1445 = vsel %vm252, %v1438, 0
        %v1448 = vsel %vm252, %v1434, 0
        %v1450 = vand.u32 %v1431, 4294901760
        %1451 = vmatprep.subr.mxu0 %v1450
        %v1452 = vand.u32 %v1435, 4294901760
        %1453 = vmatpush1.msra.mxu0 %v1452
        %v1454 = vand.u32 %v1432, 4294901760
        %1455 = vmatprep.subr.mxu0 %v1454
        %v1456 = vand.u32 %v1436, 4294901760
        %1457 = vmatpush1.msra.mxu0 %v1456
        %v1458 = vand.u32 %v1433, 4294901760
        %1459 = vmatprep.subr.mxu0 %v1458
        %v1460 = vand.u32 %v1437, 4294901760
        %1461 = vmatpush1.msra.mxu0 %v1460
        %v1462 = vand.u32 %v1448, 4294901760
        %1463 = vmatprep.subr.mxu0 %v1462
        %v1464 = vand.u32 %v1445, 4294901760
        %1465 = vmatpush1.msra.mxu0 %v1464
        %1466 = vmatprep.subr.mxu0 0.0
        %1467 = vmatpush1.msra.mxu0 0.0
        %1468 = vmatprep.subr.mxu0 0.0
        %1469 = vmatpush1.msra.mxu0 0.0
        %1470 = vmatprep.subr.mxu0 0.0
        %1471 = vmatpush1.msra.mxu0 0.0
        %1472 = vmatprep.subr.mxu0 0.0
        %1473 = vmatpush1.msra.mxu0 0.0
        %1474 = vmatprep.subr.mxu0 0.0
        %1475 = vmatpush1.msra.mxu0 0.0
        %1476 = vmatprep.subr.mxu0 0.0
        %1477 = vmatpush1.msra.mxu0 0.0
        %1478 = vmatprep.subr.mxu0 0.0
        %1479 = vmatpush1.msra.mxu0 0.0
        %1480 = vmatprep.subr.mxu0 0.0
        %1481 = vmatpush1.msra.mxu0 0.0
        %1482 = vmatprep.subr.mxu0 0.0
        %1483 = vmatpush1.msra.mxu0 0.0
        %1484 = vmatprep.subr.mxu0 0.0
        %1485 = vmatpush1.msra.mxu0 0.0
        %1486 = vmatprep.subr.mxu0 0.0
        %1487 = vmatpush1.msra.mxu0 0.0
        %1488 = vmatprep.subr.mxu0 0.0
        %1489 = vmatpush1.msra.mxu0 0.0
        %1490 = vmatprep.subr.mxu0 0.0
        %1491 = vmatpush1.msra.mxu0 0.0
        %1492 = vmatprep.subr.mxu0 0.0
        %1493 = vmatpush1.msra.mxu0 0.0
        %1494 = vmatprep.subr.mxu0 0.0
        %1495 = vmatpush1.msra.mxu0 0.0
        %1496 = vmatprep.subr.mxu0 0.0
        %1497 = vmatpush1.msra.mxu0 0.0
        %1498 = vmatprep.subr.mxu0 0.0
        %1499 = vmatpush1.msra.mxu0 0.0
        %1500 = vmatprep.subr.mxu0 0.0
        %1501 = vmatpush1.msra.mxu0 0.0
        %1502 = vmatprep.subr.mxu0 0.0
        %1503 = vmatpush1.msra.mxu0 0.0
        %1504 = vmatprep.subr.mxu0 0.0
        %1505 = vmatpush1.msra.mxu0 0.0
        %1506 = vmatprep.subr.mxu0 0.0
        %1507 = vmatpush1.msra.mxu0 0.0
        %1508 = vmatprep.subr.mxu0 0.0
        %1509 = vmatpush1.msra.mxu0 0.0
        %1510 = vmatprep.subr.mxu0 0.0
        %1511 = vmatpush1.msra.mxu0 0.0
        %1512 = vmatprep.subr.mxu0 0.0
        %1513 = vmatpush1.msra.mxu0 0.0
        %1514 = vmatprep.subr.mxu0 0.0
        %1515 = vmatpush1.msra.mxu0 0.0
        %1516 = vmatprep.subr.mxu0 0.0
        %1517 = vmatpush1.msra.mxu0 0.0
        %1518 = vmatprep.subr.mxu0 0.0
        %1519 = vmatpush1.msra.mxu0 0.0
        %1520 = vmatprep.subr.mxu0 0.0
        %1521 = vmatpush1.msra.mxu0 0.0
        %1522 = vmatprep.mubr.f32.mxu0 0.0
        %v1523 = vand.u32 %v1442, 4294901760
        %v1524 = vsub.f32 %v1442, %v1523
        %v1525 = vand.u32 %v1524, 4294901760
        %v1526 = vsub.f32 %v1524, %v1525
        %v1527 = vand.u32 %v1526, 4294901760
        %1528 = vmatmul.mubr.f32.gmra.mrb[0].mxu0 %v1527
        %v1529 = vpop.f32.mrb[0].mxu0
        %v1530 = vadd.f32 0.0, %v1529
        %v1531 = vpop.f32.mrb[0].mxu0
        %v1532 = vadd.f32 0.0, %v1531
        %1533 = vdwg.mxu0
        %v1534 = vand.u32 %v1431, 4294901760
        %v1535 = vsub.f32 %v1431, %v1534
        %v1536 = vand.u32 %v1535, 4294901760
        %v1537 = vsub.f32 %v1535, %v1536
        %v1538 = vand.u32 %v1537, 4294901760
        %1539 = vmatprep.subr.mxu0 %v1538
        %v1540 = vand.u32 %v1435, 4294901760
        %v1541 = vsub.f32 %v1435, %v1540
        %v1542 = vand.u32 %v1541, 4294901760
        %v1543 = vsub.f32 %v1541, %v1542
        %v1544 = vand.u32 %v1543, 4294901760
        %1545 = vmatpush1.msra.mxu0 %v1544
        %v1546 = vand.u32 %v1432, 4294901760
        %v1547 = vsub.f32 %v1432, %v1546
        %v1548 = vand.u32 %v1547, 4294901760
        %v1549 = vsub.f32 %v1547, %v1548
        %v1550 = vand.u32 %v1549, 4294901760
        %1551 = vmatprep.subr.mxu0 %v1550
        %v1552 = vand.u32 %v1436, 4294901760
        %v1553 = vsub.f32 %v1436, %v1552
        %v1554 = vand.u32 %v1553, 4294901760
        %v1555 = vsub.f32 %v1553, %v1554
        %v1556 = vand.u32 %v1555, 4294901760
        %1557 = vmatpush1.msra.mxu0 %v1556
        %v1558 = vand.u32 %v1433, 4294901760
        %v1559 = vsub.f32 %v1433, %v1558
        %v1560 = vand.u32 %v1559, 4294901760
        %v1561 = vsub.f32 %v1559, %v1560
        %v1562 = vand.u32 %v1561, 4294901760
        %1563 = vmatprep.subr.mxu0 %v1562
        %v1564 = vand.u32 %v1437, 4294901760
        %v1565 = vsub.f32 %v1437, %v1564
        %v1566 = vand.u32 %v1565, 4294901760
        %v1567 = vsub.f32 %v1565, %v1566
        %v1568 = vand.u32 %v1567, 4294901760
        %1569 = vmatpush1.msra.mxu0 %v1568
        %v1570 = vand.u32 %v1448, 4294901760
        %v1571 = vsub.f32 %v1448, %v1570
        %v1572 = vand.u32 %v1571, 4294901760
        %v1573 = vsub.f32 %v1571, %v1572
        %v1574 = vand.u32 %v1573, 4294901760
        %1575 = vmatprep.subr.mxu0 %v1574
        %v1576 = vand.u32 %v1445, 4294901760
        %v1577 = vsub.f32 %v1445, %v1576
        %v1578 = vand.u32 %v1577, 4294901760
        %v1579 = vsub.f32 %v1577, %v1578
        %v1580 = vand.u32 %v1579, 4294901760
        %1581 = vmatpush1.msra.mxu0 %v1580
        %1582 = vmatprep.subr.mxu0 0.0
        %1583 = vmatpush1.msra.mxu0 0.0
        %1584 = vmatprep.subr.mxu0 0.0
        %1585 = vmatpush1.msra.mxu0 0.0
        %1586 = vmatprep.subr.mxu0 0.0
        %1587 = vmatpush1.msra.mxu0 0.0
        %1588 = vmatprep.subr.mxu0 0.0
        %1589 = vmatpush1.msra.mxu0 0.0
        %1590 = vmatprep.subr.mxu0 0.0
        %1591 = vmatpush1.msra.mxu0 0.0
        %1592 = vmatprep.subr.mxu0 0.0
        %1593 = vmatpush1.msra.mxu0 0.0
        %1594 = vmatprep.subr.mxu0 0.0
        %1595 = vmatpush1.msra.mxu0 0.0
        %1596 = vmatprep.subr.mxu0 0.0
        %1597 = vmatpush1.msra.mxu0 0.0
        %1598 = vmatprep.subr.mxu0 0.0
        %1599 = vmatpush1.msra.mxu0 0.0
        %1600 = vmatprep.subr.mxu0 0.0
        %1601 = vmatpush1.msra.mxu0 0.0
        %1602 = vmatprep.subr.mxu0 0.0
        %1603 = vmatpush1.msra.mxu0 0.0
        %1604 = vmatprep.subr.mxu0 0.0
        %1605 = vmatpush1.msra.mxu0 0.0
        %1606 = vmatprep.subr.mxu0 0.0
        %1607 = vmatpush1.msra.mxu0 0.0
        %1608 = vmatprep.subr.mxu0 0.0
        %1609 = vmatpush1.msra.mxu0 0.0
        %1610 = vmatprep.subr.mxu0 0.0
        %1611 = vmatpush1.msra.mxu0 0.0
        %1612 = vmatprep.subr.mxu0 0.0
        %1613 = vmatpush1.msra.mxu0 0.0
        %1614 = vmatprep.subr.mxu0 0.0
        %1615 = vmatpush1.msra.mxu0 0.0
        %1616 = vmatprep.subr.mxu0 0.0
        %1617 = vmatpush1.msra.mxu0 0.0
        %1618 = vmatprep.subr.mxu0 0.0
        %1619 = vmatpush1.msra.mxu0 0.0
        %1620 = vmatprep.subr.mxu0 0.0
        %1621 = vmatpush1.msra.mxu0 0.0
        %1622 = vmatprep.subr.mxu0 0.0
        %1623 = vmatpush1.msra.mxu0 0.0
        %1624 = vmatprep.subr.mxu0 0.0
        %1625 = vmatpush1.msra.mxu0 0.0
        %1626 = vmatprep.subr.mxu0 0.0
        %1627 = vmatpush1.msra.mxu0 0.0
        %1628 = vmatprep.subr.mxu0 0.0
        %1629 = vmatpush1.msra.mxu0 0.0
        %1630 = vmatprep.subr.mxu0 0.0
        %1631 = vmatpush1.msra.mxu0 0.0
        %1632 = vmatprep.subr.mxu0 0.0
        %1633 = vmatpush1.msra.mxu0 0.0
        %1634 = vmatprep.subr.mxu0 0.0
        %1635 = vmatpush1.msra.mxu0 0.0
        %1636 = vmatprep.subr.mxu0 0.0
        %1637 = vmatpush1.msra.mxu0 0.0
        %1638 = vmatprep.mubr.f32.mxu0 0.0
        %v1639 = vand.u32 %v1442, 4294901760
        %1640 = vmatmul.mubr.f32.gmra.mrb[0].mxu0 %v1639
        %v1641 = vpop.f32.mrb[0].mxu0
        %v1642 = vadd.f32 %v1530, %v1641
        %v1643 = vpop.f32.mrb[0].mxu0
        %v1644 = vadd.f32 %v1532, %v1643
        %1645 = vdwg.mxu0
        %v1646 = vand.u32 %v1431, 4294901760
        %v1647 = vsub.f32 %v1431, %v1646
        %1648 = vmatprep.subr.mxu0 %v1647
        %v1649 = vand.u32 %v1435, 4294901760
        %v1650 = vsub.f32 %v1435, %v1649
        %1651 = vmatpush1.msra.mxu0 %v1650
        %v1652 = vand.u32 %v1432, 4294901760
        %v1653 = vsub.f32 %v1432, %v1652
        %1654 = vmatprep.subr.mxu0 %v1653
        %v1655 = vand.u32 %v1436, 4294901760
        %v1656 = vsub.f32 %v1436, %v1655
        %1657 = vmatpush1.msra.mxu0 %v1656
        %v1658 = vand.u32 %v1433, 4294901760
        %v1659 = vsub.f32 %v1433, %v1658
        %1660 = vmatprep.subr.mxu0 %v1659
        %v1661 = vand.u32 %v1437, 4294901760
        %v1662 = vsub.f32 %v1437, %v1661
        %1663 = vmatpush1.msra.mxu0 %v1662
        %v1664 = vand.u32 %v1448, 4294901760
        %v1665 = vsub.f32 %v1448, %v1664
        %1666 = vmatprep.subr.mxu0 %v1665
        %v1667 = vand.u32 %v1445, 4294901760
        %v1668 = vsub.f32 %v1445, %v1667
        %1669 = vmatpush1.msra.mxu0 %v1668
        %1670 = vmatprep.subr.mxu0 0.0
        %1671 = vmatpush1.msra.mxu0 0.0
        %1672 = vmatprep.subr.mxu0 0.0
        %1673 = vmatpush1.msra.mxu0 0.0
        %1674 = vmatprep.subr.mxu0 0.0
        %1675 = vmatpush1.msra.mxu0 0.0
        %1676 = vmatprep.subr.mxu0 0.0
        %1677 = vmatpush1.msra.mxu0 0.0
        %1678 = vmatprep.subr.mxu0 0.0
        %1679 = vmatpush1.msra.mxu0 0.0
        %1680 = vmatprep.subr.mxu0 0.0
        %1681 = vmatpush1.msra.mxu0 0.0
        %1682 = vmatprep.subr.mxu0 0.0
        %1683 = vmatpush1.msra.mxu0 0.0
        %1684 = vmatprep.subr.mxu0 0.0
        %1685 = vmatpush1.msra.mxu0 0.0
        %1686 = vmatprep.subr.mxu0 0.0
        %1687 = vmatpush1.msra.mxu0 0.0
        %1688 = vmatprep.subr.mxu0 0.0
        %1689 = vmatpush1.msra.mxu0 0.0
        %1690 = vmatprep.subr.mxu0 0.0
        %1691 = vmatpush1.msra.mxu0 0.0
        %1692 = vmatprep.subr.mxu0 0.0
        %1693 = vmatpush1.msra.mxu0 0.0
        %1694 = vmatprep.subr.mxu0 0.0
        %1695 = vmatpush1.msra.mxu0 0.0
        %1696 = vmatprep.subr.mxu0 0.0
        %1697 = vmatpush1.msra.mxu0 0.0
        %1698 = vmatprep.subr.mxu0 0.0
        %1699 = vmatpush1.msra.mxu0 0.0
        %1700 = vmatprep.subr.mxu0 0.0
        %1701 = vmatpush1.msra.mxu0 0.0
        %1702 = vmatprep.subr.mxu0 0.0
        %1703 = vmatpush1.msra.mxu0 0.0
        %1704 = vmatprep.subr.mxu0 0.0
        %1705 = vmatpush1.msra.mxu0 0.0
        %1706 = vmatprep.subr.mxu0 0.0
        %1707 = vmatpush1.msra.mxu0 0.0
        %1708 = vmatprep.subr.mxu0 0.0
        %1709 = vmatpush1.msra.mxu0 0.0
        %1710 = vmatprep.subr.mxu0 0.0
        %1711 = vmatpush1.msra.mxu0 0.0
        %1712 = vmatprep.subr.mxu0 0.0
        %1713 = vmatpush1.msra.mxu0 0.0
        %1714 = vmatprep.subr.mxu0 0.0
        %1715 = vmatpush1.msra.mxu0 0.0
        %1716 = vmatprep.subr.mxu0 0.0
        %1717 = vmatpush1.msra.mxu0 0.0
        %1718 = vmatprep.subr.mxu0 0.0
        %1719 = vmatpush1.msra.mxu0 0.0
        %1720 = vmatprep.subr.mxu0 0.0
        %1721 = vmatpush1.msra.mxu0 0.0
        %1722 = vmatprep.subr.mxu0 0.0
        %1723 = vmatpush1.msra.mxu0 0.0
        %1724 = vmatprep.subr.mxu0 0.0
        %1725 = vmatpush1.msra.mxu0 0.0
        %1726 = vmatprep.mubr.f32.mxu0 0.0
        %v1727 = vand.u32 %v1442, 4294901760
        %v1728 = vsub.f32 %v1442, %v1727
        %1729 = vmatmul.mubr.f32.gmra.mrb[0].mxu0 %v1728
        %v1730 = vpop.f32.mrb[0].mxu0
        %v1731 = vadd.f32 %v1642, %v1730
        %v1732 = vpop.f32.mrb[0].mxu0
        %v1733 = vadd.f32 %v1644, %v1732
        %1734 = vdwg.mxu0
        %v1735 = vand.u32 %v1431, 4294901760
        %1736 = vmatprep.subr.mxu0 %v1735
        %v1737 = vand.u32 %v1435, 4294901760
        %1738 = vmatpush1.msra.mxu0 %v1737
        %v1739 = vand.u32 %v1432, 4294901760
        %1740 = vmatprep.subr.mxu0 %v1739
        %v1741 = vand.u32 %v1436, 4294901760
        %1742 = vmatpush1.msra.mxu0 %v1741
        %v1743 = vand.u32 %v1433, 4294901760
        %1744 = vmatprep.subr.mxu0 %v1743
        %v1745 = vand.u32 %v1437, 4294901760
        %1746 = vmatpush1.msra.mxu0 %v1745
        %v1747 = vand.u32 %v1448, 4294901760
        %1748 = vmatprep.subr.mxu0 %v1747
        %v1749 = vand.u32 %v1445, 4294901760
        %1750 = vmatpush1.msra.mxu0 %v1749
        %1751 = vmatprep.subr.mxu0 0.0
        %1752 = vmatpush1.msra.mxu0 0.0
        %1753 = vmatprep.subr.mxu0 0.0
        %1754 = vmatpush1.msra.mxu0 0.0
        %1755 = vmatprep.subr.mxu0 0.0
        %1756 = vmatpush1.msra.mxu0 0.0
        %1757 = vmatprep.subr.mxu0 0.0
        %1758 = vmatpush1.msra.mxu0 0.0
        %1759 = vmatprep.subr.mxu0 0.0
        %1760 = vmatpush1.msra.mxu0 0.0
        %1761 = vmatprep.subr.mxu0 0.0
        %1762 = vmatpush1.msra.mxu0 0.0
        %1763 = vmatprep.subr.mxu0 0.0
        %1764 = vmatpush1.msra.mxu0 0.0
        %1765 = vmatprep.subr.mxu0 0.0
        %1766 = vmatpush1.msra.mxu0 0.0
        %1767 = vmatprep.subr.mxu0 0.0
        %1768 = vmatpush1.msra.mxu0 0.0
        %1769 = vmatprep.subr.mxu0 0.0
        %1770 = vmatpush1.msra.mxu0 0.0
        %1771 = vmatprep.subr.mxu0 0.0
        %1772 = vmatpush1.msra.mxu0 0.0
        %1773 = vmatprep.subr.mxu0 0.0
        %1774 = vmatpush1.msra.mxu0 0.0
        %1775 = vmatprep.subr.mxu0 0.0
        %1776 = vmatpush1.msra.mxu0 0.0
        %1777 = vmatprep.subr.mxu0 0.0
        %1778 = vmatpush1.msra.mxu0 0.0
        %1779 = vmatprep.subr.mxu0 0.0
        %1780 = vmatpush1.msra.mxu0 0.0
        %1781 = vmatprep.subr.mxu0 0.0
        %1782 = vmatpush1.msra.mxu0 0.0
        %1783 = vmatprep.subr.mxu0 0.0
        %1784 = vmatpush1.msra.mxu0 0.0
        %1785 = vmatprep.subr.mxu0 0.0
        %1786 = vmatpush1.msra.mxu0 0.0
        %1787 = vmatprep.subr.mxu0 0.0
        %1788 = vmatpush1.msra.mxu0 0.0
        %1789 = vmatprep.subr.mxu0 0.0
        %1790 = vmatpush1.msra.mxu0 0.0
        %1791 = vmatprep.subr.mxu0 0.0
        %1792 = vmatpush1.msra.mxu0 0.0
        %1793 = vmatprep.subr.mxu0 0.0
        %1794 = vmatpush1.msra.mxu0 0.0
        %1795 = vmatprep.subr.mxu0 0.0
        %1796 = vmatpush1.msra.mxu0 0.0
        %1797 = vmatprep.subr.mxu0 0.0
        %1798 = vmatpush1.msra.mxu0 0.0
        %1799 = vmatprep.subr.mxu0 0.0
        %1800 = vmatpush1.msra.mxu0 0.0
        %1801 = vmatprep.subr.mxu0 0.0
        %1802 = vmatpush1.msra.mxu0 0.0
        %1803 = vmatprep.subr.mxu0 0.0
        %1804 = vmatpush1.msra.mxu0 0.0
        %1805 = vmatprep.subr.mxu0 0.0
        %1806 = vmatpush1.msra.mxu0 0.0
        %1807 = vmatprep.mubr.f32.mxu0 0.0
        %v1808 = vand.u32 %v1442, 4294901760
        %v1809 = vsub.f32 %v1442, %v1808
        %v1810 = vand.u32 %v1809, 4294901760
        %1811 = vmatmul.mubr.f32.gmra.mrb[0].mxu0 %v1810
        %v1812 = vpop.f32.mrb[0].mxu0
        %v1813 = vadd.f32 %v1731, %v1812
        %v1814 = vpop.f32.mrb[0].mxu0
        %v1815 = vadd.f32 %v1733, %v1814
        %1816 = vdwg.mxu0
        %v1817 = vand.u32 %v1431, 4294901760
        %v1818 = vsub.f32 %v1431, %v1817
        %v1819 = vand.u32 %v1818, 4294901760
        %1820 = vmatprep.subr.mxu0 %v1819
        %v1821 = vand.u32 %v1435, 4294901760
        %v1822 = vsub.f32 %v1435, %v1821
        %v1823 = vand.u32 %v1822, 4294901760
        %1824 = vmatpush1.msra.mxu0 %v1823
        %v1825 = vand.u32 %v1432, 4294901760
        %v1826 = vsub.f32 %v1432, %v1825
        %v1827 = vand.u32 %v1826, 4294901760
        %1828 = vmatprep.subr.mxu0 %v1827
        %v1829 = vand.u32 %v1436, 4294901760
        %v1830 = vsub.f32 %v1436, %v1829
        %v1831 = vand.u32 %v1830, 4294901760
        %1832 = vmatpush1.msra.mxu0 %v1831
        %v1833 = vand.u32 %v1433, 4294901760
        %v1834 = vsub.f32 %v1433, %v1833
        %v1835 = vand.u32 %v1834, 4294901760
        %1836 = vmatprep.subr.mxu0 %v1835
        %v1837 = vand.u32 %v1437, 4294901760
        %v1838 = vsub.f32 %v1437, %v1837
        %v1839 = vand.u32 %v1838, 4294901760
        %1840 = vmatpush1.msra.mxu0 %v1839
        %v1841 = vand.u32 %v1448, 4294901760
        %v1842 = vsub.f32 %v1448, %v1841
        %v1843 = vand.u32 %v1842, 4294901760
        %1844 = vmatprep.subr.mxu0 %v1843
        %v1845 = vand.u32 %v1445, 4294901760
        %v1846 = vsub.f32 %v1445, %v1845
        %v1847 = vand.u32 %v1846, 4294901760
        %1848 = vmatpush1.msra.mxu0 %v1847
        %1849 = vmatprep.subr.mxu0 0.0
        %1850 = vmatpush1.msra.mxu0 0.0
        %1851 = vmatprep.subr.mxu0 0.0
        %1852 = vmatpush1.msra.mxu0 0.0
        %1853 = vmatprep.subr.mxu0 0.0
        %1854 = vmatpush1.msra.mxu0 0.0
        %1855 = vmatprep.subr.mxu0 0.0
        %1856 = vmatpush1.msra.mxu0 0.0
        %1857 = vmatprep.subr.mxu0 0.0
        %1858 = vmatpush1.msra.mxu0 0.0
        %1859 = vmatprep.subr.mxu0 0.0
        %1860 = vmatpush1.msra.mxu0 0.0
        %1861 = vmatprep.subr.mxu0 0.0
        %1862 = vmatpush1.msra.mxu0 0.0
        %1863 = vmatprep.subr.mxu0 0.0
        %1864 = vmatpush1.msra.mxu0 0.0
        %1865 = vmatprep.subr.mxu0 0.0
        %1866 = vmatpush1.msra.mxu0 0.0
        %1867 = vmatprep.subr.mxu0 0.0
        %1868 = vmatpush1.msra.mxu0 0.0
        %1869 = vmatprep.subr.mxu0 0.0
        %1870 = vmatpush1.msra.mxu0 0.0
        %1871 = vmatprep.subr.mxu0 0.0
        %1872 = vmatpush1.msra.mxu0 0.0
        %1873 = vmatprep.subr.mxu0 0.0
        %1874 = vmatpush1.msra.mxu0 0.0
        %1875 = vmatprep.subr.mxu0 0.0
        %1876 = vmatpush1.msra.mxu0 0.0
        %1877 = vmatprep.subr.mxu0 0.0
        %1878 = vmatpush1.msra.mxu0 0.0
        %1879 = vmatprep.subr.mxu0 0.0
        %1880 = vmatpush1.msra.mxu0 0.0
        %1881 = vmatprep.subr.mxu0 0.0
        %1882 = vmatpush1.msra.mxu0 0.0
        %1883 = vmatprep.subr.mxu0 0.0
        %1884 = vmatpush1.msra.mxu0 0.0
        %1885 = vmatprep.subr.mxu0 0.0
        %1886 = vmatpush1.msra.mxu0 0.0
        %1887 = vmatprep.subr.mxu0 0.0
        %1888 = vmatpush1.msra.mxu0 0.0
        %1889 = vmatprep.subr.mxu0 0.0
        %1890 = vmatpush1.msra.mxu0 0.0
        %1891 = vmatprep.subr.mxu0 0.0
        %1892 = vmatpush1.msra.mxu0 0.0
        %1893 = vmatprep.subr.mxu0 0.0
        %1894 = vmatpush1.msra.mxu0 0.0
        %1895 = vmatprep.subr.mxu0 0.0
        %1896 = vmatpush1.msra.mxu0 0.0
        %1897 = vmatprep.subr.mxu0 0.0
        %1898 = vmatpush1.msra.mxu0 0.0
        %1899 = vmatprep.subr.mxu0 0.0
        %1900 = vmatpush1.msra.mxu0 0.0
        %1901 = vmatprep.subr.mxu0 0.0
        %1902 = vmatpush1.msra.mxu0 0.0
        %1903 = vmatprep.subr.mxu0 0.0
        %1904 = vmatpush1.msra.mxu0 0.0
        %1905 = vmatprep.mubr.f32.mxu0 0.0
        %v1906 = vand.u32 %v1442, 4294901760
        %1907 = vmatmul.mubr.f32.gmra.mrb[0].mxu0 %v1906
        %v1908 = vpop.f32.mrb[0].mxu0
        %v1909 = vadd.f32 %v1813, %v1908
        %v1910 = vpop.f32.mrb[0].mxu0
        %v1911 = vadd.f32 %v1815, %v1910
        %1912 = vdwg.mxu0
        %v1913 = vand.u32 %v1431, 4294901760
        %1914 = vmatprep.subr.mxu0 %v1913
        %v1915 = vand.u32 %v1435, 4294901760
        %1916 = vmatpush1.msra.mxu0 %v1915
        %v1917 = vand.u32 %v1432, 4294901760
        %1918 = vmatprep.subr.mxu0 %v1917
        %v1919 = vand.u32 %v1436, 4294901760
        %1920 = vmatpush1.msra.mxu0 %v1919
        %v1921 = vand.u32 %v1433, 4294901760
        %1922 = vmatprep.subr.mxu0 %v1921
        %v1923 = vand.u32 %v1437, 4294901760
        %1924 = vmatpush1.msra.mxu0 %v1923
        %v1925 = vand.u32 %v1448, 4294901760
        %1926 = vmatprep.subr.mxu0 %v1925
        %v1927 = vand.u32 %v1445, 4294901760
        %1928 = vmatpush1.msra.mxu0 %v1927
        %1929 = vmatprep.subr.mxu0 0.0
        %1930 = vmatpush1.msra.mxu0 0.0
        %1931 = vmatprep.subr.mxu0 0.0
        %1932 = vmatpush1.msra.mxu0 0.0
        %1933 = vmatprep.subr.mxu0 0.0
        %1934 = vmatpush1.msra.mxu0 0.0
        %1935 = vmatprep.subr.mxu0 0.0
        %1936 = vmatpush1.msra.mxu0 0.0
        %1937 = vmatprep.subr.mxu0 0.0
        %1938 = vmatpush1.msra.mxu0 0.0
        %1939 = vmatprep.subr.mxu0 0.0
        %1940 = vmatpush1.msra.mxu0 0.0
        %1941 = vmatprep.subr.mxu0 0.0
        %1942 = vmatpush1.msra.mxu0 0.0
        %1943 = vmatprep.subr.mxu0 0.0
        %1944 = vmatpush1.msra.mxu0 0.0
        %1945 = vmatprep.subr.mxu0 0.0
        %1946 = vmatpush1.msra.mxu0 0.0
        %1947 = vmatprep.subr.mxu0 0.0
        %1948 = vmatpush1.msra.mxu0 0.0
        %1949 = vmatprep.subr.mxu0 0.0
        %1950 = vmatpush1.msra.mxu0 0.0
        %1951 = vmatprep.subr.mxu0 0.0
        %1952 = vmatpush1.msra.mxu0 0.0
        %1953 = vmatprep.subr.mxu0 0.0
        %1954 = vmatpush1.msra.mxu0 0.0
        %1955 = vmatprep.subr.mxu0 0.0
        %1956 = vmatpush1.msra.mxu0 0.0
        %1957 = vmatprep.subr.mxu0 0.0
        %1958 = vmatpush1.msra.mxu0 0.0
        %1959 = vmatprep.subr.mxu0 0.0
        %1960 = vmatpush1.msra.mxu0 0.0
        %1961 = vmatprep.subr.mxu0 0.0
        %1962 = vmatpush1.msra.mxu0 0.0
        %1963 = vmatprep.subr.mxu0 0.0
        %1964 = vmatpush1.msra.mxu0 0.0
        %1965 = vmatprep.subr.mxu0 0.0
        %1966 = vmatpush1.msra.mxu0 0.0
        %1967 = vmatprep.subr.mxu0 0.0
        %1968 = vmatpush1.msra.mxu0 0.0
        %1969 = vmatprep.subr.mxu0 0.0
        %1970 = vmatpush1.msra.mxu0 0.0
        %1971 = vmatprep.subr.mxu0 0.0
        %1972 = vmatpush1.msra.mxu0 0.0
        %1973 = vmatprep.subr.mxu0 0.0
        %1974 = vmatpush1.msra.mxu0 0.0
        %1975 = vmatprep.subr.mxu0 0.0
        %1976 = vmatpush1.msra.mxu0 0.0
        %1977 = vmatprep.subr.mxu0 0.0
        %1978 = vmatpush1.msra.mxu0 0.0
        %1979 = vmatprep.subr.mxu0 0.0
        %1980 = vmatpush1.msra.mxu0 0.0
        %1981 = vmatprep.subr.mxu0 0.0
        %1982 = vmatpush1.msra.mxu0 0.0
        %1983 = vmatprep.subr.mxu0 0.0
        %1984 = vmatpush1.msra.mxu0 0.0
        %1985 = vmatprep.mubr.f32.mxu0 0.0
        %v1986 = vand.u32 %v1442, 4294901760
        %1987 = vmatmul.mubr.f32.gmra.mrb[0].mxu0 %v1986
        %v1988 = vpop.f32.mrb[0].mxu0
        %v1989 = vadd.f32 %v1909, %v1988
        %v1990 = vpop.f32.mrb[0].mxu0
        %v1991 = vadd.f32 %v1911, %v1990
        %1992 = vdwg.mxu0
        %s1993 = scalar_lea.vmem %s2, 2
        %v1994 = vld [vmem:[%s1993] ss:$8 sm:$0x3]
        %v1996 = vlaneseq
        %v1997 = vshrl.u32 %v1996, 7
        %v1998 = vsub.s32 0, %v1997
        %v1999 = vrot.slane %v1994, %v1998
        %v2000 = vlaneseq
        %v2001 = vshrl.u32 %v2000, 7
        %v2002 = vsub.s32 1, %v2001
        %v2003 = vrot.slane %v1994, %v2002
        %v2006 = vmul.f32 %v1989, %v1999
        %v2007 = vmul.f32 %v1991, %v2003
        %v2008 = vadd.f32 %v1412, %v2006
        %v2009 = vadd.f32 %v1413, %v2007
        %2010 = vrot.lane.b32.xlu0 %v212, 1
        %v2011 = vpop.permute.xlu0 %2010
        %2012 = vrot.lane.b32.xlu0 %v214, 1
        %v2013 = vpop.permute.xlu0 %2012
        %2014 = vrot.lane.b32.xlu0 %v216, 1
        %v2015 = vpop.permute.xlu0 %2014
        %2016 = vrot.lane.b32.xlu0 %v218, 1
        %v2017 = vpop.permute.xlu0 %2016
        %2018 = vrot.lane.b32.xlu0 %v213, 1
        %v2019 = vpop.permute.xlu0 %2018
        %2020 = vrot.lane.b32.xlu0 %v215, 1
        %v2021 = vpop.permute.xlu0 %2020
        %2022 = vrot.lane.b32.xlu0 %v217, 1
        %v2023 = vpop.permute.xlu0 %2022
        %2024 = vrot.lane.b32.xlu0 %v219, 1
        %v2025 = vpop.permute.xlu0 %2024
        %vm2026 = vcmp.lt.s32.totalorder %v237, 1
        %v2027 = vsel %vm2026, %v2011, %v2019
        %v2028 = vsel %vm2026, %v2013, %v2021
        %v2029 = vsel %vm2026, %v2015, %v2023
        %v2030 = vsel %vm2026, %v2017, %v2025
        %v2031 = vsel %vm2026, %v2019, %v2011
        %v2032 = vsel %vm2026, %v2021, %v2013
        %v2033 = vsel %vm2026, %v2023, %v2015
        %v2034 = vsel %vm2026, %v2025, %v2017
        %s2035 = scalar_lea.vmem %s1, 24
        %v2036 = vld [vmem:[%s2035] sm:$0xff]
        %v2038 = vsel %vm248, %v2036, 0
        %v2041 = vsel %vm252, %v2034, 0
        %v2044 = vsel %vm252, %v2030, 0
        %v2046 = vand.u32 %v2027, 4294901760
        %2047 = vmatprep.subr.mxu0 %v2046
        %v2048 = vand.u32 %v2031, 4294901760
        %2049 = vmatpush1.msra.mxu0 %v2048
        %v2050 = vand.u32 %v2028, 4294901760
        %2051 = vmatprep.subr.mxu0 %v2050
        %v2052 = vand.u32 %v2032, 4294901760
        %2053 = vmatpush1.msra.mxu0 %v2052
        %v2054 = vand.u32 %v2029, 4294901760
        %2055 = vmatprep.subr.mxu0 %v2054
        %v2056 = vand.u32 %v2033, 4294901760
        %2057 = vmatpush1.msra.mxu0 %v2056
        %v2058 = vand.u32 %v2044, 4294901760
        %2059 = vmatprep.subr.mxu0 %v2058
        %v2060 = vand.u32 %v2041, 4294901760
        %2061 = vmatpush1.msra.mxu0 %v2060
        %2062 = vmatprep.subr.mxu0 0.0
        %2063 = vmatpush1.msra.mxu0 0.0
        %2064 = vmatprep.subr.mxu0 0.0
        %2065 = vmatpush1.msra.mxu0 0.0
        %2066 = vmatprep.subr.mxu0 0.0
        %2067 = vmatpush1.msra.mxu0 0.0
        %2068 = vmatprep.subr.mxu0 0.0
        %2069 = vmatpush1.msra.mxu0 0.0
        %2070 = vmatprep.subr.mxu0 0.0
        %2071 = vmatpush1.msra.mxu0 0.0
        %2072 = vmatprep.subr.mxu0 0.0
        %2073 = vmatpush1.msra.mxu0 0.0
        %2074 = vmatprep.subr.mxu0 0.0
        %2075 = vmatpush1.msra.mxu0 0.0
        %2076 = vmatprep.subr.mxu0 0.0
        %2077 = vmatpush1.msra.mxu0 0.0
        %2078 = vmatprep.subr.mxu0 0.0
        %2079 = vmatpush1.msra.mxu0 0.0
        %2080 = vmatprep.subr.mxu0 0.0
        %2081 = vmatpush1.msra.mxu0 0.0
        %2082 = vmatprep.subr.mxu0 0.0
        %2083 = vmatpush1.msra.mxu0 0.0
        %2084 = vmatprep.subr.mxu0 0.0
        %2085 = vmatpush1.msra.mxu0 0.0
        %2086 = vmatprep.subr.mxu0 0.0
        %2087 = vmatpush1.msra.mxu0 0.0
        %2088 = vmatprep.subr.mxu0 0.0
        %2089 = vmatpush1.msra.mxu0 0.0
        %2090 = vmatprep.subr.mxu0 0.0
        %2091 = vmatpush1.msra.mxu0 0.0
        %2092 = vmatprep.subr.mxu0 0.0
        %2093 = vmatpush1.msra.mxu0 0.0
        %2094 = vmatprep.subr.mxu0 0.0
        %2095 = vmatpush1.msra.mxu0 0.0
        %2096 = vmatprep.subr.mxu0 0.0
        %2097 = vmatpush1.msra.mxu0 0.0
        %2098 = vmatprep.subr.mxu0 0.0
        %2099 = vmatpush1.msra.mxu0 0.0
        %2100 = vmatprep.subr.mxu0 0.0
        %2101 = vmatpush1.msra.mxu0 0.0
        %2102 = vmatprep.subr.mxu0 0.0
        %2103 = vmatpush1.msra.mxu0 0.0
        %2104 = vmatprep.subr.mxu0 0.0
        %2105 = vmatpush1.msra.mxu0 0.0
        %2106 = vmatprep.subr.mxu0 0.0
        %2107 = vmatpush1.msra.mxu0 0.0
        %2108 = vmatprep.subr.mxu0 0.0
        %2109 = vmatpush1.msra.mxu0 0.0
        %2110 = vmatprep.subr.mxu0 0.0
        %2111 = vmatpush1.msra.mxu0 0.0
        %2112 = vmatprep.subr.mxu0 0.0
        %2113 = vmatpush1.msra.mxu0 0.0
        %2114 = vmatprep.subr.mxu0 0.0
        %2115 = vmatpush1.msra.mxu0 0.0
        %2116 = vmatprep.subr.mxu0 0.0
        %2117 = vmatpush1.msra.mxu0 0.0
        %2118 = vmatprep.mubr.f32.mxu0 0.0
        %v2119 = vand.u32 %v2038, 4294901760
        %v2120 = vsub.f32 %v2038, %v2119
        %v2121 = vand.u32 %v2120, 4294901760
        %v2122 = vsub.f32 %v2120, %v2121
        %v2123 = vand.u32 %v2122, 4294901760
        %2124 = vmatmul.mubr.f32.gmra.mrb[0].mxu0 %v2123
        %v2125 = vpop.f32.mrb[0].mxu0
        %v2126 = vadd.f32 0.0, %v2125
        %v2127 = vpop.f32.mrb[0].mxu0
        %v2128 = vadd.f32 0.0, %v2127
        %2129 = vdwg.mxu0
        %v2130 = vand.u32 %v2027, 4294901760
        %v2131 = vsub.f32 %v2027, %v2130
        %v2132 = vand.u32 %v2131, 4294901760
        %v2133 = vsub.f32 %v2131, %v2132
        %v2134 = vand.u32 %v2133, 4294901760
        %2135 = vmatprep.subr.mxu0 %v2134
        %v2136 = vand.u32 %v2031, 4294901760
        %v2137 = vsub.f32 %v2031, %v2136
        %v2138 = vand.u32 %v2137, 4294901760
        %v2139 = vsub.f32 %v2137, %v2138
        %v2140 = vand.u32 %v2139, 4294901760
        %2141 = vmatpush1.msra.mxu0 %v2140
        %v2142 = vand.u32 %v2028, 4294901760
        %v2143 = vsub.f32 %v2028, %v2142
        %v2144 = vand.u32 %v2143, 4294901760
        %v2145 = vsub.f32 %v2143, %v2144
        %v2146 = vand.u32 %v2145, 4294901760
        %2147 = vmatprep.subr.mxu0 %v2146
        %v2148 = vand.u32 %v2032, 4294901760
        %v2149 = vsub.f32 %v2032, %v2148
        %v2150 = vand.u32 %v2149, 4294901760
        %v2151 = vsub.f32 %v2149, %v2150
        %v2152 = vand.u32 %v2151, 4294901760
        %2153 = vmatpush1.msra.mxu0 %v2152
        %v2154 = vand.u32 %v2029, 4294901760
        %v2155 = vsub.f32 %v2029, %v2154
        %v2156 = vand.u32 %v2155, 4294901760
        %v2157 = vsub.f32 %v2155, %v2156
        %v2158 = vand.u32 %v2157, 4294901760
        %2159 = vmatprep.subr.mxu0 %v2158
        %v2160 = vand.u32 %v2033, 4294901760
        %v2161 = vsub.f32 %v2033, %v2160
        %v2162 = vand.u32 %v2161, 4294901760
        %v2163 = vsub.f32 %v2161, %v2162
        %v2164 = vand.u32 %v2163, 4294901760
        %2165 = vmatpush1.msra.mxu0 %v2164
        %v2166 = vand.u32 %v2044, 4294901760
        %v2167 = vsub.f32 %v2044, %v2166
        %v2168 = vand.u32 %v2167, 4294901760
        %v2169 = vsub.f32 %v2167, %v2168
        %v2170 = vand.u32 %v2169, 4294901760
        %2171 = vmatprep.subr.mxu0 %v2170
        %v2172 = vand.u32 %v2041, 4294901760
        %v2173 = vsub.f32 %v2041, %v2172
        %v2174 = vand.u32 %v2173, 4294901760
        %v2175 = vsub.f32 %v2173, %v2174
        %v2176 = vand.u32 %v2175, 4294901760
        %2177 = vmatpush1.msra.mxu0 %v2176
        %2178 = vmatprep.subr.mxu0 0.0
        %2179 = vmatpush1.msra.mxu0 0.0
        %2180 = vmatprep.subr.mxu0 0.0
        %2181 = vmatpush1.msra.mxu0 0.0
        %2182 = vmatprep.subr.mxu0 0.0
        %2183 = vmatpush1.msra.mxu0 0.0
        %2184 = vmatprep.subr.mxu0 0.0
        %2185 = vmatpush1.msra.mxu0 0.0
        %2186 = vmatprep.subr.mxu0 0.0
        %2187 = vmatpush1.msra.mxu0 0.0
        %2188 = vmatprep.subr.mxu0 0.0
        %2189 = vmatpush1.msra.mxu0 0.0
        %2190 = vmatprep.subr.mxu0 0.0
        %2191 = vmatpush1.msra.mxu0 0.0
        %2192 = vmatprep.subr.mxu0 0.0
        %2193 = vmatpush1.msra.mxu0 0.0
        %2194 = vmatprep.subr.mxu0 0.0
        %2195 = vmatpush1.msra.mxu0 0.0
        %2196 = vmatprep.subr.mxu0 0.0
        %2197 = vmatpush1.msra.mxu0 0.0
        %2198 = vmatprep.subr.mxu0 0.0
        %2199 = vmatpush1.msra.mxu0 0.0
        %2200 = vmatprep.subr.mxu0 0.0
        %2201 = vmatpush1.msra.mxu0 0.0
        %2202 = vmatprep.subr.mxu0 0.0
        %2203 = vmatpush1.msra.mxu0 0.0
        %2204 = vmatprep.subr.mxu0 0.0
        %2205 = vmatpush1.msra.mxu0 0.0
        %2206 = vmatprep.subr.mxu0 0.0
        %2207 = vmatpush1.msra.mxu0 0.0
        %2208 = vmatprep.subr.mxu0 0.0
        %2209 = vmatpush1.msra.mxu0 0.0
        %2210 = vmatprep.subr.mxu0 0.0
        %2211 = vmatpush1.msra.mxu0 0.0
        %2212 = vmatprep.subr.mxu0 0.0
        %2213 = vmatpush1.msra.mxu0 0.0
        %2214 = vmatprep.subr.mxu0 0.0
        %2215 = vmatpush1.msra.mxu0 0.0
        %2216 = vmatprep.subr.mxu0 0.0
        %2217 = vmatpush1.msra.mxu0 0.0
        %2218 = vmatprep.subr.mxu0 0.0
        %2219 = vmatpush1.msra.mxu0 0.0
        %2220 = vmatprep.subr.mxu0 0.0
        %2221 = vmatpush1.msra.mxu0 0.0
        %2222 = vmatprep.subr.mxu0 0.0
        %2223 = vmatpush1.msra.mxu0 0.0
        %2224 = vmatprep.subr.mxu0 0.0
        %2225 = vmatpush1.msra.mxu0 0.0
        %2226 = vmatprep.subr.mxu0 0.0
        %2227 = vmatpush1.msra.mxu0 0.0
        %2228 = vmatprep.subr.mxu0 0.0
        %2229 = vmatpush1.msra.mxu0 0.0
        %2230 = vmatprep.subr.mxu0 0.0
        %2231 = vmatpush1.msra.mxu0 0.0
        %2232 = vmatprep.subr.mxu0 0.0
        %2233 = vmatpush1.msra.mxu0 0.0
        %2234 = vmatprep.mubr.f32.mxu0 0.0
        %v2235 = vand.u32 %v2038, 4294901760
        %2236 = vmatmul.mubr.f32.gmra.mrb[0].mxu0 %v2235
        %v2237 = vpop.f32.mrb[0].mxu0
        %v2238 = vadd.f32 %v2126, %v2237
        %v2239 = vpop.f32.mrb[0].mxu0
        %v2240 = vadd.f32 %v2128, %v2239
        %2241 = vdwg.mxu0
        %v2242 = vand.u32 %v2027, 4294901760
        %v2243 = vsub.f32 %v2027, %v2242
        %2244 = vmatprep.subr.mxu0 %v2243
        %v2245 = vand.u32 %v2031, 4294901760
        %v2246 = vsub.f32 %v2031, %v2245
        %2247 = vmatpush1.msra.mxu0 %v2246
        %v2248 = vand.u32 %v2028, 4294901760
        %v2249 = vsub.f32 %v2028, %v2248
        %2250 = vmatprep.subr.mxu0 %v2249
        %v2251 = vand.u32 %v2032, 4294901760
        %v2252 = vsub.f32 %v2032, %v2251
        %2253 = vmatpush1.msra.mxu0 %v2252
        %v2254 = vand.u32 %v2029, 4294901760
        %v2255 = vsub.f32 %v2029, %v2254
        %2256 = vmatprep.subr.mxu0 %v2255
        %v2257 = vand.u32 %v2033, 4294901760
        %v2258 = vsub.f32 %v2033, %v2257
        %2259 = vmatpush1.msra.mxu0 %v2258
        %v2260 = vand.u32 %v2044, 4294901760
        %v2261 = vsub.f32 %v2044, %v2260
        %2262 = vmatprep.subr.mxu0 %v2261
        %v2263 = vand.u32 %v2041, 4294901760
        %v2264 = vsub.f32 %v2041, %v2263
        %2265 = vmatpush1.msra.mxu0 %v2264
        %2266 = vmatprep.subr.mxu0 0.0
        %2267 = vmatpush1.msra.mxu0 0.0
        %2268 = vmatprep.subr.mxu0 0.0
        %2269 = vmatpush1.msra.mxu0 0.0
        %2270 = vmatprep.subr.mxu0 0.0
        %2271 = vmatpush1.msra.mxu0 0.0
        %2272 = vmatprep.subr.mxu0 0.0
        %2273 = vmatpush1.msra.mxu0 0.0
        %2274 = vmatprep.subr.mxu0 0.0
        %2275 = vmatpush1.msra.mxu0 0.0
        %2276 = vmatprep.subr.mxu0 0.0
        %2277 = vmatpush1.msra.mxu0 0.0
        %2278 = vmatprep.subr.mxu0 0.0
        %2279 = vmatpush1.msra.mxu0 0.0
        %2280 = vmatprep.subr.mxu0 0.0
        %2281 = vmatpush1.msra.mxu0 0.0
        %2282 = vmatprep.subr.mxu0 0.0
        %2283 = vmatpush1.msra.mxu0 0.0
        %2284 = vmatprep.subr.mxu0 0.0
        %2285 = vmatpush1.msra.mxu0 0.0
        %2286 = vmatprep.subr.mxu0 0.0
        %2287 = vmatpush1.msra.mxu0 0.0
        %2288 = vmatprep.subr.mxu0 0.0
        %2289 = vmatpush1.msra.mxu0 0.0
        %2290 = vmatprep.subr.mxu0 0.0
        %2291 = vmatpush1.msra.mxu0 0.0
        %2292 = vmatprep.subr.mxu0 0.0
        %2293 = vmatpush1.msra.mxu0 0.0
        %2294 = vmatprep.subr.mxu0 0.0
        %2295 = vmatpush1.msra.mxu0 0.0
        %2296 = vmatprep.subr.mxu0 0.0
        %2297 = vmatpush1.msra.mxu0 0.0
        %2298 = vmatprep.subr.mxu0 0.0
        %2299 = vmatpush1.msra.mxu0 0.0
        %2300 = vmatprep.subr.mxu0 0.0
        %2301 = vmatpush1.msra.mxu0 0.0
        %2302 = vmatprep.subr.mxu0 0.0
        %2303 = vmatpush1.msra.mxu0 0.0
        %2304 = vmatprep.subr.mxu0 0.0
        %2305 = vmatpush1.msra.mxu0 0.0
        %2306 = vmatprep.subr.mxu0 0.0
        %2307 = vmatpush1.msra.mxu0 0.0
        %2308 = vmatprep.subr.mxu0 0.0
        %2309 = vmatpush1.msra.mxu0 0.0
        %2310 = vmatprep.subr.mxu0 0.0
        %2311 = vmatpush1.msra.mxu0 0.0
        %2312 = vmatprep.subr.mxu0 0.0
        %2313 = vmatpush1.msra.mxu0 0.0
        %2314 = vmatprep.subr.mxu0 0.0
        %2315 = vmatpush1.msra.mxu0 0.0
        %2316 = vmatprep.subr.mxu0 0.0
        %2317 = vmatpush1.msra.mxu0 0.0
        %2318 = vmatprep.subr.mxu0 0.0
        %2319 = vmatpush1.msra.mxu0 0.0
        %2320 = vmatprep.subr.mxu0 0.0
        %2321 = vmatpush1.msra.mxu0 0.0
        %2322 = vmatprep.mubr.f32.mxu0 0.0
        %v2323 = vand.u32 %v2038, 4294901760
        %v2324 = vsub.f32 %v2038, %v2323
        %2325 = vmatmul.mubr.f32.gmra.mrb[0].mxu0 %v2324
        %v2326 = vpop.f32.mrb[0].mxu0
        %v2327 = vadd.f32 %v2238, %v2326
        %v2328 = vpop.f32.mrb[0].mxu0
        %v2329 = vadd.f32 %v2240, %v2328
        %2330 = vdwg.mxu0
        %v2331 = vand.u32 %v2027, 4294901760
        %2332 = vmatprep.subr.mxu0 %v2331
        %v2333 = vand.u32 %v2031, 4294901760
        %2334 = vmatpush1.msra.mxu0 %v2333
        %v2335 = vand.u32 %v2028, 4294901760
        %2336 = vmatprep.subr.mxu0 %v2335
        %v2337 = vand.u32 %v2032, 4294901760
        %2338 = vmatpush1.msra.mxu0 %v2337
        %v2339 = vand.u32 %v2029, 4294901760
        %2340 = vmatprep.subr.mxu0 %v2339
        %v2341 = vand.u32 %v2033, 4294901760
        %2342 = vmatpush1.msra.mxu0 %v2341
        %v2343 = vand.u32 %v2044, 4294901760
        %2344 = vmatprep.subr.mxu0 %v2343
        %v2345 = vand.u32 %v2041, 4294901760
        %2346 = vmatpush1.msra.mxu0 %v2345
        %2347 = vmatprep.subr.mxu0 0.0
        %2348 = vmatpush1.msra.mxu0 0.0
        %2349 = vmatprep.subr.mxu0 0.0
        %2350 = vmatpush1.msra.mxu0 0.0
        %2351 = vmatprep.subr.mxu0 0.0
        %2352 = vmatpush1.msra.mxu0 0.0
        %2353 = vmatprep.subr.mxu0 0.0
        %2354 = vmatpush1.msra.mxu0 0.0
        %2355 = vmatprep.subr.mxu0 0.0
        %2356 = vmatpush1.msra.mxu0 0.0
        %2357 = vmatprep.subr.mxu0 0.0
        %2358 = vmatpush1.msra.mxu0 0.0
        %2359 = vmatprep.subr.mxu0 0.0
        %2360 = vmatpush1.msra.mxu0 0.0
        %2361 = vmatprep.subr.mxu0 0.0
        %2362 = vmatpush1.msra.mxu0 0.0
        %2363 = vmatprep.subr.mxu0 0.0
        %2364 = vmatpush1.msra.mxu0 0.0
        %2365 = vmatprep.subr.mxu0 0.0
        %2366 = vmatpush1.msra.mxu0 0.0
        %2367 = vmatprep.subr.mxu0 0.0
        %2368 = vmatpush1.msra.mxu0 0.0
        %2369 = vmatprep.subr.mxu0 0.0
        %2370 = vmatpush1.msra.mxu0 0.0
        %2371 = vmatprep.subr.mxu0 0.0
        %2372 = vmatpush1.msra.mxu0 0.0
        %2373 = vmatprep.subr.mxu0 0.0
        %2374 = vmatpush1.msra.mxu0 0.0
        %2375 = vmatprep.subr.mxu0 0.0
        %2376 = vmatpush1.msra.mxu0 0.0
        %2377 = vmatprep.subr.mxu0 0.0
        %2378 = vmatpush1.msra.mxu0 0.0
        %2379 = vmatprep.subr.mxu0 0.0
        %2380 = vmatpush1.msra.mxu0 0.0
        %2381 = vmatprep.subr.mxu0 0.0
        %2382 = vmatpush1.msra.mxu0 0.0
        %2383 = vmatprep.subr.mxu0 0.0
        %2384 = vmatpush1.msra.mxu0 0.0
        %2385 = vmatprep.subr.mxu0 0.0
        %2386 = vmatpush1.msra.mxu0 0.0
        %2387 = vmatprep.subr.mxu0 0.0
        %2388 = vmatpush1.msra.mxu0 0.0
        %2389 = vmatprep.subr.mxu0 0.0
        %2390 = vmatpush1.msra.mxu0 0.0
        %2391 = vmatprep.subr.mxu0 0.0
        %2392 = vmatpush1.msra.mxu0 0.0
        %2393 = vmatprep.subr.mxu0 0.0
        %2394 = vmatpush1.msra.mxu0 0.0
        %2395 = vmatprep.subr.mxu0 0.0
        %2396 = vmatpush1.msra.mxu0 0.0
        %2397 = vmatprep.subr.mxu0 0.0
        %2398 = vmatpush1.msra.mxu0 0.0
        %2399 = vmatprep.subr.mxu0 0.0
        %2400 = vmatpush1.msra.mxu0 0.0
        %2401 = vmatprep.subr.mxu0 0.0
        %2402 = vmatpush1.msra.mxu0 0.0
        %2403 = vmatprep.mubr.f32.mxu0 0.0
        %v2404 = vand.u32 %v2038, 4294901760
        %v2405 = vsub.f32 %v2038, %v2404
        %v2406 = vand.u32 %v2405, 4294901760
        %2407 = vmatmul.mubr.f32.gmra.mrb[0].mxu0 %v2406
        %v2408 = vpop.f32.mrb[0].mxu0
        %v2409 = vadd.f32 %v2327, %v2408
        %v2410 = vpop.f32.mrb[0].mxu0
        %v2411 = vadd.f32 %v2329, %v2410
        %2412 = vdwg.mxu0
        %v2413 = vand.u32 %v2027, 4294901760
        %v2414 = vsub.f32 %v2027, %v2413
        %v2415 = vand.u32 %v2414, 4294901760
        %2416 = vmatprep.subr.mxu0 %v2415
        %v2417 = vand.u32 %v2031, 4294901760
        %v2418 = vsub.f32 %v2031, %v2417
        %v2419 = vand.u32 %v2418, 4294901760
        %2420 = vmatpush1.msra.mxu0 %v2419
        %v2421 = vand.u32 %v2028, 4294901760
        %v2422 = vsub.f32 %v2028, %v2421
        %v2423 = vand.u32 %v2422, 4294901760
        %2424 = vmatprep.subr.mxu0 %v2423
        %v2425 = vand.u32 %v2032, 4294901760
        %v2426 = vsub.f32 %v2032, %v2425
        %v2427 = vand.u32 %v2426, 4294901760
        %2428 = vmatpush1.msra.mxu0 %v2427
        %v2429 = vand.u32 %v2029, 4294901760
        %v2430 = vsub.f32 %v2029, %v2429
        %v2431 = vand.u32 %v2430, 4294901760
        %2432 = vmatprep.subr.mxu0 %v2431
        %v2433 = vand.u32 %v2033, 4294901760
        %v2434 = vsub.f32 %v2033, %v2433
        %v2435 = vand.u32 %v2434, 4294901760
        %2436 = vmatpush1.msra.mxu0 %v2435
        %v2437 = vand.u32 %v2044, 4294901760
        %v2438 = vsub.f32 %v2044, %v2437
        %v2439 = vand.u32 %v2438, 4294901760
        %2440 = vmatprep.subr.mxu0 %v2439
        %v2441 = vand.u32 %v2041, 4294901760
        %v2442 = vsub.f32 %v2041, %v2441
        %v2443 = vand.u32 %v2442, 4294901760
        %2444 = vmatpush1.msra.mxu0 %v2443
        %2445 = vmatprep.subr.mxu0 0.0
        %2446 = vmatpush1.msra.mxu0 0.0
        %2447 = vmatprep.subr.mxu0 0.0
        %2448 = vmatpush1.msra.mxu0 0.0
        %2449 = vmatprep.subr.mxu0 0.0
        %2450 = vmatpush1.msra.mxu0 0.0
        %2451 = vmatprep.subr.mxu0 0.0
        %2452 = vmatpush1.msra.mxu0 0.0
        %2453 = vmatprep.subr.mxu0 0.0
        %2454 = vmatpush1.msra.mxu0 0.0
        %2455 = vmatprep.subr.mxu0 0.0
        %2456 = vmatpush1.msra.mxu0 0.0
        %2457 = vmatprep.subr.mxu0 0.0
        %2458 = vmatpush1.msra.mxu0 0.0
        %2459 = vmatprep.subr.mxu0 0.0
        %2460 = vmatpush1.msra.mxu0 0.0
        %2461 = vmatprep.subr.mxu0 0.0
        %2462 = vmatpush1.msra.mxu0 0.0
        %2463 = vmatprep.subr.mxu0 0.0
        %2464 = vmatpush1.msra.mxu0 0.0
        %2465 = vmatprep.subr.mxu0 0.0
        %2466 = vmatpush1.msra.mxu0 0.0
        %2467 = vmatprep.subr.mxu0 0.0
        %2468 = vmatpush1.msra.mxu0 0.0
        %2469 = vmatprep.subr.mxu0 0.0
        %2470 = vmatpush1.msra.mxu0 0.0
        %2471 = vmatprep.subr.mxu0 0.0
        %2472 = vmatpush1.msra.mxu0 0.0
        %2473 = vmatprep.subr.mxu0 0.0
        %2474 = vmatpush1.msra.mxu0 0.0
        %2475 = vmatprep.subr.mxu0 0.0
        %2476 = vmatpush1.msra.mxu0 0.0
        %2477 = vmatprep.subr.mxu0 0.0
        %2478 = vmatpush1.msra.mxu0 0.0
        %2479 = vmatprep.subr.mxu0 0.0
        %2480 = vmatpush1.msra.mxu0 0.0
        %2481 = vmatprep.subr.mxu0 0.0
        %2482 = vmatpush1.msra.mxu0 0.0
        %2483 = vmatprep.subr.mxu0 0.0
        %2484 = vmatpush1.msra.mxu0 0.0
        %2485 = vmatprep.subr.mxu0 0.0
        %2486 = vmatpush1.msra.mxu0 0.0
        %2487 = vmatprep.subr.mxu0 0.0
        %2488 = vmatpush1.msra.mxu0 0.0
        %2489 = vmatprep.subr.mxu0 0.0
        %2490 = vmatpush1.msra.mxu0 0.0
        %2491 = vmatprep.subr.mxu0 0.0
        %2492 = vmatpush1.msra.mxu0 0.0
        %2493 = vmatprep.subr.mxu0 0.0
        %2494 = vmatpush1.msra.mxu0 0.0
        %2495 = vmatprep.subr.mxu0 0.0
        %2496 = vmatpush1.msra.mxu0 0.0
        %2497 = vmatprep.subr.mxu0 0.0
        %2498 = vmatpush1.msra.mxu0 0.0
        %2499 = vmatprep.subr.mxu0 0.0
        %2500 = vmatpush1.msra.mxu0 0.0
        %2501 = vmatprep.mubr.f32.mxu0 0.0
        %v2502 = vand.u32 %v2038, 4294901760
        %2503 = vmatmul.mubr.f32.gmra.mrb[0].mxu0 %v2502
        %v2504 = vpop.f32.mrb[0].mxu0
        %v2505 = vadd.f32 %v2409, %v2504
        %v2506 = vpop.f32.mrb[0].mxu0
        %v2507 = vadd.f32 %v2411, %v2506
        %2508 = vdwg.mxu0
        %v2509 = vand.u32 %v2027, 4294901760
        %2510 = vmatprep.subr.mxu0 %v2509
        %v2511 = vand.u32 %v2031, 4294901760
        %2512 = vmatpush1.msra.mxu0 %v2511
        %v2513 = vand.u32 %v2028, 4294901760
        %2514 = vmatprep.subr.mxu0 %v2513
        %v2515 = vand.u32 %v2032, 4294901760
        %2516 = vmatpush1.msra.mxu0 %v2515
        %v2517 = vand.u32 %v2029, 4294901760
        %2518 = vmatprep.subr.mxu0 %v2517
        %v2519 = vand.u32 %v2033, 4294901760
        %2520 = vmatpush1.msra.mxu0 %v2519
        %v2521 = vand.u32 %v2044, 4294901760
        %2522 = vmatprep.subr.mxu0 %v2521
        %v2523 = vand.u32 %v2041, 4294901760
        %2524 = vmatpush1.msra.mxu0 %v2523
        %2525 = vmatprep.subr.mxu0 0.0
        %2526 = vmatpush1.msra.mxu0 0.0
        %2527 = vmatprep.subr.mxu0 0.0
        %2528 = vmatpush1.msra.mxu0 0.0
        %2529 = vmatprep.subr.mxu0 0.0
        %2530 = vmatpush1.msra.mxu0 0.0
        %2531 = vmatprep.subr.mxu0 0.0
        %2532 = vmatpush1.msra.mxu0 0.0
        %2533 = vmatprep.subr.mxu0 0.0
        %2534 = vmatpush1.msra.mxu0 0.0
        %2535 = vmatprep.subr.mxu0 0.0
        %2536 = vmatpush1.msra.mxu0 0.0
        %2537 = vmatprep.subr.mxu0 0.0
        %2538 = vmatpush1.msra.mxu0 0.0
        %2539 = vmatprep.subr.mxu0 0.0
        %2540 = vmatpush1.msra.mxu0 0.0
        %2541 = vmatprep.subr.mxu0 0.0
        %2542 = vmatpush1.msra.mxu0 0.0
        %2543 = vmatprep.subr.mxu0 0.0
        %2544 = vmatpush1.msra.mxu0 0.0
        %2545 = vmatprep.subr.mxu0 0.0
        %2546 = vmatpush1.msra.mxu0 0.0
        %2547 = vmatprep.subr.mxu0 0.0
        %2548 = vmatpush1.msra.mxu0 0.0
        %2549 = vmatprep.subr.mxu0 0.0
        %2550 = vmatpush1.msra.mxu0 0.0
        %2551 = vmatprep.subr.mxu0 0.0
        %2552 = vmatpush1.msra.mxu0 0.0
        %2553 = vmatprep.subr.mxu0 0.0
        %2554 = vmatpush1.msra.mxu0 0.0
        %2555 = vmatprep.subr.mxu0 0.0
        %2556 = vmatpush1.msra.mxu0 0.0
        %2557 = vmatprep.subr.mxu0 0.0
        %2558 = vmatpush1.msra.mxu0 0.0
        %2559 = vmatprep.subr.mxu0 0.0
        %2560 = vmatpush1.msra.mxu0 0.0
        %2561 = vmatprep.subr.mxu0 0.0
        %2562 = vmatpush1.msra.mxu0 0.0
        %2563 = vmatprep.subr.mxu0 0.0
        %2564 = vmatpush1.msra.mxu0 0.0
        %2565 = vmatprep.subr.mxu0 0.0
        %2566 = vmatpush1.msra.mxu0 0.0
        %2567 = vmatprep.subr.mxu0 0.0
        %2568 = vmatpush1.msra.mxu0 0.0
        %2569 = vmatprep.subr.mxu0 0.0
        %2570 = vmatpush1.msra.mxu0 0.0
        %2571 = vmatprep.subr.mxu0 0.0
        %2572 = vmatpush1.msra.mxu0 0.0
        %2573 = vmatprep.subr.mxu0 0.0
        %2574 = vmatpush1.msra.mxu0 0.0
        %2575 = vmatprep.subr.mxu0 0.0
        %2576 = vmatpush1.msra.mxu0 0.0
        %2577 = vmatprep.subr.mxu0 0.0
        %2578 = vmatpush1.msra.mxu0 0.0
        %2579 = vmatprep.subr.mxu0 0.0
        %2580 = vmatpush1.msra.mxu0 0.0
        %2581 = vmatprep.mubr.f32.mxu0 0.0
        %v2582 = vand.u32 %v2038, 4294901760
        %2583 = vmatmul.mubr.f32.gmra.mrb[0].mxu0 %v2582
        %v2584 = vpop.f32.mrb[0].mxu0
        %v2585 = vadd.f32 %v2505, %v2584
        %v2586 = vpop.f32.mrb[0].mxu0
        %v2587 = vadd.f32 %v2507, %v2586
        %2588 = vdwg.mxu0
        %s2589 = scalar_lea.vmem %s2, 3
        %v2590 = vld [vmem:[%s2589] ss:$8 sm:$0x3]
        %v2592 = vlaneseq
        %v2593 = vshrl.u32 %v2592, 7
        %v2594 = vsub.s32 0, %v2593
        %v2595 = vrot.slane %v2590, %v2594
        %v2596 = vlaneseq
        %v2597 = vshrl.u32 %v2596, 7
        %v2598 = vsub.s32 1, %v2597
        %v2599 = vrot.slane %v2590, %v2598
        %v2602 = vmul.f32 %v2585, %v2595
        %v2603 = vmul.f32 %v2587, %v2599
        %v2604 = vadd.f32 %v2008, %v2602
        %v2605 = vadd.f32 %v2009, %v2603
        %s2606 = scalar_lea.vmem %s1, 32
        %v2607 = vld [vmem:[%s2606] sm:$0xff]
        %v2609 = vsel %vm248, %v2607, 0
        %v2612 = vsel %vm252, %v218, 0
        %v2615 = vsel %vm252, %v219, 0
        %v2617 = vand.u32 %v213, 4294901760
        %2618 = vmatprep.subr.mxu0 %v2617
        %v2619 = vand.u32 %v212, 4294901760
        %2620 = vmatpush1.msra.mxu0 %v2619
        %v2621 = vand.u32 %v215, 4294901760
        %2622 = vmatprep.subr.mxu0 %v2621
        %v2623 = vand.u32 %v214, 4294901760
        %2624 = vmatpush1.msra.mxu0 %v2623
        %v2625 = vand.u32 %v217, 4294901760
        %2626 = vmatprep.subr.mxu0 %v2625
        %v2627 = vand.u32 %v216, 4294901760
        %2628 = vmatpush1.msra.mxu0 %v2627
        %v2629 = vand.u32 %v2615, 4294901760
        %2630 = vmatprep.subr.mxu0 %v2629
        %v2631 = vand.u32 %v2612, 4294901760
        %2632 = vmatpush1.msra.mxu0 %v2631
        %2633 = vmatprep.subr.mxu0 0.0
        %2634 = vmatpush1.msra.mxu0 0.0
        %2635 = vmatprep.subr.mxu0 0.0
        %2636 = vmatpush1.msra.mxu0 0.0
        %2637 = vmatprep.subr.mxu0 0.0
        %2638 = vmatpush1.msra.mxu0 0.0
        %2639 = vmatprep.subr.mxu0 0.0
        %2640 = vmatpush1.msra.mxu0 0.0
        %2641 = vmatprep.subr.mxu0 0.0
        %2642 = vmatpush1.msra.mxu0 0.0
        %2643 = vmatprep.subr.mxu0 0.0
        %2644 = vmatpush1.msra.mxu0 0.0
        %2645 = vmatprep.subr.mxu0 0.0
        %2646 = vmatpush1.msra.mxu0 0.0
        %2647 = vmatprep.subr.mxu0 0.0
        %2648 = vmatpush1.msra.mxu0 0.0
        %2649 = vmatprep.subr.mxu0 0.0
        %2650 = vmatpush1.msra.mxu0 0.0
        %2651 = vmatprep.subr.mxu0 0.0
        %2652 = vmatpush1.msra.mxu0 0.0
        %2653 = vmatprep.subr.mxu0 0.0
        %2654 = vmatpush1.msra.mxu0 0.0
        %2655 = vmatprep.subr.mxu0 0.0
        %2656 = vmatpush1.msra.mxu0 0.0
        %2657 = vmatprep.subr.mxu0 0.0
        %2658 = vmatpush1.msra.mxu0 0.0
        %2659 = vmatprep.subr.mxu0 0.0
        %2660 = vmatpush1.msra.mxu0 0.0
        %2661 = vmatprep.subr.mxu0 0.0
        %2662 = vmatpush1.msra.mxu0 0.0
        %2663 = vmatprep.subr.mxu0 0.0
        %2664 = vmatpush1.msra.mxu0 0.0
        %2665 = vmatprep.subr.mxu0 0.0
        %2666 = vmatpush1.msra.mxu0 0.0
        %2667 = vmatprep.subr.mxu0 0.0
        %2668 = vmatpush1.msra.mxu0 0.0
        %2669 = vmatprep.subr.mxu0 0.0
        %2670 = vmatpush1.msra.mxu0 0.0
        %2671 = vmatprep.subr.mxu0 0.0
        %2672 = vmatpush1.msra.mxu0 0.0
        %2673 = vmatprep.subr.mxu0 0.0
        %2674 = vmatpush1.msra.mxu0 0.0
        %2675 = vmatprep.subr.mxu0 0.0
        %2676 = vmatpush1.msra.mxu0 0.0
        %2677 = vmatprep.subr.mxu0 0.0
        %2678 = vmatpush1.msra.mxu0 0.0
        %2679 = vmatprep.subr.mxu0 0.0
        %2680 = vmatpush1.msra.mxu0 0.0
        %2681 = vmatprep.subr.mxu0 0.0
        %2682 = vmatpush1.msra.mxu0 0.0
        %2683 = vmatprep.subr.mxu0 0.0
        %2684 = vmatpush1.msra.mxu0 0.0
        %2685 = vmatprep.subr.mxu0 0.0
        %2686 = vmatpush1.msra.mxu0 0.0
        %2687 = vmatprep.subr.mxu0 0.0
        %2688 = vmatpush1.msra.mxu0 0.0
        %2689 = vmatprep.mubr.f32.mxu0 0.0
        %v2690 = vand.u32 %v2609, 4294901760
        %v2691 = vsub.f32 %v2609, %v2690
        %v2692 = vand.u32 %v2691, 4294901760
        %v2693 = vsub.f32 %v2691, %v2692
        %v2694 = vand.u32 %v2693, 4294901760
        %2695 = vmatmul.mubr.f32.gmra.mrb[0].mxu0 %v2694
        %v2696 = vpop.f32.mrb[0].mxu0
        %v2697 = vadd.f32 0.0, %v2696
        %v2698 = vpop.f32.mrb[0].mxu0
        %v2699 = vadd.f32 0.0, %v2698
        %2700 = vdwg.mxu0
        %v2701 = vand.u32 %v213, 4294901760
        %v2702 = vsub.f32 %v213, %v2701
        %v2703 = vand.u32 %v2702, 4294901760
        %v2704 = vsub.f32 %v2702, %v2703
        %v2705 = vand.u32 %v2704, 4294901760
        %2706 = vmatprep.subr.mxu0 %v2705
        %v2707 = vand.u32 %v212, 4294901760
        %v2708 = vsub.f32 %v212, %v2707
        %v2709 = vand.u32 %v2708, 4294901760
        %v2710 = vsub.f32 %v2708, %v2709
        %v2711 = vand.u32 %v2710, 4294901760
        %2712 = vmatpush1.msra.mxu0 %v2711
        %v2713 = vand.u32 %v215, 4294901760
        %v2714 = vsub.f32 %v215, %v2713
        %v2715 = vand.u32 %v2714, 4294901760
        %v2716 = vsub.f32 %v2714, %v2715
        %v2717 = vand.u32 %v2716, 4294901760
        %2718 = vmatprep.subr.mxu0 %v2717
        %v2719 = vand.u32 %v214, 4294901760
        %v2720 = vsub.f32 %v214, %v2719
        %v2721 = vand.u32 %v2720, 4294901760
        %v2722 = vsub.f32 %v2720, %v2721
        %v2723 = vand.u32 %v2722, 4294901760
        %2724 = vmatpush1.msra.mxu0 %v2723
        %v2725 = vand.u32 %v217, 4294901760
        %v2726 = vsub.f32 %v217, %v2725
        %v2727 = vand.u32 %v2726, 4294901760
        %v2728 = vsub.f32 %v2726, %v2727
        %v2729 = vand.u32 %v2728, 4294901760
        %2730 = vmatprep.subr.mxu0 %v2729
        %v2731 = vand.u32 %v216, 4294901760
        %v2732 = vsub.f32 %v216, %v2731
        %v2733 = vand.u32 %v2732, 4294901760
        %v2734 = vsub.f32 %v2732, %v2733
        %v2735 = vand.u32 %v2734, 4294901760
        %2736 = vmatpush1.msra.mxu0 %v2735
        %v2737 = vand.u32 %v2615, 4294901760
        %v2738 = vsub.f32 %v2615, %v2737
        %v2739 = vand.u32 %v2738, 4294901760
        %v2740 = vsub.f32 %v2738, %v2739
        %v2741 = vand.u32 %v2740, 4294901760
        %2742 = vmatprep.subr.mxu0 %v2741
        %v2743 = vand.u32 %v2612, 4294901760
        %v2744 = vsub.f32 %v2612, %v2743
        %v2745 = vand.u32 %v2744, 4294901760
        %v2746 = vsub.f32 %v2744, %v2745
        %v2747 = vand.u32 %v2746, 4294901760
        %2748 = vmatpush1.msra.mxu0 %v2747
        %2749 = vmatprep.subr.mxu0 0.0
        %2750 = vmatpush1.msra.mxu0 0.0
        %2751 = vmatprep.subr.mxu0 0.0
        %2752 = vmatpush1.msra.mxu0 0.0
        %2753 = vmatprep.subr.mxu0 0.0
        %2754 = vmatpush1.msra.mxu0 0.0
        %2755 = vmatprep.subr.mxu0 0.0
        %2756 = vmatpush1.msra.mxu0 0.0
        %2757 = vmatprep.subr.mxu0 0.0
        %2758 = vmatpush1.msra.mxu0 0.0
        %2759 = vmatprep.subr.mxu0 0.0
        %2760 = vmatpush1.msra.mxu0 0.0
        %2761 = vmatprep.subr.mxu0 0.0
        %2762 = vmatpush1.msra.mxu0 0.0
        %2763 = vmatprep.subr.mxu0 0.0
        %2764 = vmatpush1.msra.mxu0 0.0
        %2765 = vmatprep.subr.mxu0 0.0
        %2766 = vmatpush1.msra.mxu0 0.0
        %2767 = vmatprep.subr.mxu0 0.0
        %2768 = vmatpush1.msra.mxu0 0.0
        %2769 = vmatprep.subr.mxu0 0.0
        %2770 = vmatpush1.msra.mxu0 0.0
        %2771 = vmatprep.subr.mxu0 0.0
        %2772 = vmatpush1.msra.mxu0 0.0
        %2773 = vmatprep.subr.mxu0 0.0
        %2774 = vmatpush1.msra.mxu0 0.0
        %2775 = vmatprep.subr.mxu0 0.0
        %2776 = vmatpush1.msra.mxu0 0.0
        %2777 = vmatprep.subr.mxu0 0.0
        %2778 = vmatpush1.msra.mxu0 0.0
        %2779 = vmatprep.subr.mxu0 0.0
        %2780 = vmatpush1.msra.mxu0 0.0
        %2781 = vmatprep.subr.mxu0 0.0
        %2782 = vmatpush1.msra.mxu0 0.0
        %2783 = vmatprep.subr.mxu0 0.0
        %2784 = vmatpush1.msra.mxu0 0.0
        %2785 = vmatprep.subr.mxu0 0.0
        %2786 = vmatpush1.msra.mxu0 0.0
        %2787 = vmatprep.subr.mxu0 0.0
        %2788 = vmatpush1.msra.mxu0 0.0
        %2789 = vmatprep.subr.mxu0 0.0
        %2790 = vmatpush1.msra.mxu0 0.0
        %2791 = vmatprep.subr.mxu0 0.0
        %2792 = vmatpush1.msra.mxu0 0.0
        %2793 = vmatprep.subr.mxu0 0.0
        %2794 = vmatpush1.msra.mxu0 0.0
        %2795 = vmatprep.subr.mxu0 0.0
        %2796 = vmatpush1.msra.mxu0 0.0
        %2797 = vmatprep.subr.mxu0 0.0
        %2798 = vmatpush1.msra.mxu0 0.0
        %2799 = vmatprep.subr.mxu0 0.0
        %2800 = vmatpush1.msra.mxu0 0.0
        %2801 = vmatprep.subr.mxu0 0.0
        %2802 = vmatpush1.msra.mxu0 0.0
        %2803 = vmatprep.subr.mxu0 0.0
        %2804 = vmatpush1.msra.mxu0 0.0
        %2805 = vmatprep.mubr.f32.mxu0 0.0
        %v2806 = vand.u32 %v2609, 4294901760
        %2807 = vmatmul.mubr.f32.gmra.mrb[0].mxu0 %v2806
        %v2808 = vpop.f32.mrb[0].mxu0
        %v2809 = vadd.f32 %v2697, %v2808
        %v2810 = vpop.f32.mrb[0].mxu0
        %v2811 = vadd.f32 %v2699, %v2810
        %2812 = vdwg.mxu0
        %v2813 = vand.u32 %v213, 4294901760
        %v2814 = vsub.f32 %v213, %v2813
        %2815 = vmatprep.subr.mxu0 %v2814
        %v2816 = vand.u32 %v212, 4294901760
        %v2817 = vsub.f32 %v212, %v2816
        %2818 = vmatpush1.msra.mxu0 %v2817
        %v2819 = vand.u32 %v215, 4294901760
        %v2820 = vsub.f32 %v215, %v2819
        %2821 = vmatprep.subr.mxu0 %v2820
        %v2822 = vand.u32 %v214, 4294901760
        %v2823 = vsub.f32 %v214, %v2822
        %2824 = vmatpush1.msra.mxu0 %v2823
        %v2825 = vand.u32 %v217, 4294901760
        %v2826 = vsub.f32 %v217, %v2825
        %2827 = vmatprep.subr.mxu0 %v2826
        %v2828 = vand.u32 %v216, 4294901760
        %v2829 = vsub.f32 %v216, %v2828
        %2830 = vmatpush1.msra.mxu0 %v2829
        %v2831 = vand.u32 %v2615, 4294901760
        %v2832 = vsub.f32 %v2615, %v2831
        %2833 = vmatprep.subr.mxu0 %v2832
        %v2834 = vand.u32 %v2612, 4294901760
        %v2835 = vsub.f32 %v2612, %v2834
        %2836 = vmatpush1.msra.mxu0 %v2835
        %2837 = vmatprep.subr.mxu0 0.0
        %2838 = vmatpush1.msra.mxu0 0.0
        %2839 = vmatprep.subr.mxu0 0.0
        %2840 = vmatpush1.msra.mxu0 0.0
        %2841 = vmatprep.subr.mxu0 0.0
        %2842 = vmatpush1.msra.mxu0 0.0
        %2843 = vmatprep.subr.mxu0 0.0
        %2844 = vmatpush1.msra.mxu0 0.0
        %2845 = vmatprep.subr.mxu0 0.0
        %2846 = vmatpush1.msra.mxu0 0.0
        %2847 = vmatprep.subr.mxu0 0.0
        %2848 = vmatpush1.msra.mxu0 0.0
        %2849 = vmatprep.subr.mxu0 0.0
        %2850 = vmatpush1.msra.mxu0 0.0
        %2851 = vmatprep.subr.mxu0 0.0
        %2852 = vmatpush1.msra.mxu0 0.0
        %2853 = vmatprep.subr.mxu0 0.0
        %2854 = vmatpush1.msra.mxu0 0.0
        %2855 = vmatprep.subr.mxu0 0.0
        %2856 = vmatpush1.msra.mxu0 0.0
        %2857 = vmatprep.subr.mxu0 0.0
        %2858 = vmatpush1.msra.mxu0 0.0
        %2859 = vmatprep.subr.mxu0 0.0
        %2860 = vmatpush1.msra.mxu0 0.0
        %2861 = vmatprep.subr.mxu0 0.0
        %2862 = vmatpush1.msra.mxu0 0.0
        %2863 = vmatprep.subr.mxu0 0.0
        %2864 = vmatpush1.msra.mxu0 0.0
        %2865 = vmatprep.subr.mxu0 0.0
        %2866 = vmatpush1.msra.mxu0 0.0
        %2867 = vmatprep.subr.mxu0 0.0
        %2868 = vmatpush1.msra.mxu0 0.0
        %2869 = vmatprep.subr.mxu0 0.0
        %2870 = vmatpush1.msra.mxu0 0.0
        %2871 = vmatprep.subr.mxu0 0.0
        %2872 = vmatpush1.msra.mxu0 0.0
        %2873 = vmatprep.subr.mxu0 0.0
        %2874 = vmatpush1.msra.mxu0 0.0
        %2875 = vmatprep.subr.mxu0 0.0
        %2876 = vmatpush1.msra.mxu0 0.0
        %2877 = vmatprep.subr.mxu0 0.0
        %2878 = vmatpush1.msra.mxu0 0.0
        %2879 = vmatprep.subr.mxu0 0.0
        %2880 = vmatpush1.msra.mxu0 0.0
        %2881 = vmatprep.subr.mxu0 0.0
        %2882 = vmatpush1.msra.mxu0 0.0
        %2883 = vmatprep.subr.mxu0 0.0
        %2884 = vmatpush1.msra.mxu0 0.0
        %2885 = vmatprep.subr.mxu0 0.0
        %2886 = vmatpush1.msra.mxu0 0.0
        %2887 = vmatprep.subr.mxu0 0.0
        %2888 = vmatpush1.msra.mxu0 0.0
        %2889 = vmatprep.subr.mxu0 0.0
        %2890 = vmatpush1.msra.mxu0 0.0
        %2891 = vmatprep.subr.mxu0 0.0
        %2892 = vmatpush1.msra.mxu0 0.0
        %2893 = vmatprep.mubr.f32.mxu0 0.0
        %v2894 = vand.u32 %v2609, 4294901760
        %v2895 = vsub.f32 %v2609, %v2894
        %2896 = vmatmul.mubr.f32.gmra.mrb[0].mxu0 %v2895
        %v2897 = vpop.f32.mrb[0].mxu0
        %v2898 = vadd.f32 %v2809, %v2897
        %v2899 = vpop.f32.mrb[0].mxu0
        %v2900 = vadd.f32 %v2811, %v2899
        %2901 = vdwg.mxu0
        %v2902 = vand.u32 %v213, 4294901760
        %2903 = vmatprep.subr.mxu0 %v2902
        %v2904 = vand.u32 %v212, 4294901760
        %2905 = vmatpush1.msra.mxu0 %v2904
        %v2906 = vand.u32 %v215, 4294901760
        %2907 = vmatprep.subr.mxu0 %v2906
        %v2908 = vand.u32 %v214, 4294901760
        %2909 = vmatpush1.msra.mxu0 %v2908
        %v2910 = vand.u32 %v217, 4294901760
        %2911 = vmatprep.subr.mxu0 %v2910
        %v2912 = vand.u32 %v216, 4294901760
        %2913 = vmatpush1.msra.mxu0 %v2912
        %v2914 = vand.u32 %v2615, 4294901760
        %2915 = vmatprep.subr.mxu0 %v2914
        %v2916 = vand.u32 %v2612, 4294901760
        %2917 = vmatpush1.msra.mxu0 %v2916
        %2918 = vmatprep.subr.mxu0 0.0
        %2919 = vmatpush1.msra.mxu0 0.0
        %2920 = vmatprep.subr.mxu0 0.0
        %2921 = vmatpush1.msra.mxu0 0.0
        %2922 = vmatprep.subr.mxu0 0.0
        %2923 = vmatpush1.msra.mxu0 0.0
        %2924 = vmatprep.subr.mxu0 0.0
        %2925 = vmatpush1.msra.mxu0 0.0
        %2926 = vmatprep.subr.mxu0 0.0
        %2927 = vmatpush1.msra.mxu0 0.0
        %2928 = vmatprep.subr.mxu0 0.0
        %2929 = vmatpush1.msra.mxu0 0.0
        %2930 = vmatprep.subr.mxu0 0.0
        %2931 = vmatpush1.msra.mxu0 0.0
        %2932 = vmatprep.subr.mxu0 0.0
        %2933 = vmatpush1.msra.mxu0 0.0
        %2934 = vmatprep.subr.mxu0 0.0
        %2935 = vmatpush1.msra.mxu0 0.0
        %2936 = vmatprep.subr.mxu0 0.0
        %2937 = vmatpush1.msra.mxu0 0.0
        %2938 = vmatprep.subr.mxu0 0.0
        %2939 = vmatpush1.msra.mxu0 0.0
        %2940 = vmatprep.subr.mxu0 0.0
        %2941 = vmatpush1.msra.mxu0 0.0
        %2942 = vmatprep.subr.mxu0 0.0
        %2943 = vmatpush1.msra.mxu0 0.0
        %2944 = vmatprep.subr.mxu0 0.0
        %2945 = vmatpush1.msra.mxu0 0.0
        %2946 = vmatprep.subr.mxu0 0.0
        %2947 = vmatpush1.msra.mxu0 0.0
        %2948 = vmatprep.subr.mxu0 0.0
        %2949 = vmatpush1.msra.mxu0 0.0
        %2950 = vmatprep.subr.mxu0 0.0
        %2951 = vmatpush1.msra.mxu0 0.0
        %2952 = vmatprep.subr.mxu0 0.0
        %2953 = vmatpush1.msra.mxu0 0.0
        %2954 = vmatprep.subr.mxu0 0.0
        %2955 = vmatpush1.msra.mxu0 0.0
        %2956 = vmatprep.subr.mxu0 0.0
        %2957 = vmatpush1.msra.mxu0 0.0
        %2958 = vmatprep.subr.mxu0 0.0
        %2959 = vmatpush1.msra.mxu0 0.0
        %2960 = vmatprep.subr.mxu0 0.0
        %2961 = vmatpush1.msra.mxu0 0.0
        %2962 = vmatprep.subr.mxu0 0.0
        %2963 = vmatpush1.msra.mxu0 0.0
        %2964 = vmatprep.subr.mxu0 0.0
        %2965 = vmatpush1.msra.mxu0 0.0
        %2966 = vmatprep.subr.mxu0 0.0
        %2967 = vmatpush1.msra.mxu0 0.0
        %2968 = vmatprep.subr.mxu0 0.0
        %2969 = vmatpush1.msra.mxu0 0.0
        %2970 = vmatprep.subr.mxu0 0.0
        %2971 = vmatpush1.msra.mxu0 0.0
        %2972 = vmatprep.subr.mxu0 0.0
        %2973 = vmatpush1.msra.mxu0 0.0
        %2974 = vmatprep.mubr.f32.mxu0 0.0
        %v2975 = vand.u32 %v2609, 4294901760
        %v2976 = vsub.f32 %v2609, %v2975
        %v2977 = vand.u32 %v2976, 4294901760
        %2978 = vmatmul.mubr.f32.gmra.mrb[0].mxu0 %v2977
        %v2979 = vpop.f32.mrb[0].mxu0
        %v2980 = vadd.f32 %v2898, %v2979
        %v2981 = vpop.f32.mrb[0].mxu0
        %v2982 = vadd.f32 %v2900, %v2981
        %2983 = vdwg.mxu0
        %v2984 = vand.u32 %v213, 4294901760
        %v2985 = vsub.f32 %v213, %v2984
        %v2986 = vand.u32 %v2985, 4294901760
        %2987 = vmatprep.subr.mxu0 %v2986
        %v2988 = vand.u32 %v212, 4294901760
        %v2989 = vsub.f32 %v212, %v2988
        %v2990 = vand.u32 %v2989, 4294901760
        %2991 = vmatpush1.msra.mxu0 %v2990
        %v2992 = vand.u32 %v215, 4294901760
        %v2993 = vsub.f32 %v215, %v2992
        %v2994 = vand.u32 %v2993, 4294901760
        %2995 = vmatprep.subr.mxu0 %v2994
        %v2996 = vand.u32 %v214, 4294901760
        %v2997 = vsub.f32 %v214, %v2996
        %v2998 = vand.u32 %v2997, 4294901760
        %2999 = vmatpush1.msra.mxu0 %v2998
        %v3000 = vand.u32 %v217, 4294901760
        %v3001 = vsub.f32 %v217, %v3000
        %v3002 = vand.u32 %v3001, 4294901760
        %3003 = vmatprep.subr.mxu0 %v3002
        %v3004 = vand.u32 %v216, 4294901760
        %v3005 = vsub.f32 %v216, %v3004
        %v3006 = vand.u32 %v3005, 4294901760
        %3007 = vmatpush1.msra.mxu0 %v3006
        %v3008 = vand.u32 %v2615, 4294901760
        %v3009 = vsub.f32 %v2615, %v3008
        %v3010 = vand.u32 %v3009, 4294901760
        %3011 = vmatprep.subr.mxu0 %v3010
        %v3012 = vand.u32 %v2612, 4294901760
        %v3013 = vsub.f32 %v2612, %v3012
        %v3014 = vand.u32 %v3013, 4294901760
        %3015 = vmatpush1.msra.mxu0 %v3014
        %3016 = vmatprep.subr.mxu0 0.0
        %3017 = vmatpush1.msra.mxu0 0.0
        %3018 = vmatprep.subr.mxu0 0.0
        %3019 = vmatpush1.msra.mxu0 0.0
        %3020 = vmatprep.subr.mxu0 0.0
        %3021 = vmatpush1.msra.mxu0 0.0
        %3022 = vmatprep.subr.mxu0 0.0
        %3023 = vmatpush1.msra.mxu0 0.0
        %3024 = vmatprep.subr.mxu0 0.0
        %3025 = vmatpush1.msra.mxu0 0.0
        %3026 = vmatprep.subr.mxu0 0.0
        %3027 = vmatpush1.msra.mxu0 0.0
        %3028 = vmatprep.subr.mxu0 0.0
        %3029 = vmatpush1.msra.mxu0 0.0
        %3030 = vmatprep.subr.mxu0 0.0
        %3031 = vmatpush1.msra.mxu0 0.0
        %3032 = vmatprep.subr.mxu0 0.0
        %3033 = vmatpush1.msra.mxu0 0.0
        %3034 = vmatprep.subr.mxu0 0.0
        %3035 = vmatpush1.msra.mxu0 0.0
        %3036 = vmatprep.subr.mxu0 0.0
        %3037 = vmatpush1.msra.mxu0 0.0
        %3038 = vmatprep.subr.mxu0 0.0
        %3039 = vmatpush1.msra.mxu0 0.0
        %3040 = vmatprep.subr.mxu0 0.0
        %3041 = vmatpush1.msra.mxu0 0.0
        %3042 = vmatprep.subr.mxu0 0.0
        %3043 = vmatpush1.msra.mxu0 0.0
        %3044 = vmatprep.subr.mxu0 0.0
        %3045 = vmatpush1.msra.mxu0 0.0
        %3046 = vmatprep.subr.mxu0 0.0
        %3047 = vmatpush1.msra.mxu0 0.0
        %3048 = vmatprep.subr.mxu0 0.0
        %3049 = vmatpush1.msra.mxu0 0.0
        %3050 = vmatprep.subr.mxu0 0.0
        %3051 = vmatpush1.msra.mxu0 0.0
        %3052 = vmatprep.subr.mxu0 0.0
        %3053 = vmatpush1.msra.mxu0 0.0
        %3054 = vmatprep.subr.mxu0 0.0
        %3055 = vmatpush1.msra.mxu0 0.0
        %3056 = vmatprep.subr.mxu0 0.0
        %3057 = vmatpush1.msra.mxu0 0.0
        %3058 = vmatprep.subr.mxu0 0.0
        %3059 = vmatpush1.msra.mxu0 0.0
        %3060 = vmatprep.subr.mxu0 0.0
        %3061 = vmatpush1.msra.mxu0 0.0
        %3062 = vmatprep.subr.mxu0 0.0
        %3063 = vmatpush1.msra.mxu0 0.0
        %3064 = vmatprep.subr.mxu0 0.0
        %3065 = vmatpush1.msra.mxu0 0.0
        %3066 = vmatprep.subr.mxu0 0.0
        %3067 = vmatpush1.msra.mxu0 0.0
        %3068 = vmatprep.subr.mxu0 0.0
        %3069 = vmatpush1.msra.mxu0 0.0
        %3070 = vmatprep.subr.mxu0 0.0
        %3071 = vmatpush1.msra.mxu0 0.0
        %3072 = vmatprep.mubr.f32.mxu0 0.0
        %v3073 = vand.u32 %v2609, 4294901760
        %3074 = vmatmul.mubr.f32.gmra.mrb[0].mxu0 %v3073
        %v3075 = vpop.f32.mrb[0].mxu0
        %v3076 = vadd.f32 %v2980, %v3075
        %v3077 = vpop.f32.mrb[0].mxu0
        %v3078 = vadd.f32 %v2982, %v3077
        %3079 = vdwg.mxu0
        %v3080 = vand.u32 %v213, 4294901760
        %3081 = vmatprep.subr.mxu0 %v3080
        %v3082 = vand.u32 %v212, 4294901760
        %3083 = vmatpush1.msra.mxu0 %v3082
        %v3084 = vand.u32 %v215, 4294901760
        %3085 = vmatprep.subr.mxu0 %v3084
        %v3086 = vand.u32 %v214, 4294901760
        %3087 = vmatpush1.msra.mxu0 %v3086
        %v3088 = vand.u32 %v217, 4294901760
        %3089 = vmatprep.subr.mxu0 %v3088
        %v3090 = vand.u32 %v216, 4294901760
        %3091 = vmatpush1.msra.mxu0 %v3090
        %v3092 = vand.u32 %v2615, 4294901760
        %3093 = vmatprep.subr.mxu0 %v3092
        %v3094 = vand.u32 %v2612, 4294901760
        %3095 = vmatpush1.msra.mxu0 %v3094
        %3096 = vmatprep.subr.mxu0 0.0
        %3097 = vmatpush1.msra.mxu0 0.0
        %3098 = vmatprep.subr.mxu0 0.0
        %3099 = vmatpush1.msra.mxu0 0.0
        %3100 = vmatprep.subr.mxu0 0.0
        %3101 = vmatpush1.msra.mxu0 0.0
        %3102 = vmatprep.subr.mxu0 0.0
        %3103 = vmatpush1.msra.mxu0 0.0
        %3104 = vmatprep.subr.mxu0 0.0
        %3105 = vmatpush1.msra.mxu0 0.0
        %3106 = vmatprep.subr.mxu0 0.0
        %3107 = vmatpush1.msra.mxu0 0.0
        %3108 = vmatprep.subr.mxu0 0.0
        %3109 = vmatpush1.msra.mxu0 0.0
        %3110 = vmatprep.subr.mxu0 0.0
        %3111 = vmatpush1.msra.mxu0 0.0
        %3112 = vmatprep.subr.mxu0 0.0
        %3113 = vmatpush1.msra.mxu0 0.0
        %3114 = vmatprep.subr.mxu0 0.0
        %3115 = vmatpush1.msra.mxu0 0.0
        %3116 = vmatprep.subr.mxu0 0.0
        %3117 = vmatpush1.msra.mxu0 0.0
        %3118 = vmatprep.subr.mxu0 0.0
        %3119 = vmatpush1.msra.mxu0 0.0
        %3120 = vmatprep.subr.mxu0 0.0
        %3121 = vmatpush1.msra.mxu0 0.0
        %3122 = vmatprep.subr.mxu0 0.0
        %3123 = vmatpush1.msra.mxu0 0.0
        %3124 = vmatprep.subr.mxu0 0.0
        %3125 = vmatpush1.msra.mxu0 0.0
        %3126 = vmatprep.subr.mxu0 0.0
        %3127 = vmatpush1.msra.mxu0 0.0
        %3128 = vmatprep.subr.mxu0 0.0
        %3129 = vmatpush1.msra.mxu0 0.0
        %3130 = vmatprep.subr.mxu0 0.0
        %3131 = vmatpush1.msra.mxu0 0.0
        %3132 = vmatprep.subr.mxu0 0.0
        %3133 = vmatpush1.msra.mxu0 0.0
        %3134 = vmatprep.subr.mxu0 0.0
        %3135 = vmatpush1.msra.mxu0 0.0
        %3136 = vmatprep.subr.mxu0 0.0
        %3137 = vmatpush1.msra.mxu0 0.0
        %3138 = vmatprep.subr.mxu0 0.0
        %3139 = vmatpush1.msra.mxu0 0.0
        %3140 = vmatprep.subr.mxu0 0.0
        %3141 = vmatpush1.msra.mxu0 0.0
        %3142 = vmatprep.subr.mxu0 0.0
        %3143 = vmatpush1.msra.mxu0 0.0
        %3144 = vmatprep.subr.mxu0 0.0
        %3145 = vmatpush1.msra.mxu0 0.0
        %3146 = vmatprep.subr.mxu0 0.0
        %3147 = vmatpush1.msra.mxu0 0.0
        %3148 = vmatprep.subr.mxu0 0.0
        %3149 = vmatpush1.msra.mxu0 0.0
        %3150 = vmatprep.subr.mxu0 0.0
        %3151 = vmatpush1.msra.mxu0 0.0
        %3152 = vmatprep.mubr.f32.mxu0 0.0
        %v3153 = vand.u32 %v2609, 4294901760
        %3154 = vmatmul.mubr.f32.gmra.mrb[0].mxu0 %v3153
        %v3155 = vpop.f32.mrb[0].mxu0
        %v3156 = vadd.f32 %v3076, %v3155
        %v3157 = vpop.f32.mrb[0].mxu0
        %v3158 = vadd.f32 %v3078, %v3157
        %3159 = vdwg.mxu0
        %v3160 = vadd.f32 %v2604, %v3156
        %v3161 = vadd.f32 %v2605, %v3158
        %3162 = vrot.lane.b32.xlu0 %v212, 127
        %v3163 = vpop.permute.xlu0 %3162
        %3164 = vrot.lane.b32.xlu0 %v214, 127
        %v3165 = vpop.permute.xlu0 %3164
        %3166 = vrot.lane.b32.xlu0 %v216, 127
        %v3167 = vpop.permute.xlu0 %3166
        %3168 = vrot.lane.b32.xlu0 %v218, 127
        %v3169 = vpop.permute.xlu0 %3168
        %3170 = vrot.lane.b32.xlu0 %v213, 127
        %v3171 = vpop.permute.xlu0 %3170
        %3172 = vrot.lane.b32.xlu0 %v215, 127
        %v3173 = vpop.permute.xlu0 %3172
        %3174 = vrot.lane.b32.xlu0 %v217, 127
        %v3175 = vpop.permute.xlu0 %3174
        %3176 = vrot.lane.b32.xlu0 %v219, 127
        %v3177 = vpop.permute.xlu0 %3176
        %vm3178 = vcmp.lt.s32.totalorder %v237, 127
        %v3179 = vsel %vm3178, %v3163, %v3171
        %v3180 = vsel %vm3178, %v3165, %v3173
        %v3181 = vsel %vm3178, %v3167, %v3175
        %v3182 = vsel %vm3178, %v3169, %v3177
        %v3183 = vsel %vm3178, %v3171, %v3163
        %v3184 = vsel %vm3178, %v3173, %v3165
        %v3185 = vsel %vm3178, %v3175, %v3167
        %v3186 = vsel %vm3178, %v3177, %v3169
        %s3187 = scalar_lea.vmem %s1, 40
        %v3188 = vld [vmem:[%s3187] sm:$0xff]
        %v3190 = vsel %vm248, %v3188, 0
        %v3193 = vsel %vm252, %v3182, 0
        %v3196 = vsel %vm252, %v3186, 0
        %v3198 = vand.u32 %v3183, 4294901760
        %3199 = vmatprep.subr.mxu0 %v3198
        %v3200 = vand.u32 %v3179, 4294901760
        %3201 = vmatpush1.msra.mxu0 %v3200
        %v3202 = vand.u32 %v3184, 4294901760
        %3203 = vmatprep.subr.mxu0 %v3202
        %v3204 = vand.u32 %v3180, 4294901760
        %3205 = vmatpush1.msra.mxu0 %v3204
        %v3206 = vand.u32 %v3185, 4294901760
        %3207 = vmatprep.subr.mxu0 %v3206
        %v3208 = vand.u32 %v3181, 4294901760
        %3209 = vmatpush1.msra.mxu0 %v3208
        %v3210 = vand.u32 %v3196, 4294901760
        %3211 = vmatprep.subr.mxu0 %v3210
        %v3212 = vand.u32 %v3193, 4294901760
        %3213 = vmatpush1.msra.mxu0 %v3212
        %3214 = vmatprep.subr.mxu0 0.0
        %3215 = vmatpush1.msra.mxu0 0.0
        %3216 = vmatprep.subr.mxu0 0.0
        %3217 = vmatpush1.msra.mxu0 0.0
        %3218 = vmatprep.subr.mxu0 0.0
        %3219 = vmatpush1.msra.mxu0 0.0
        %3220 = vmatprep.subr.mxu0 0.0
        %3221 = vmatpush1.msra.mxu0 0.0
        %3222 = vmatprep.subr.mxu0 0.0
        %3223 = vmatpush1.msra.mxu0 0.0
        %3224 = vmatprep.subr.mxu0 0.0
        %3225 = vmatpush1.msra.mxu0 0.0
        %3226 = vmatprep.subr.mxu0 0.0
        %3227 = vmatpush1.msra.mxu0 0.0
        %3228 = vmatprep.subr.mxu0 0.0
        %3229 = vmatpush1.msra.mxu0 0.0
        %3230 = vmatprep.subr.mxu0 0.0
        %3231 = vmatpush1.msra.mxu0 0.0
        %3232 = vmatprep.subr.mxu0 0.0
        %3233 = vmatpush1.msra.mxu0 0.0
        %3234 = vmatprep.subr.mxu0 0.0
        %3235 = vmatpush1.msra.mxu0 0.0
        %3236 = vmatprep.subr.mxu0 0.0
        %3237 = vmatpush1.msra.mxu0 0.0
        %3238 = vmatprep.subr.mxu0 0.0
        %3239 = vmatpush1.msra.mxu0 0.0
        %3240 = vmatprep.subr.mxu0 0.0
        %3241 = vmatpush1.msra.mxu0 0.0
        %3242 = vmatprep.subr.mxu0 0.0
        %3243 = vmatpush1.msra.mxu0 0.0
        %3244 = vmatprep.subr.mxu0 0.0
        %3245 = vmatpush1.msra.mxu0 0.0
        %3246 = vmatprep.subr.mxu0 0.0
        %3247 = vmatpush1.msra.mxu0 0.0
        %3248 = vmatprep.subr.mxu0 0.0
        %3249 = vmatpush1.msra.mxu0 0.0
        %3250 = vmatprep.subr.mxu0 0.0
        %3251 = vmatpush1.msra.mxu0 0.0
        %3252 = vmatprep.subr.mxu0 0.0
        %3253 = vmatpush1.msra.mxu0 0.0
        %3254 = vmatprep.subr.mxu0 0.0
        %3255 = vmatpush1.msra.mxu0 0.0
        %3256 = vmatprep.subr.mxu0 0.0
        %3257 = vmatpush1.msra.mxu0 0.0
        %3258 = vmatprep.subr.mxu0 0.0
        %3259 = vmatpush1.msra.mxu0 0.0
        %3260 = vmatprep.subr.mxu0 0.0
        %3261 = vmatpush1.msra.mxu0 0.0
        %3262 = vmatprep.subr.mxu0 0.0
        %3263 = vmatpush1.msra.mxu0 0.0
        %3264 = vmatprep.subr.mxu0 0.0
        %3265 = vmatpush1.msra.mxu0 0.0
        %3266 = vmatprep.subr.mxu0 0.0
        %3267 = vmatpush1.msra.mxu0 0.0
        %3268 = vmatprep.subr.mxu0 0.0
        %3269 = vmatpush1.msra.mxu0 0.0
        %3270 = vmatprep.mubr.f32.mxu0 0.0
        %v3271 = vand.u32 %v3190, 4294901760
        %v3272 = vsub.f32 %v3190, %v3271
        %v3273 = vand.u32 %v3272, 4294901760
        %v3274 = vsub.f32 %v3272, %v3273
        %v3275 = vand.u32 %v3274, 4294901760
        %3276 = vmatmul.mubr.f32.gmra.mrb[0].mxu0 %v3275
        %v3277 = vpop.f32.mrb[0].mxu0
        %v3278 = vadd.f32 0.0, %v3277
        %v3279 = vpop.f32.mrb[0].mxu0
        %v3280 = vadd.f32 0.0, %v3279
        %3281 = vdwg.mxu0
        %v3282 = vand.u32 %v3183, 4294901760
        %v3283 = vsub.f32 %v3183, %v3282
        %v3284 = vand.u32 %v3283, 4294901760
        %v3285 = vsub.f32 %v3283, %v3284
        %v3286 = vand.u32 %v3285, 4294901760
        %3287 = vmatprep.subr.mxu0 %v3286
        %v3288 = vand.u32 %v3179, 4294901760
        %v3289 = vsub.f32 %v3179, %v3288
        %v3290 = vand.u32 %v3289, 4294901760
        %v3291 = vsub.f32 %v3289, %v3290
        %v3292 = vand.u32 %v3291, 4294901760
        %3293 = vmatpush1.msra.mxu0 %v3292
        %v3294 = vand.u32 %v3184, 4294901760
        %v3295 = vsub.f32 %v3184, %v3294
        %v3296 = vand.u32 %v3295, 4294901760
        %v3297 = vsub.f32 %v3295, %v3296
        %v3298 = vand.u32 %v3297, 4294901760
        %3299 = vmatprep.subr.mxu0 %v3298
        %v3300 = vand.u32 %v3180, 4294901760
        %v3301 = vsub.f32 %v3180, %v3300
        %v3302 = vand.u32 %v3301, 4294901760
        %v3303 = vsub.f32 %v3301, %v3302
        %v3304 = vand.u32 %v3303, 4294901760
        %3305 = vmatpush1.msra.mxu0 %v3304
        %v3306 = vand.u32 %v3185, 4294901760
        %v3307 = vsub.f32 %v3185, %v3306
        %v3308 = vand.u32 %v3307, 4294901760
        %v3309 = vsub.f32 %v3307, %v3308
        %v3310 = vand.u32 %v3309, 4294901760
        %3311 = vmatprep.subr.mxu0 %v3310
        %v3312 = vand.u32 %v3181, 4294901760
        %v3313 = vsub.f32 %v3181, %v3312
        %v3314 = vand.u32 %v3313, 4294901760
        %v3315 = vsub.f32 %v3313, %v3314
        %v3316 = vand.u32 %v3315, 4294901760
        %3317 = vmatpush1.msra.mxu0 %v3316
        %v3318 = vand.u32 %v3196, 4294901760
        %v3319 = vsub.f32 %v3196, %v3318
        %v3320 = vand.u32 %v3319, 4294901760
        %v3321 = vsub.f32 %v3319, %v3320
        %v3322 = vand.u32 %v3321, 4294901760
        %3323 = vmatprep.subr.mxu0 %v3322
        %v3324 = vand.u32 %v3193, 4294901760
        %v3325 = vsub.f32 %v3193, %v3324
        %v3326 = vand.u32 %v3325, 4294901760
        %v3327 = vsub.f32 %v3325, %v3326
        %v3328 = vand.u32 %v3327, 4294901760
        %3329 = vmatpush1.msra.mxu0 %v3328
        %3330 = vmatprep.subr.mxu0 0.0
        %3331 = vmatpush1.msra.mxu0 0.0
        %3332 = vmatprep.subr.mxu0 0.0
        %3333 = vmatpush1.msra.mxu0 0.0
        %3334 = vmatprep.subr.mxu0 0.0
        %3335 = vmatpush1.msra.mxu0 0.0
        %3336 = vmatprep.subr.mxu0 0.0
        %3337 = vmatpush1.msra.mxu0 0.0
        %3338 = vmatprep.subr.mxu0 0.0
        %3339 = vmatpush1.msra.mxu0 0.0
        %3340 = vmatprep.subr.mxu0 0.0
        %3341 = vmatpush1.msra.mxu0 0.0
        %3342 = vmatprep.subr.mxu0 0.0
        %3343 = vmatpush1.msra.mxu0 0.0
        %3344 = vmatprep.subr.mxu0 0.0
        %3345 = vmatpush1.msra.mxu0 0.0
        %3346 = vmatprep.subr.mxu0 0.0
        %3347 = vmatpush1.msra.mxu0 0.0
        %3348 = vmatprep.subr.mxu0 0.0
        %3349 = vmatpush1.msra.mxu0 0.0
        %3350 = vmatprep.subr.mxu0 0.0
        %3351 = vmatpush1.msra.mxu0 0.0
        %3352 = vmatprep.subr.mxu0 0.0
        %3353 = vmatpush1.msra.mxu0 0.0
        %3354 = vmatprep.subr.mxu0 0.0
        %3355 = vmatpush1.msra.mxu0 0.0
        %3356 = vmatprep.subr.mxu0 0.0
        %3357 = vmatpush1.msra.mxu0 0.0
        %3358 = vmatprep.subr.mxu0 0.0
        %3359 = vmatpush1.msra.mxu0 0.0
        %3360 = vmatprep.subr.mxu0 0.0
        %3361 = vmatpush1.msra.mxu0 0.0
        %3362 = vmatprep.subr.mxu0 0.0
        %3363 = vmatpush1.msra.mxu0 0.0
        %3364 = vmatprep.subr.mxu0 0.0
        %3365 = vmatpush1.msra.mxu0 0.0
        %3366 = vmatprep.subr.mxu0 0.0
        %3367 = vmatpush1.msra.mxu0 0.0
        %3368 = vmatprep.subr.mxu0 0.0
        %3369 = vmatpush1.msra.mxu0 0.0
        %3370 = vmatprep.subr.mxu0 0.0
        %3371 = vmatpush1.msra.mxu0 0.0
        %3372 = vmatprep.subr.mxu0 0.0
        %3373 = vmatpush1.msra.mxu0 0.0
        %3374 = vmatprep.subr.mxu0 0.0
        %3375 = vmatpush1.msra.mxu0 0.0
        %3376 = vmatprep.subr.mxu0 0.0
        %3377 = vmatpush1.msra.mxu0 0.0
        %3378 = vmatprep.subr.mxu0 0.0
        %3379 = vmatpush1.msra.mxu0 0.0
        %3380 = vmatprep.subr.mxu0 0.0
        %3381 = vmatpush1.msra.mxu0 0.0
        %3382 = vmatprep.subr.mxu0 0.0
        %3383 = vmatpush1.msra.mxu0 0.0
        %3384 = vmatprep.subr.mxu0 0.0
        %3385 = vmatpush1.msra.mxu0 0.0
        %3386 = vmatprep.mubr.f32.mxu0 0.0
        %v3387 = vand.u32 %v3190, 4294901760
        %3388 = vmatmul.mubr.f32.gmra.mrb[0].mxu0 %v3387
        %v3389 = vpop.f32.mrb[0].mxu0
        %v3390 = vadd.f32 %v3278, %v3389
        %v3391 = vpop.f32.mrb[0].mxu0
        %v3392 = vadd.f32 %v3280, %v3391
        %3393 = vdwg.mxu0
        %v3394 = vand.u32 %v3183, 4294901760
        %v3395 = vsub.f32 %v3183, %v3394
        %3396 = vmatprep.subr.mxu0 %v3395
        %v3397 = vand.u32 %v3179, 4294901760
        %v3398 = vsub.f32 %v3179, %v3397
        %3399 = vmatpush1.msra.mxu0 %v3398
        %v3400 = vand.u32 %v3184, 4294901760
        %v3401 = vsub.f32 %v3184, %v3400
        %3402 = vmatprep.subr.mxu0 %v3401
        %v3403 = vand.u32 %v3180, 4294901760
        %v3404 = vsub.f32 %v3180, %v3403
        %3405 = vmatpush1.msra.mxu0 %v3404
        %v3406 = vand.u32 %v3185, 4294901760
        %v3407 = vsub.f32 %v3185, %v3406
        %3408 = vmatprep.subr.mxu0 %v3407
        %v3409 = vand.u32 %v3181, 4294901760
        %v3410 = vsub.f32 %v3181, %v3409
        %3411 = vmatpush1.msra.mxu0 %v3410
        %v3412 = vand.u32 %v3196, 4294901760
        %v3413 = vsub.f32 %v3196, %v3412
        %3414 = vmatprep.subr.mxu0 %v3413
        %v3415 = vand.u32 %v3193, 4294901760
        %v3416 = vsub.f32 %v3193, %v3415
        %3417 = vmatpush1.msra.mxu0 %v3416
        %3418 = vmatprep.subr.mxu0 0.0
        %3419 = vmatpush1.msra.mxu0 0.0
        %3420 = vmatprep.subr.mxu0 0.0
        %3421 = vmatpush1.msra.mxu0 0.0
        %3422 = vmatprep.subr.mxu0 0.0
        %3423 = vmatpush1.msra.mxu0 0.0
        %3424 = vmatprep.subr.mxu0 0.0
        %3425 = vmatpush1.msra.mxu0 0.0
        %3426 = vmatprep.subr.mxu0 0.0
        %3427 = vmatpush1.msra.mxu0 0.0
        %3428 = vmatprep.subr.mxu0 0.0
        %3429 = vmatpush1.msra.mxu0 0.0
        %3430 = vmatprep.subr.mxu0 0.0
        %3431 = vmatpush1.msra.mxu0 0.0
        %3432 = vmatprep.subr.mxu0 0.0
        %3433 = vmatpush1.msra.mxu0 0.0
        %3434 = vmatprep.subr.mxu0 0.0
        %3435 = vmatpush1.msra.mxu0 0.0
        %3436 = vmatprep.subr.mxu0 0.0
        %3437 = vmatpush1.msra.mxu0 0.0
        %3438 = vmatprep.subr.mxu0 0.0
        %3439 = vmatpush1.msra.mxu0 0.0
        %3440 = vmatprep.subr.mxu0 0.0
        %3441 = vmatpush1.msra.mxu0 0.0
        %3442 = vmatprep.subr.mxu0 0.0
        %3443 = vmatpush1.msra.mxu0 0.0
        %3444 = vmatprep.subr.mxu0 0.0
        %3445 = vmatpush1.msra.mxu0 0.0
        %3446 = vmatprep.subr.mxu0 0.0
        %3447 = vmatpush1.msra.mxu0 0.0
        %3448 = vmatprep.subr.mxu0 0.0
        %3449 = vmatpush1.msra.mxu0 0.0
        %3450 = vmatprep.subr.mxu0 0.0
        %3451 = vmatpush1.msra.mxu0 0.0
        %3452 = vmatprep.subr.mxu0 0.0
        %3453 = vmatpush1.msra.mxu0 0.0
        %3454 = vmatprep.subr.mxu0 0.0
        %3455 = vmatpush1.msra.mxu0 0.0
        %3456 = vmatprep.subr.mxu0 0.0
        %3457 = vmatpush1.msra.mxu0 0.0
        %3458 = vmatprep.subr.mxu0 0.0
        %3459 = vmatpush1.msra.mxu0 0.0
        %3460 = vmatprep.subr.mxu0 0.0
        %3461 = vmatpush1.msra.mxu0 0.0
        %3462 = vmatprep.subr.mxu0 0.0
        %3463 = vmatpush1.msra.mxu0 0.0
        %3464 = vmatprep.subr.mxu0 0.0
        %3465 = vmatpush1.msra.mxu0 0.0
        %3466 = vmatprep.subr.mxu0 0.0
        %3467 = vmatpush1.msra.mxu0 0.0
        %3468 = vmatprep.subr.mxu0 0.0
        %3469 = vmatpush1.msra.mxu0 0.0
        %3470 = vmatprep.subr.mxu0 0.0
        %3471 = vmatpush1.msra.mxu0 0.0
        %3472 = vmatprep.subr.mxu0 0.0
        %3473 = vmatpush1.msra.mxu0 0.0
        %3474 = vmatprep.mubr.f32.mxu0 0.0
        %v3475 = vand.u32 %v3190, 4294901760
        %v3476 = vsub.f32 %v3190, %v3475
        %3477 = vmatmul.mubr.f32.gmra.mrb[0].mxu0 %v3476
        %v3478 = vpop.f32.mrb[0].mxu0
        %v3479 = vadd.f32 %v3390, %v3478
        %v3480 = vpop.f32.mrb[0].mxu0
        %v3481 = vadd.f32 %v3392, %v3480
        %3482 = vdwg.mxu0
        %v3483 = vand.u32 %v3183, 4294901760
        %3484 = vmatprep.subr.mxu0 %v3483
        %v3485 = vand.u32 %v3179, 4294901760
        %3486 = vmatpush1.msra.mxu0 %v3485
        %v3487 = vand.u32 %v3184, 4294901760
        %3488 = vmatprep.subr.mxu0 %v3487
        %v3489 = vand.u32 %v3180, 4294901760
        %3490 = vmatpush1.msra.mxu0 %v3489
        %v3491 = vand.u32 %v3185, 4294901760
        %3492 = vmatprep.subr.mxu0 %v3491
        %v3493 = vand.u32 %v3181, 4294901760
        %3494 = vmatpush1.msra.mxu0 %v3493
        %v3495 = vand.u32 %v3196, 4294901760
        %3496 = vmatprep.subr.mxu0 %v3495
        %v3497 = vand.u32 %v3193, 4294901760
        %3498 = vmatpush1.msra.mxu0 %v3497
        %3499 = vmatprep.subr.mxu0 0.0
        %3500 = vmatpush1.msra.mxu0 0.0
        %3501 = vmatprep.subr.mxu0 0.0
        %3502 = vmatpush1.msra.mxu0 0.0
        %3503 = vmatprep.subr.mxu0 0.0
        %3504 = vmatpush1.msra.mxu0 0.0
        %3505 = vmatprep.subr.mxu0 0.0
        %3506 = vmatpush1.msra.mxu0 0.0
        %3507 = vmatprep.subr.mxu0 0.0
        %3508 = vmatpush1.msra.mxu0 0.0
        %3509 = vmatprep.subr.mxu0 0.0
        %3510 = vmatpush1.msra.mxu0 0.0
        %3511 = vmatprep.subr.mxu0 0.0
        %3512 = vmatpush1.msra.mxu0 0.0
        %3513 = vmatprep.subr.mxu0 0.0
        %3514 = vmatpush1.msra.mxu0 0.0
        %3515 = vmatprep.subr.mxu0 0.0
        %3516 = vmatpush1.msra.mxu0 0.0
        %3517 = vmatprep.subr.mxu0 0.0
        %3518 = vmatpush1.msra.mxu0 0.0
        %3519 = vmatprep.subr.mxu0 0.0
        %3520 = vmatpush1.msra.mxu0 0.0
        %3521 = vmatprep.subr.mxu0 0.0
        %3522 = vmatpush1.msra.mxu0 0.0
        %3523 = vmatprep.subr.mxu0 0.0
        %3524 = vmatpush1.msra.mxu0 0.0
        %3525 = vmatprep.subr.mxu0 0.0
        %3526 = vmatpush1.msra.mxu0 0.0
        %3527 = vmatprep.subr.mxu0 0.0
        %3528 = vmatpush1.msra.mxu0 0.0
        %3529 = vmatprep.subr.mxu0 0.0
        %3530 = vmatpush1.msra.mxu0 0.0
        %3531 = vmatprep.subr.mxu0 0.0
        %3532 = vmatpush1.msra.mxu0 0.0
        %3533 = vmatprep.subr.mxu0 0.0
        %3534 = vmatpush1.msra.mxu0 0.0
        %3535 = vmatprep.subr.mxu0 0.0
        %3536 = vmatpush1.msra.mxu0 0.0
        %3537 = vmatprep.subr.mxu0 0.0
        %3538 = vmatpush1.msra.mxu0 0.0
        %3539 = vmatprep.subr.mxu0 0.0
        %3540 = vmatpush1.msra.mxu0 0.0
        %3541 = vmatprep.subr.mxu0 0.0
        %3542 = vmatpush1.msra.mxu0 0.0
        %3543 = vmatprep.subr.mxu0 0.0
        %3544 = vmatpush1.msra.mxu0 0.0
        %3545 = vmatprep.subr.mxu0 0.0
        %3546 = vmatpush1.msra.mxu0 0.0
        %3547 = vmatprep.subr.mxu0 0.0
        %3548 = vmatpush1.msra.mxu0 0.0
        %3549 = vmatprep.subr.mxu0 0.0
        %3550 = vmatpush1.msra.mxu0 0.0
        %3551 = vmatprep.subr.mxu0 0.0
        %3552 = vmatpush1.msra.mxu0 0.0
        %3553 = vmatprep.subr.mxu0 0.0
        %3554 = vmatpush1.msra.mxu0 0.0
        %3555 = vmatprep.mubr.f32.mxu0 0.0
        %v3556 = vand.u32 %v3190, 4294901760
        %v3557 = vsub.f32 %v3190, %v3556
        %v3558 = vand.u32 %v3557, 4294901760
        %3559 = vmatmul.mubr.f32.gmra.mrb[0].mxu0 %v3558
        %v3560 = vpop.f32.mrb[0].mxu0
        %v3561 = vadd.f32 %v3479, %v3560
        %v3562 = vpop.f32.mrb[0].mxu0
        %v3563 = vadd.f32 %v3481, %v3562
        %3564 = vdwg.mxu0
        %v3565 = vand.u32 %v3183, 4294901760
        %v3566 = vsub.f32 %v3183, %v3565
        %v3567 = vand.u32 %v3566, 4294901760
        %3568 = vmatprep.subr.mxu0 %v3567
        %v3569 = vand.u32 %v3179, 4294901760
        %v3570 = vsub.f32 %v3179, %v3569
        %v3571 = vand.u32 %v3570, 4294901760
        %3572 = vmatpush1.msra.mxu0 %v3571
        %v3573 = vand.u32 %v3184, 4294901760
        %v3574 = vsub.f32 %v3184, %v3573
        %v3575 = vand.u32 %v3574, 4294901760
        %3576 = vmatprep.subr.mxu0 %v3575
        %v3577 = vand.u32 %v3180, 4294901760
        %v3578 = vsub.f32 %v3180, %v3577
        %v3579 = vand.u32 %v3578, 4294901760
        %3580 = vmatpush1.msra.mxu0 %v3579
        %v3581 = vand.u32 %v3185, 4294901760
        %v3582 = vsub.f32 %v3185, %v3581
        %v3583 = vand.u32 %v3582, 4294901760
        %3584 = vmatprep.subr.mxu0 %v3583
        %v3585 = vand.u32 %v3181, 4294901760
        %v3586 = vsub.f32 %v3181, %v3585
        %v3587 = vand.u32 %v3586, 4294901760
        %3588 = vmatpush1.msra.mxu0 %v3587
        %v3589 = vand.u32 %v3196, 4294901760
        %v3590 = vsub.f32 %v3196, %v3589
        %v3591 = vand.u32 %v3590, 4294901760
        %3592 = vmatprep.subr.mxu0 %v3591
        %v3593 = vand.u32 %v3193, 4294901760
        %v3594 = vsub.f32 %v3193, %v3593
        %v3595 = vand.u32 %v3594, 4294901760
        %3596 = vmatpush1.msra.mxu0 %v3595
        %3597 = vmatprep.subr.mxu0 0.0
        %3598 = vmatpush1.msra.mxu0 0.0
        %3599 = vmatprep.subr.mxu0 0.0
        %3600 = vmatpush1.msra.mxu0 0.0
        %3601 = vmatprep.subr.mxu0 0.0
        %3602 = vmatpush1.msra.mxu0 0.0
        %3603 = vmatprep.subr.mxu0 0.0
        %3604 = vmatpush1.msra.mxu0 0.0
        %3605 = vmatprep.subr.mxu0 0.0
        %3606 = vmatpush1.msra.mxu0 0.0
        %3607 = vmatprep.subr.mxu0 0.0
        %3608 = vmatpush1.msra.mxu0 0.0
        %3609 = vmatprep.subr.mxu0 0.0
        %3610 = vmatpush1.msra.mxu0 0.0
        %3611 = vmatprep.subr.mxu0 0.0
        %3612 = vmatpush1.msra.mxu0 0.0
        %3613 = vmatprep.subr.mxu0 0.0
        %3614 = vmatpush1.msra.mxu0 0.0
        %3615 = vmatprep.subr.mxu0 0.0
        %3616 = vmatpush1.msra.mxu0 0.0
        %3617 = vmatprep.subr.mxu0 0.0
        %3618 = vmatpush1.msra.mxu0 0.0
        %3619 = vmatprep.subr.mxu0 0.0
        %3620 = vmatpush1.msra.mxu0 0.0
        %3621 = vmatprep.subr.mxu0 0.0
        %3622 = vmatpush1.msra.mxu0 0.0
        %3623 = vmatprep.subr.mxu0 0.0
        %3624 = vmatpush1.msra.mxu0 0.0
        %3625 = vmatprep.subr.mxu0 0.0
        %3626 = vmatpush1.msra.mxu0 0.0
        %3627 = vmatprep.subr.mxu0 0.0
        %3628 = vmatpush1.msra.mxu0 0.0
        %3629 = vmatprep.subr.mxu0 0.0
        %3630 = vmatpush1.msra.mxu0 0.0
        %3631 = vmatprep.subr.mxu0 0.0
        %3632 = vmatpush1.msra.mxu0 0.0
        %3633 = vmatprep.subr.mxu0 0.0
        %3634 = vmatpush1.msra.mxu0 0.0
        %3635 = vmatprep.subr.mxu0 0.0
        %3636 = vmatpush1.msra.mxu0 0.0
        %3637 = vmatprep.subr.mxu0 0.0
        %3638 = vmatpush1.msra.mxu0 0.0
        %3639 = vmatprep.subr.mxu0 0.0
        %3640 = vmatpush1.msra.mxu0 0.0
        %3641 = vmatprep.subr.mxu0 0.0
        %3642 = vmatpush1.msra.mxu0 0.0
        %3643 = vmatprep.subr.mxu0 0.0
        %3644 = vmatpush1.msra.mxu0 0.0
        %3645 = vmatprep.subr.mxu0 0.0
        %3646 = vmatpush1.msra.mxu0 0.0
        %3647 = vmatprep.subr.mxu0 0.0
        %3648 = vmatpush1.msra.mxu0 0.0
        %3649 = vmatprep.subr.mxu0 0.0
        %3650 = vmatpush1.msra.mxu0 0.0
        %3651 = vmatprep.subr.mxu0 0.0
        %3652 = vmatpush1.msra.mxu0 0.0
        %3653 = vmatprep.mubr.f32.mxu0 0.0
        %v3654 = vand.u32 %v3190, 4294901760
        %3655 = vmatmul.mubr.f32.gmra.mrb[0].mxu0 %v3654
        %v3656 = vpop.f32.mrb[0].mxu0
        %v3657 = vadd.f32 %v3561, %v3656
        %v3658 = vpop.f32.mrb[0].mxu0
        %v3659 = vadd.f32 %v3563, %v3658
        %3660 = vdwg.mxu0
        %v3661 = vand.u32 %v3183, 4294901760
        %3662 = vmatprep.subr.mxu0 %v3661
        %v3663 = vand.u32 %v3179, 4294901760
        %3664 = vmatpush1.msra.mxu0 %v3663
        %v3665 = vand.u32 %v3184, 4294901760
        %3666 = vmatprep.subr.mxu0 %v3665
        %v3667 = vand.u32 %v3180, 4294901760
        %3668 = vmatpush1.msra.mxu0 %v3667
        %v3669 = vand.u32 %v3185, 4294901760
        %3670 = vmatprep.subr.mxu0 %v3669
        %v3671 = vand.u32 %v3181, 4294901760
        %3672 = vmatpush1.msra.mxu0 %v3671
        %v3673 = vand.u32 %v3196, 4294901760
        %3674 = vmatprep.subr.mxu0 %v3673
        %v3675 = vand.u32 %v3193, 4294901760
        %3676 = vmatpush1.msra.mxu0 %v3675
        %3677 = vmatprep.subr.mxu0 0.0
        %3678 = vmatpush1.msra.mxu0 0.0
        %3679 = vmatprep.subr.mxu0 0.0
        %3680 = vmatpush1.msra.mxu0 0.0
        %3681 = vmatprep.subr.mxu0 0.0
        %3682 = vmatpush1.msra.mxu0 0.0
        %3683 = vmatprep.subr.mxu0 0.0
        %3684 = vmatpush1.msra.mxu0 0.0
        %3685 = vmatprep.subr.mxu0 0.0
        %3686 = vmatpush1.msra.mxu0 0.0
        %3687 = vmatprep.subr.mxu0 0.0
        %3688 = vmatpush1.msra.mxu0 0.0
        %3689 = vmatprep.subr.mxu0 0.0
        %3690 = vmatpush1.msra.mxu0 0.0
        %3691 = vmatprep.subr.mxu0 0.0
        %3692 = vmatpush1.msra.mxu0 0.0
        %3693 = vmatprep.subr.mxu0 0.0
        %3694 = vmatpush1.msra.mxu0 0.0
        %3695 = vmatprep.subr.mxu0 0.0
        %3696 = vmatpush1.msra.mxu0 0.0
        %3697 = vmatprep.subr.mxu0 0.0
        %3698 = vmatpush1.msra.mxu0 0.0
        %3699 = vmatprep.subr.mxu0 0.0
        %3700 = vmatpush1.msra.mxu0 0.0
        %3701 = vmatprep.subr.mxu0 0.0
        %3702 = vmatpush1.msra.mxu0 0.0
        %3703 = vmatprep.subr.mxu0 0.0
        %3704 = vmatpush1.msra.mxu0 0.0
        %3705 = vmatprep.subr.mxu0 0.0
        %3706 = vmatpush1.msra.mxu0 0.0
        %3707 = vmatprep.subr.mxu0 0.0
        %3708 = vmatpush1.msra.mxu0 0.0
        %3709 = vmatprep.subr.mxu0 0.0
        %3710 = vmatpush1.msra.mxu0 0.0
        %3711 = vmatprep.subr.mxu0 0.0
        %3712 = vmatpush1.msra.mxu0 0.0
        %3713 = vmatprep.subr.mxu0 0.0
        %3714 = vmatpush1.msra.mxu0 0.0
        %3715 = vmatprep.subr.mxu0 0.0
        %3716 = vmatpush1.msra.mxu0 0.0
        %3717 = vmatprep.subr.mxu0 0.0
        %3718 = vmatpush1.msra.mxu0 0.0
        %3719 = vmatprep.subr.mxu0 0.0
        %3720 = vmatpush1.msra.mxu0 0.0
        %3721 = vmatprep.subr.mxu0 0.0
        %3722 = vmatpush1.msra.mxu0 0.0
        %3723 = vmatprep.subr.mxu0 0.0
        %3724 = vmatpush1.msra.mxu0 0.0
        %3725 = vmatprep.subr.mxu0 0.0
        %3726 = vmatpush1.msra.mxu0 0.0
        %3727 = vmatprep.subr.mxu0 0.0
        %3728 = vmatpush1.msra.mxu0 0.0
        %3729 = vmatprep.subr.mxu0 0.0
        %3730 = vmatpush1.msra.mxu0 0.0
        %3731 = vmatprep.subr.mxu0 0.0
        %3732 = vmatpush1.msra.mxu0 0.0
        %3733 = vmatprep.mubr.f32.mxu0 0.0
        %v3734 = vand.u32 %v3190, 4294901760
        %3735 = vmatmul.mubr.f32.gmra.mrb[0].mxu0 %v3734
        %v3736 = vpop.f32.mrb[0].mxu0
        %v3737 = vadd.f32 %v3657, %v3736
        %v3738 = vpop.f32.mrb[0].mxu0
        %v3739 = vadd.f32 %v3659, %v3738
        %3740 = vdwg.mxu0
        %s3741 = scalar_lea.vmem %s2, 5
        %v3742 = vld [vmem:[%s3741] ss:$8 sm:$0x3]
        %v3744 = vlaneseq
        %v3745 = vshrl.u32 %v3744, 7
        %v3746 = vsub.s32 0, %v3745
        %v3747 = vrot.slane %v3742, %v3746
        %v3748 = vlaneseq
        %v3749 = vshrl.u32 %v3748, 7
        %v3750 = vsub.s32 1, %v3749
        %v3751 = vrot.slane %v3742, %v3750
        %v3754 = vmul.f32 %v3737, %v3747
        %v3755 = vmul.f32 %v3739, %v3751
        %v3756 = vadd.f32 %v3160, %v3754
        %v3757 = vadd.f32 %v3161, %v3755
        %3758 = vrot.lane.b32.xlu0 %v212, 113
        %v3759 = vpop.permute.xlu0 %3758
        %3760 = vrot.lane.b32.xlu0 %v214, 113
        %v3761 = vpop.permute.xlu0 %3760
        %3762 = vrot.lane.b32.xlu0 %v216, 113
        %v3763 = vpop.permute.xlu0 %3762
        %3764 = vrot.lane.b32.xlu0 %v218, 113
        %v3765 = vpop.permute.xlu0 %3764
        %3766 = vrot.lane.b32.xlu0 %v213, 113
        %v3767 = vpop.permute.xlu0 %3766
        %3768 = vrot.lane.b32.xlu0 %v215, 113
        %v3769 = vpop.permute.xlu0 %3768
        %3770 = vrot.lane.b32.xlu0 %v217, 113
        %v3771 = vpop.permute.xlu0 %3770
        %3772 = vrot.lane.b32.xlu0 %v219, 113
        %v3773 = vpop.permute.xlu0 %3772
        %vm3774 = vcmp.lt.s32.totalorder %v237, 113
        %v3775 = vsel %vm3774, %v3759, %v3767
        %v3776 = vsel %vm3774, %v3761, %v3769
        %v3777 = vsel %vm3774, %v3763, %v3771
        %v3778 = vsel %vm3774, %v3765, %v3773
        %v3779 = vsel %vm3774, %v3767, %v3759
        %v3780 = vsel %vm3774, %v3769, %v3761
        %v3781 = vsel %vm3774, %v3771, %v3763
        %v3782 = vsel %vm3774, %v3773, %v3765
        %s3783 = scalar_lea.vmem %s1, 48
        %v3784 = vld [vmem:[%s3783] sm:$0xff]
        %v3786 = vsel %vm248, %v3784, 0
        %v3789 = vsel %vm252, %v3778, 0
        %v3792 = vsel %vm252, %v3782, 0
        %v3794 = vand.u32 %v3779, 4294901760
        %3795 = vmatprep.subr.mxu0 %v3794
        %v3796 = vand.u32 %v3775, 4294901760
        %3797 = vmatpush1.msra.mxu0 %v3796
        %v3798 = vand.u32 %v3780, 4294901760
        %3799 = vmatprep.subr.mxu0 %v3798
        %v3800 = vand.u32 %v3776, 4294901760
        %3801 = vmatpush1.msra.mxu0 %v3800
        %v3802 = vand.u32 %v3781, 4294901760
        %3803 = vmatprep.subr.mxu0 %v3802
        %v3804 = vand.u32 %v3777, 4294901760
        %3805 = vmatpush1.msra.mxu0 %v3804
        %v3806 = vand.u32 %v3792, 4294901760
        %3807 = vmatprep.subr.mxu0 %v3806
        %v3808 = vand.u32 %v3789, 4294901760
        %3809 = vmatpush1.msra.mxu0 %v3808
        %3810 = vmatprep.subr.mxu0 0.0
        %3811 = vmatpush1.msra.mxu0 0.0
        %3812 = vmatprep.subr.mxu0 0.0
        %3813 = vmatpush1.msra.mxu0 0.0
        %3814 = vmatprep.subr.mxu0 0.0
        %3815 = vmatpush1.msra.mxu0 0.0
        %3816 = vmatprep.subr.mxu0 0.0
        %3817 = vmatpush1.msra.mxu0 0.0
        %3818 = vmatprep.subr.mxu0 0.0
        %3819 = vmatpush1.msra.mxu0 0.0
        %3820 = vmatprep.subr.mxu0 0.0
        %3821 = vmatpush1.msra.mxu0 0.0
        %3822 = vmatprep.subr.mxu0 0.0
        %3823 = vmatpush1.msra.mxu0 0.0
        %3824 = vmatprep.subr.mxu0 0.0
        %3825 = vmatpush1.msra.mxu0 0.0
        %3826 = vmatprep.subr.mxu0 0.0
        %3827 = vmatpush1.msra.mxu0 0.0
        %3828 = vmatprep.subr.mxu0 0.0
        %3829 = vmatpush1.msra.mxu0 0.0
        %3830 = vmatprep.subr.mxu0 0.0
        %3831 = vmatpush1.msra.mxu0 0.0
        %3832 = vmatprep.subr.mxu0 0.0
        %3833 = vmatpush1.msra.mxu0 0.0
        %3834 = vmatprep.subr.mxu0 0.0
        %3835 = vmatpush1.msra.mxu0 0.0
        %3836 = vmatprep.subr.mxu0 0.0
        %3837 = vmatpush1.msra.mxu0 0.0
        %3838 = vmatprep.subr.mxu0 0.0
        %3839 = vmatpush1.msra.mxu0 0.0
        %3840 = vmatprep.subr.mxu0 0.0
        %3841 = vmatpush1.msra.mxu0 0.0
        %3842 = vmatprep.subr.mxu0 0.0
        %3843 = vmatpush1.msra.mxu0 0.0
        %3844 = vmatprep.subr.mxu0 0.0
        %3845 = vmatpush1.msra.mxu0 0.0
        %3846 = vmatprep.subr.mxu0 0.0
        %3847 = vmatpush1.msra.mxu0 0.0
        %3848 = vmatprep.subr.mxu0 0.0
        %3849 = vmatpush1.msra.mxu0 0.0
        %3850 = vmatprep.subr.mxu0 0.0
        %3851 = vmatpush1.msra.mxu0 0.0
        %3852 = vmatprep.subr.mxu0 0.0
        %3853 = vmatpush1.msra.mxu0 0.0
        %3854 = vmatprep.subr.mxu0 0.0
        %3855 = vmatpush1.msra.mxu0 0.0
        %3856 = vmatprep.subr.mxu0 0.0
        %3857 = vmatpush1.msra.mxu0 0.0
        %3858 = vmatprep.subr.mxu0 0.0
        %3859 = vmatpush1.msra.mxu0 0.0
        %3860 = vmatprep.subr.mxu0 0.0
        %3861 = vmatpush1.msra.mxu0 0.0
        %3862 = vmatprep.subr.mxu0 0.0
        %3863 = vmatpush1.msra.mxu0 0.0
        %3864 = vmatprep.subr.mxu0 0.0
        %3865 = vmatpush1.msra.mxu0 0.0
        %3866 = vmatprep.mubr.f32.mxu0 0.0
        %v3867 = vand.u32 %v3786, 4294901760
        %v3868 = vsub.f32 %v3786, %v3867
        %v3869 = vand.u32 %v3868, 4294901760
        %v3870 = vsub.f32 %v3868, %v3869
        %v3871 = vand.u32 %v3870, 4294901760
        %3872 = vmatmul.mubr.f32.gmra.mrb[0].mxu0 %v3871
        %v3873 = vpop.f32.mrb[0].mxu0
        %v3874 = vadd.f32 0.0, %v3873
        %v3875 = vpop.f32.mrb[0].mxu0
        %v3876 = vadd.f32 0.0, %v3875
        %3877 = vdwg.mxu0
        %v3878 = vand.u32 %v3779, 4294901760
        %v3879 = vsub.f32 %v3779, %v3878
        %v3880 = vand.u32 %v3879, 4294901760
        %v3881 = vsub.f32 %v3879, %v3880
        %v3882 = vand.u32 %v3881, 4294901760
        %3883 = vmatprep.subr.mxu0 %v3882
        %v3884 = vand.u32 %v3775, 4294901760
        %v3885 = vsub.f32 %v3775, %v3884
        %v3886 = vand.u32 %v3885, 4294901760
        %v3887 = vsub.f32 %v3885, %v3886
        %v3888 = vand.u32 %v3887, 4294901760
        %3889 = vmatpush1.msra.mxu0 %v3888
        %v3890 = vand.u32 %v3780, 4294901760
        %v3891 = vsub.f32 %v3780, %v3890
        %v3892 = vand.u32 %v3891, 4294901760
        %v3893 = vsub.f32 %v3891, %v3892
        %v3894 = vand.u32 %v3893, 4294901760
        %3895 = vmatprep.subr.mxu0 %v3894
        %v3896 = vand.u32 %v3776, 4294901760
        %v3897 = vsub.f32 %v3776, %v3896
        %v3898 = vand.u32 %v3897, 4294901760
        %v3899 = vsub.f32 %v3897, %v3898
        %v3900 = vand.u32 %v3899, 4294901760
        %3901 = vmatpush1.msra.mxu0 %v3900
        %v3902 = vand.u32 %v3781, 4294901760
        %v3903 = vsub.f32 %v3781, %v3902
        %v3904 = vand.u32 %v3903, 4294901760
        %v3905 = vsub.f32 %v3903, %v3904
        %v3906 = vand.u32 %v3905, 4294901760
        %3907 = vmatprep.subr.mxu0 %v3906
        %v3908 = vand.u32 %v3777, 4294901760
        %v3909 = vsub.f32 %v3777, %v3908
        %v3910 = vand.u32 %v3909, 4294901760
        %v3911 = vsub.f32 %v3909, %v3910
        %v3912 = vand.u32 %v3911, 4294901760
        %3913 = vmatpush1.msra.mxu0 %v3912
        %v3914 = vand.u32 %v3792, 4294901760
        %v3915 = vsub.f32 %v3792, %v3914
        %v3916 = vand.u32 %v3915, 4294901760
        %v3917 = vsub.f32 %v3915, %v3916
        %v3918 = vand.u32 %v3917, 4294901760
        %3919 = vmatprep.subr.mxu0 %v3918
        %v3920 = vand.u32 %v3789, 4294901760
        %v3921 = vsub.f32 %v3789, %v3920
        %v3922 = vand.u32 %v3921, 4294901760
        %v3923 = vsub.f32 %v3921, %v3922
        %v3924 = vand.u32 %v3923, 4294901760
        %3925 = vmatpush1.msra.mxu0 %v3924
        %3926 = vmatprep.subr.mxu0 0.0
        %3927 = vmatpush1.msra.mxu0 0.0
        %3928 = vmatprep.subr.mxu0 0.0
        %3929 = vmatpush1.msra.mxu0 0.0
        %3930 = vmatprep.subr.mxu0 0.0
        %3931 = vmatpush1.msra.mxu0 0.0
        %3932 = vmatprep.subr.mxu0 0.0
        %3933 = vmatpush1.msra.mxu0 0.0
        %3934 = vmatprep.subr.mxu0 0.0
        %3935 = vmatpush1.msra.mxu0 0.0
        %3936 = vmatprep.subr.mxu0 0.0
        %3937 = vmatpush1.msra.mxu0 0.0
        %3938 = vmatprep.subr.mxu0 0.0
        %3939 = vmatpush1.msra.mxu0 0.0
        %3940 = vmatprep.subr.mxu0 0.0
        %3941 = vmatpush1.msra.mxu0 0.0
        %3942 = vmatprep.subr.mxu0 0.0
        %3943 = vmatpush1.msra.mxu0 0.0
        %3944 = vmatprep.subr.mxu0 0.0
        %3945 = vmatpush1.msra.mxu0 0.0
        %3946 = vmatprep.subr.mxu0 0.0
        %3947 = vmatpush1.msra.mxu0 0.0
        %3948 = vmatprep.subr.mxu0 0.0
        %3949 = vmatpush1.msra.mxu0 0.0
        %3950 = vmatprep.subr.mxu0 0.0
        %3951 = vmatpush1.msra.mxu0 0.0
        %3952 = vmatprep.subr.mxu0 0.0
        %3953 = vmatpush1.msra.mxu0 0.0
        %3954 = vmatprep.subr.mxu0 0.0
        %3955 = vmatpush1.msra.mxu0 0.0
        %3956 = vmatprep.subr.mxu0 0.0
        %3957 = vmatpush1.msra.mxu0 0.0
        %3958 = vmatprep.subr.mxu0 0.0
        %3959 = vmatpush1.msra.mxu0 0.0
        %3960 = vmatprep.subr.mxu0 0.0
        %3961 = vmatpush1.msra.mxu0 0.0
        %3962 = vmatprep.subr.mxu0 0.0
        %3963 = vmatpush1.msra.mxu0 0.0
        %3964 = vmatprep.subr.mxu0 0.0
        %3965 = vmatpush1.msra.mxu0 0.0
        %3966 = vmatprep.subr.mxu0 0.0
        %3967 = vmatpush1.msra.mxu0 0.0
        %3968 = vmatprep.subr.mxu0 0.0
        %3969 = vmatpush1.msra.mxu0 0.0
        %3970 = vmatprep.subr.mxu0 0.0
        %3971 = vmatpush1.msra.mxu0 0.0
        %3972 = vmatprep.subr.mxu0 0.0
        %3973 = vmatpush1.msra.mxu0 0.0
        %3974 = vmatprep.subr.mxu0 0.0
        %3975 = vmatpush1.msra.mxu0 0.0
        %3976 = vmatprep.subr.mxu0 0.0
        %3977 = vmatpush1.msra.mxu0 0.0
        %3978 = vmatprep.subr.mxu0 0.0
        %3979 = vmatpush1.msra.mxu0 0.0
        %3980 = vmatprep.subr.mxu0 0.0
        %3981 = vmatpush1.msra.mxu0 0.0
        %3982 = vmatprep.mubr.f32.mxu0 0.0
        %v3983 = vand.u32 %v3786, 4294901760
        %3984 = vmatmul.mubr.f32.gmra.mrb[0].mxu0 %v3983
        %v3985 = vpop.f32.mrb[0].mxu0
        %v3986 = vadd.f32 %v3874, %v3985
        %v3987 = vpop.f32.mrb[0].mxu0
        %v3988 = vadd.f32 %v3876, %v3987
        %3989 = vdwg.mxu0
        %v3990 = vand.u32 %v3779, 4294901760
        %v3991 = vsub.f32 %v3779, %v3990
        %3992 = vmatprep.subr.mxu0 %v3991
        %v3993 = vand.u32 %v3775, 4294901760
        %v3994 = vsub.f32 %v3775, %v3993
        %3995 = vmatpush1.msra.mxu0 %v3994
        %v3996 = vand.u32 %v3780, 4294901760
        %v3997 = vsub.f32 %v3780, %v3996
        %3998 = vmatprep.subr.mxu0 %v3997
        %v3999 = vand.u32 %v3776, 4294901760
        %v4000 = vsub.f32 %v3776, %v3999
        %4001 = vmatpush1.msra.mxu0 %v4000
        %v4002 = vand.u32 %v3781, 4294901760
        %v4003 = vsub.f32 %v3781, %v4002
        %4004 = vmatprep.subr.mxu0 %v4003
        %v4005 = vand.u32 %v3777, 4294901760
        %v4006 = vsub.f32 %v3777, %v4005
        %4007 = vmatpush1.msra.mxu0 %v4006
        %v4008 = vand.u32 %v3792, 4294901760
        %v4009 = vsub.f32 %v3792, %v4008
        %4010 = vmatprep.subr.mxu0 %v4009
        %v4011 = vand.u32 %v3789, 4294901760
        %v4012 = vsub.f32 %v3789, %v4011
        %4013 = vmatpush1.msra.mxu0 %v4012
        %4014 = vmatprep.subr.mxu0 0.0
        %4015 = vmatpush1.msra.mxu0 0.0
        %4016 = vmatprep.subr.mxu0 0.0
        %4017 = vmatpush1.msra.mxu0 0.0
        %4018 = vmatprep.subr.mxu0 0.0
        %4019 = vmatpush1.msra.mxu0 0.0
        %4020 = vmatprep.subr.mxu0 0.0
        %4021 = vmatpush1.msra.mxu0 0.0
        %4022 = vmatprep.subr.mxu0 0.0
        %4023 = vmatpush1.msra.mxu0 0.0
        %4024 = vmatprep.subr.mxu0 0.0
        %4025 = vmatpush1.msra.mxu0 0.0
        %4026 = vmatprep.subr.mxu0 0.0
        %4027 = vmatpush1.msra.mxu0 0.0
        %4028 = vmatprep.subr.mxu0 0.0
        %4029 = vmatpush1.msra.mxu0 0.0
        %4030 = vmatprep.subr.mxu0 0.0
        %4031 = vmatpush1.msra.mxu0 0.0
        %4032 = vmatprep.subr.mxu0 0.0
        %4033 = vmatpush1.msra.mxu0 0.0
        %4034 = vmatprep.subr.mxu0 0.0
        %4035 = vmatpush1.msra.mxu0 0.0
        %4036 = vmatprep.subr.mxu0 0.0
        %4037 = vmatpush1.msra.mxu0 0.0
        %4038 = vmatprep.subr.mxu0 0.0
        %4039 = vmatpush1.msra.mxu0 0.0
        %4040 = vmatprep.subr.mxu0 0.0
        %4041 = vmatpush1.msra.mxu0 0.0
        %4042 = vmatprep.subr.mxu0 0.0
        %4043 = vmatpush1.msra.mxu0 0.0
        %4044 = vmatprep.subr.mxu0 0.0
        %4045 = vmatpush1.msra.mxu0 0.0
        %4046 = vmatprep.subr.mxu0 0.0
        %4047 = vmatpush1.msra.mxu0 0.0
        %4048 = vmatprep.subr.mxu0 0.0
        %4049 = vmatpush1.msra.mxu0 0.0
        %4050 = vmatprep.subr.mxu0 0.0
        %4051 = vmatpush1.msra.mxu0 0.0
        %4052 = vmatprep.subr.mxu0 0.0
        %4053 = vmatpush1.msra.mxu0 0.0
        %4054 = vmatprep.subr.mxu0 0.0
        %4055 = vmatpush1.msra.mxu0 0.0
        %4056 = vmatprep.subr.mxu0 0.0
        %4057 = vmatpush1.msra.mxu0 0.0
        %4058 = vmatprep.subr.mxu0 0.0
        %4059 = vmatpush1.msra.mxu0 0.0
        %4060 = vmatprep.subr.mxu0 0.0
        %4061 = vmatpush1.msra.mxu0 0.0
        %4062 = vmatprep.subr.mxu0 0.0
        %4063 = vmatpush1.msra.mxu0 0.0
        %4064 = vmatprep.subr.mxu0 0.0
        %4065 = vmatpush1.msra.mxu0 0.0
        %4066 = vmatprep.subr.mxu0 0.0
        %4067 = vmatpush1.msra.mxu0 0.0
        %4068 = vmatprep.subr.mxu0 0.0
        %4069 = vmatpush1.msra.mxu0 0.0
        %4070 = vmatprep.mubr.f32.mxu0 0.0
        %v4071 = vand.u32 %v3786, 4294901760
        %v4072 = vsub.f32 %v3786, %v4071
        %4073 = vmatmul.mubr.f32.gmra.mrb[0].mxu0 %v4072
        %v4074 = vpop.f32.mrb[0].mxu0
        %v4075 = vadd.f32 %v3986, %v4074
        %v4076 = vpop.f32.mrb[0].mxu0
        %v4077 = vadd.f32 %v3988, %v4076
        %4078 = vdwg.mxu0
        %v4079 = vand.u32 %v3779, 4294901760
        %4080 = vmatprep.subr.mxu0 %v4079
        %v4081 = vand.u32 %v3775, 4294901760
        %4082 = vmatpush1.msra.mxu0 %v4081
        %v4083 = vand.u32 %v3780, 4294901760
        %4084 = vmatprep.subr.mxu0 %v4083
        %v4085 = vand.u32 %v3776, 4294901760
        %4086 = vmatpush1.msra.mxu0 %v4085
        %v4087 = vand.u32 %v3781, 4294901760
        %4088 = vmatprep.subr.mxu0 %v4087
        %v4089 = vand.u32 %v3777, 4294901760
        %4090 = vmatpush1.msra.mxu0 %v4089
        %v4091 = vand.u32 %v3792, 4294901760
        %4092 = vmatprep.subr.mxu0 %v4091
        %v4093 = vand.u32 %v3789, 4294901760
        %4094 = vmatpush1.msra.mxu0 %v4093
        %4095 = vmatprep.subr.mxu0 0.0
        %4096 = vmatpush1.msra.mxu0 0.0
        %4097 = vmatprep.subr.mxu0 0.0
        %4098 = vmatpush1.msra.mxu0 0.0
        %4099 = vmatprep.subr.mxu0 0.0
        %4100 = vmatpush1.msra.mxu0 0.0
        %4101 = vmatprep.subr.mxu0 0.0
        %4102 = vmatpush1.msra.mxu0 0.0
        %4103 = vmatprep.subr.mxu0 0.0
        %4104 = vmatpush1.msra.mxu0 0.0
        %4105 = vmatprep.subr.mxu0 0.0
        %4106 = vmatpush1.msra.mxu0 0.0
        %4107 = vmatprep.subr.mxu0 0.0
        %4108 = vmatpush1.msra.mxu0 0.0
        %4109 = vmatprep.subr.mxu0 0.0
        %4110 = vmatpush1.msra.mxu0 0.0
        %4111 = vmatprep.subr.mxu0 0.0
        %4112 = vmatpush1.msra.mxu0 0.0
        %4113 = vmatprep.subr.mxu0 0.0
        %4114 = vmatpush1.msra.mxu0 0.0
        %4115 = vmatprep.subr.mxu0 0.0
        %4116 = vmatpush1.msra.mxu0 0.0
        %4117 = vmatprep.subr.mxu0 0.0
        %4118 = vmatpush1.msra.mxu0 0.0
        %4119 = vmatprep.subr.mxu0 0.0
        %4120 = vmatpush1.msra.mxu0 0.0
        %4121 = vmatprep.subr.mxu0 0.0
        %4122 = vmatpush1.msra.mxu0 0.0
        %4123 = vmatprep.subr.mxu0 0.0
        %4124 = vmatpush1.msra.mxu0 0.0
        %4125 = vmatprep.subr.mxu0 0.0
        %4126 = vmatpush1.msra.mxu0 0.0
        %4127 = vmatprep.subr.mxu0 0.0
        %4128 = vmatpush1.msra.mxu0 0.0
        %4129 = vmatprep.subr.mxu0 0.0
        %4130 = vmatpush1.msra.mxu0 0.0
        %4131 = vmatprep.subr.mxu0 0.0
        %4132 = vmatpush1.msra.mxu0 0.0
        %4133 = vmatprep.subr.mxu0 0.0
        %4134 = vmatpush1.msra.mxu0 0.0
        %4135 = vmatprep.subr.mxu0 0.0
        %4136 = vmatpush1.msra.mxu0 0.0
        %4137 = vmatprep.subr.mxu0 0.0
        %4138 = vmatpush1.msra.mxu0 0.0
        %4139 = vmatprep.subr.mxu0 0.0
        %4140 = vmatpush1.msra.mxu0 0.0
        %4141 = vmatprep.subr.mxu0 0.0
        %4142 = vmatpush1.msra.mxu0 0.0
        %4143 = vmatprep.subr.mxu0 0.0
        %4144 = vmatpush1.msra.mxu0 0.0
        %4145 = vmatprep.subr.mxu0 0.0
        %4146 = vmatpush1.msra.mxu0 0.0
        %4147 = vmatprep.subr.mxu0 0.0
        %4148 = vmatpush1.msra.mxu0 0.0
        %4149 = vmatprep.subr.mxu0 0.0
        %4150 = vmatpush1.msra.mxu0 0.0
        %4151 = vmatprep.mubr.f32.mxu0 0.0
        %v4152 = vand.u32 %v3786, 4294901760
        %v4153 = vsub.f32 %v3786, %v4152
        %v4154 = vand.u32 %v4153, 4294901760
        %4155 = vmatmul.mubr.f32.gmra.mrb[0].mxu0 %v4154
        %v4156 = vpop.f32.mrb[0].mxu0
        %v4157 = vadd.f32 %v4075, %v4156
        %v4158 = vpop.f32.mrb[0].mxu0
        %v4159 = vadd.f32 %v4077, %v4158
        %4160 = vdwg.mxu0
        %v4161 = vand.u32 %v3779, 4294901760
        %v4162 = vsub.f32 %v3779, %v4161
        %v4163 = vand.u32 %v4162, 4294901760
        %4164 = vmatprep.subr.mxu0 %v4163
        %v4165 = vand.u32 %v3775, 4294901760
        %v4166 = vsub.f32 %v3775, %v4165
        %v4167 = vand.u32 %v4166, 4294901760
        %4168 = vmatpush1.msra.mxu0 %v4167
        %v4169 = vand.u32 %v3780, 4294901760
        %v4170 = vsub.f32 %v3780, %v4169
        %v4171 = vand.u32 %v4170, 4294901760
        %4172 = vmatprep.subr.mxu0 %v4171
        %v4173 = vand.u32 %v3776, 4294901760
        %v4174 = vsub.f32 %v3776, %v4173
        %v4175 = vand.u32 %v4174, 4294901760
        %4176 = vmatpush1.msra.mxu0 %v4175
        %v4177 = vand.u32 %v3781, 4294901760
        %v4178 = vsub.f32 %v3781, %v4177
        %v4179 = vand.u32 %v4178, 4294901760
        %4180 = vmatprep.subr.mxu0 %v4179
        %v4181 = vand.u32 %v3777, 4294901760
        %v4182 = vsub.f32 %v3777, %v4181
        %v4183 = vand.u32 %v4182, 4294901760
        %4184 = vmatpush1.msra.mxu0 %v4183
        %v4185 = vand.u32 %v3792, 4294901760
        %v4186 = vsub.f32 %v3792, %v4185
        %v4187 = vand.u32 %v4186, 4294901760
        %4188 = vmatprep.subr.mxu0 %v4187
        %v4189 = vand.u32 %v3789, 4294901760
        %v4190 = vsub.f32 %v3789, %v4189
        %v4191 = vand.u32 %v4190, 4294901760
        %4192 = vmatpush1.msra.mxu0 %v4191
        %4193 = vmatprep.subr.mxu0 0.0
        %4194 = vmatpush1.msra.mxu0 0.0
        %4195 = vmatprep.subr.mxu0 0.0
        %4196 = vmatpush1.msra.mxu0 0.0
        %4197 = vmatprep.subr.mxu0 0.0
        %4198 = vmatpush1.msra.mxu0 0.0
        %4199 = vmatprep.subr.mxu0 0.0
        %4200 = vmatpush1.msra.mxu0 0.0
        %4201 = vmatprep.subr.mxu0 0.0
        %4202 = vmatpush1.msra.mxu0 0.0
        %4203 = vmatprep.subr.mxu0 0.0
        %4204 = vmatpush1.msra.mxu0 0.0
        %4205 = vmatprep.subr.mxu0 0.0
        %4206 = vmatpush1.msra.mxu0 0.0
        %4207 = vmatprep.subr.mxu0 0.0
        %4208 = vmatpush1.msra.mxu0 0.0
        %4209 = vmatprep.subr.mxu0 0.0
        %4210 = vmatpush1.msra.mxu0 0.0
        %4211 = vmatprep.subr.mxu0 0.0
        %4212 = vmatpush1.msra.mxu0 0.0
        %4213 = vmatprep.subr.mxu0 0.0
        %4214 = vmatpush1.msra.mxu0 0.0
        %4215 = vmatprep.subr.mxu0 0.0
        %4216 = vmatpush1.msra.mxu0 0.0
        %4217 = vmatprep.subr.mxu0 0.0
        %4218 = vmatpush1.msra.mxu0 0.0
        %4219 = vmatprep.subr.mxu0 0.0
        %4220 = vmatpush1.msra.mxu0 0.0
        %4221 = vmatprep.subr.mxu0 0.0
        %4222 = vmatpush1.msra.mxu0 0.0
        %4223 = vmatprep.subr.mxu0 0.0
        %4224 = vmatpush1.msra.mxu0 0.0
        %4225 = vmatprep.subr.mxu0 0.0
        %4226 = vmatpush1.msra.mxu0 0.0
        %4227 = vmatprep.subr.mxu0 0.0
        %4228 = vmatpush1.msra.mxu0 0.0
        %4229 = vmatprep.subr.mxu0 0.0
        %4230 = vmatpush1.msra.mxu0 0.0
        %4231 = vmatprep.subr.mxu0 0.0
        %4232 = vmatpush1.msra.mxu0 0.0
        %4233 = vmatprep.subr.mxu0 0.0
        %4234 = vmatpush1.msra.mxu0 0.0
        %4235 = vmatprep.subr.mxu0 0.0
        %4236 = vmatpush1.msra.mxu0 0.0
        %4237 = vmatprep.subr.mxu0 0.0
        %4238 = vmatpush1.msra.mxu0 0.0
        %4239 = vmatprep.subr.mxu0 0.0
        %4240 = vmatpush1.msra.mxu0 0.0
        %4241 = vmatprep.subr.mxu0 0.0
        %4242 = vmatpush1.msra.mxu0 0.0
        %4243 = vmatprep.subr.mxu0 0.0
        %4244 = vmatpush1.msra.mxu0 0.0
        %4245 = vmatprep.subr.mxu0 0.0
        %4246 = vmatpush1.msra.mxu0 0.0
        %4247 = vmatprep.subr.mxu0 0.0
        %4248 = vmatpush1.msra.mxu0 0.0
        %4249 = vmatprep.mubr.f32.mxu0 0.0
        %v4250 = vand.u32 %v3786, 4294901760
        %4251 = vmatmul.mubr.f32.gmra.mrb[0].mxu0 %v4250
        %v4252 = vpop.f32.mrb[0].mxu0
        %v4253 = vadd.f32 %v4157, %v4252
        %v4254 = vpop.f32.mrb[0].mxu0
        %v4255 = vadd.f32 %v4159, %v4254
        %4256 = vdwg.mxu0
        %v4257 = vand.u32 %v3779, 4294901760
        %4258 = vmatprep.subr.mxu0 %v4257
        %v4259 = vand.u32 %v3775, 4294901760
        %4260 = vmatpush1.msra.mxu0 %v4259
        %v4261 = vand.u32 %v3780, 4294901760
        %4262 = vmatprep.subr.mxu0 %v4261
        %v4263 = vand.u32 %v3776, 4294901760
        %4264 = vmatpush1.msra.mxu0 %v4263
        %v4265 = vand.u32 %v3781, 4294901760
        %4266 = vmatprep.subr.mxu0 %v4265
        %v4267 = vand.u32 %v3777, 4294901760
        %4268 = vmatpush1.msra.mxu0 %v4267
        %v4269 = vand.u32 %v3792, 4294901760
        %4270 = vmatprep.subr.mxu0 %v4269
        %v4271 = vand.u32 %v3789, 4294901760
        %4272 = vmatpush1.msra.mxu0 %v4271
        %4273 = vmatprep.subr.mxu0 0.0
        %4274 = vmatpush1.msra.mxu0 0.0
        %4275 = vmatprep.subr.mxu0 0.0
        %4276 = vmatpush1.msra.mxu0 0.0
        %4277 = vmatprep.subr.mxu0 0.0
        %4278 = vmatpush1.msra.mxu0 0.0
        %4279 = vmatprep.subr.mxu0 0.0
        %4280 = vmatpush1.msra.mxu0 0.0
        %4281 = vmatprep.subr.mxu0 0.0
        %4282 = vmatpush1.msra.mxu0 0.0
        %4283 = vmatprep.subr.mxu0 0.0
        %4284 = vmatpush1.msra.mxu0 0.0
        %4285 = vmatprep.subr.mxu0 0.0
        %4286 = vmatpush1.msra.mxu0 0.0
        %4287 = vmatprep.subr.mxu0 0.0
        %4288 = vmatpush1.msra.mxu0 0.0
        %4289 = vmatprep.subr.mxu0 0.0
        %4290 = vmatpush1.msra.mxu0 0.0
        %4291 = vmatprep.subr.mxu0 0.0
        %4292 = vmatpush1.msra.mxu0 0.0
        %4293 = vmatprep.subr.mxu0 0.0
        %4294 = vmatpush1.msra.mxu0 0.0
        %4295 = vmatprep.subr.mxu0 0.0
        %4296 = vmatpush1.msra.mxu0 0.0
        %4297 = vmatprep.subr.mxu0 0.0
        %4298 = vmatpush1.msra.mxu0 0.0
        %4299 = vmatprep.subr.mxu0 0.0
        %4300 = vmatpush1.msra.mxu0 0.0
        %4301 = vmatprep.subr.mxu0 0.0
        %4302 = vmatpush1.msra.mxu0 0.0
        %4303 = vmatprep.subr.mxu0 0.0
        %4304 = vmatpush1.msra.mxu0 0.0
        %4305 = vmatprep.subr.mxu0 0.0
        %4306 = vmatpush1.msra.mxu0 0.0
        %4307 = vmatprep.subr.mxu0 0.0
        %4308 = vmatpush1.msra.mxu0 0.0
        %4309 = vmatprep.subr.mxu0 0.0
        %4310 = vmatpush1.msra.mxu0 0.0
        %4311 = vmatprep.subr.mxu0 0.0
        %4312 = vmatpush1.msra.mxu0 0.0
        %4313 = vmatprep.subr.mxu0 0.0
        %4314 = vmatpush1.msra.mxu0 0.0
        %4315 = vmatprep.subr.mxu0 0.0
        %4316 = vmatpush1.msra.mxu0 0.0
        %4317 = vmatprep.subr.mxu0 0.0
        %4318 = vmatpush1.msra.mxu0 0.0
        %4319 = vmatprep.subr.mxu0 0.0
        %4320 = vmatpush1.msra.mxu0 0.0
        %4321 = vmatprep.subr.mxu0 0.0
        %4322 = vmatpush1.msra.mxu0 0.0
        %4323 = vmatprep.subr.mxu0 0.0
        %4324 = vmatpush1.msra.mxu0 0.0
        %4325 = vmatprep.subr.mxu0 0.0
        %4326 = vmatpush1.msra.mxu0 0.0
        %4327 = vmatprep.subr.mxu0 0.0
        %4328 = vmatpush1.msra.mxu0 0.0
        %4329 = vmatprep.mubr.f32.mxu0 0.0
        %v4330 = vand.u32 %v3786, 4294901760
        %4331 = vmatmul.mubr.f32.gmra.mrb[0].mxu0 %v4330
        %v4332 = vpop.f32.mrb[0].mxu0
        %v4333 = vadd.f32 %v4253, %v4332
        %v4334 = vpop.f32.mrb[0].mxu0
        %v4335 = vadd.f32 %v4255, %v4334
        %4336 = vdwg.mxu0
        %s4337 = scalar_lea.vmem %s2, 6
        %v4338 = vld [vmem:[%s4337] ss:$8 sm:$0x3]
        %v4340 = vlaneseq
        %v4341 = vshrl.u32 %v4340, 7
        %v4342 = vsub.s32 0, %v4341
        %v4343 = vrot.slane %v4338, %v4342
        %v4344 = vlaneseq
        %v4345 = vshrl.u32 %v4344, 7
        %v4346 = vsub.s32 1, %v4345
        %v4347 = vrot.slane %v4338, %v4346
        %v4350 = vmul.f32 %v4333, %v4343
        %v4351 = vmul.f32 %v4335, %v4347
        %v4352 = vadd.f32 %v3756, %v4350
        %v4353 = vadd.f32 %v3757, %v4351
        %4354 = vrot.lane.b32.xlu0 %v212, 112
        %v4355 = vpop.permute.xlu0 %4354
        %4356 = vrot.lane.b32.xlu0 %v214, 112
        %v4357 = vpop.permute.xlu0 %4356
        %4358 = vrot.lane.b32.xlu0 %v216, 112
        %v4359 = vpop.permute.xlu0 %4358
        %4360 = vrot.lane.b32.xlu0 %v218, 112
        %v4361 = vpop.permute.xlu0 %4360
        %4362 = vrot.lane.b32.xlu0 %v213, 112
        %v4363 = vpop.permute.xlu0 %4362
        %4364 = vrot.lane.b32.xlu0 %v215, 112
        %v4365 = vpop.permute.xlu0 %4364
        %4366 = vrot.lane.b32.xlu0 %v217, 112
        %v4367 = vpop.permute.xlu0 %4366
        %4368 = vrot.lane.b32.xlu0 %v219, 112
        %v4369 = vpop.permute.xlu0 %4368
        %vm4370 = vcmp.lt.s32.totalorder %v237, 112
        %v4371 = vsel %vm4370, %v4355, %v4363
        %v4372 = vsel %vm4370, %v4357, %v4365
        %v4373 = vsel %vm4370, %v4359, %v4367
        %v4374 = vsel %vm4370, %v4361, %v4369
        %v4375 = vsel %vm4370, %v4363, %v4355
        %v4376 = vsel %vm4370, %v4365, %v4357
        %v4377 = vsel %vm4370, %v4367, %v4359
        %v4378 = vsel %vm4370, %v4369, %v4361
        %s4379 = scalar_lea.vmem %s1, 56
        %v4380 = vld [vmem:[%s4379] sm:$0xff]
        %v4382 = vsel %vm248, %v4380, 0
        %v4385 = vsel %vm252, %v4374, 0
        %v4388 = vsel %vm252, %v4378, 0
        %v4390 = vand.u32 %v4375, 4294901760
        %4391 = vmatprep.subr.mxu0 %v4390
        %v4392 = vand.u32 %v4371, 4294901760
        %4393 = vmatpush1.msra.mxu0 %v4392
        %v4394 = vand.u32 %v4376, 4294901760
        %4395 = vmatprep.subr.mxu0 %v4394
        %v4396 = vand.u32 %v4372, 4294901760
        %4397 = vmatpush1.msra.mxu0 %v4396
        %v4398 = vand.u32 %v4377, 4294901760
        %4399 = vmatprep.subr.mxu0 %v4398
        %v4400 = vand.u32 %v4373, 4294901760
        %4401 = vmatpush1.msra.mxu0 %v4400
        %v4402 = vand.u32 %v4388, 4294901760
        %4403 = vmatprep.subr.mxu0 %v4402
        %v4404 = vand.u32 %v4385, 4294901760
        %4405 = vmatpush1.msra.mxu0 %v4404
        %4406 = vmatprep.subr.mxu0 0.0
        %4407 = vmatpush1.msra.mxu0 0.0
        %4408 = vmatprep.subr.mxu0 0.0
        %4409 = vmatpush1.msra.mxu0 0.0
        %4410 = vmatprep.subr.mxu0 0.0
        %4411 = vmatpush1.msra.mxu0 0.0
        %4412 = vmatprep.subr.mxu0 0.0
        %4413 = vmatpush1.msra.mxu0 0.0
        %4414 = vmatprep.subr.mxu0 0.0
        %4415 = vmatpush1.msra.mxu0 0.0
        %4416 = vmatprep.subr.mxu0 0.0
        %4417 = vmatpush1.msra.mxu0 0.0
        %4418 = vmatprep.subr.mxu0 0.0
        %4419 = vmatpush1.msra.mxu0 0.0
        %4420 = vmatprep.subr.mxu0 0.0
        %4421 = vmatpush1.msra.mxu0 0.0
        %4422 = vmatprep.subr.mxu0 0.0
        %4423 = vmatpush1.msra.mxu0 0.0
        %4424 = vmatprep.subr.mxu0 0.0
        %4425 = vmatpush1.msra.mxu0 0.0
        %4426 = vmatprep.subr.mxu0 0.0
        %4427 = vmatpush1.msra.mxu0 0.0
        %4428 = vmatprep.subr.mxu0 0.0
        %4429 = vmatpush1.msra.mxu0 0.0
        %4430 = vmatprep.subr.mxu0 0.0
        %4431 = vmatpush1.msra.mxu0 0.0
        %4432 = vmatprep.subr.mxu0 0.0
        %4433 = vmatpush1.msra.mxu0 0.0
        %4434 = vmatprep.subr.mxu0 0.0
        %4435 = vmatpush1.msra.mxu0 0.0
        %4436 = vmatprep.subr.mxu0 0.0
        %4437 = vmatpush1.msra.mxu0 0.0
        %4438 = vmatprep.subr.mxu0 0.0
        %4439 = vmatpush1.msra.mxu0 0.0
        %4440 = vmatprep.subr.mxu0 0.0
        %4441 = vmatpush1.msra.mxu0 0.0
        %4442 = vmatprep.subr.mxu0 0.0
        %4443 = vmatpush1.msra.mxu0 0.0
        %4444 = vmatprep.subr.mxu0 0.0
        %4445 = vmatpush1.msra.mxu0 0.0
        %4446 = vmatprep.subr.mxu0 0.0
        %4447 = vmatpush1.msra.mxu0 0.0
        %4448 = vmatprep.subr.mxu0 0.0
        %4449 = vmatpush1.msra.mxu0 0.0
        %4450 = vmatprep.subr.mxu0 0.0
        %4451 = vmatpush1.msra.mxu0 0.0
        %4452 = vmatprep.subr.mxu0 0.0
        %4453 = vmatpush1.msra.mxu0 0.0
        %4454 = vmatprep.subr.mxu0 0.0
        %4455 = vmatpush1.msra.mxu0 0.0
        %4456 = vmatprep.subr.mxu0 0.0
        %4457 = vmatpush1.msra.mxu0 0.0
        %4458 = vmatprep.subr.mxu0 0.0
        %4459 = vmatpush1.msra.mxu0 0.0
        %4460 = vmatprep.subr.mxu0 0.0
        %4461 = vmatpush1.msra.mxu0 0.0
        %4462 = vmatprep.mubr.f32.mxu0 0.0
        %v4463 = vand.u32 %v4382, 4294901760
        %v4464 = vsub.f32 %v4382, %v4463
        %v4465 = vand.u32 %v4464, 4294901760
        %v4466 = vsub.f32 %v4464, %v4465
        %v4467 = vand.u32 %v4466, 4294901760
        %4468 = vmatmul.mubr.f32.gmra.mrb[0].mxu0 %v4467
        %v4469 = vpop.f32.mrb[0].mxu0
        %v4470 = vadd.f32 0.0, %v4469
        %v4471 = vpop.f32.mrb[0].mxu0
        %v4472 = vadd.f32 0.0, %v4471
        %4473 = vdwg.mxu0
        %v4474 = vand.u32 %v4375, 4294901760
        %v4475 = vsub.f32 %v4375, %v4474
        %v4476 = vand.u32 %v4475, 4294901760
        %v4477 = vsub.f32 %v4475, %v4476
        %v4478 = vand.u32 %v4477, 4294901760
        %4479 = vmatprep.subr.mxu0 %v4478
        %v4480 = vand.u32 %v4371, 4294901760
        %v4481 = vsub.f32 %v4371, %v4480
        %v4482 = vand.u32 %v4481, 4294901760
        %v4483 = vsub.f32 %v4481, %v4482
        %v4484 = vand.u32 %v4483, 4294901760
        %4485 = vmatpush1.msra.mxu0 %v4484
        %v4486 = vand.u32 %v4376, 4294901760
        %v4487 = vsub.f32 %v4376, %v4486
        %v4488 = vand.u32 %v4487, 4294901760
        %v4489 = vsub.f32 %v4487, %v4488
        %v4490 = vand.u32 %v4489, 4294901760
        %4491 = vmatprep.subr.mxu0 %v4490
        %v4492 = vand.u32 %v4372, 4294901760
        %v4493 = vsub.f32 %v4372, %v4492
        %v4494 = vand.u32 %v4493, 4294901760
        %v4495 = vsub.f32 %v4493, %v4494
        %v4496 = vand.u32 %v4495, 4294901760
        %4497 = vmatpush1.msra.mxu0 %v4496
        %v4498 = vand.u32 %v4377, 4294901760
        %v4499 = vsub.f32 %v4377, %v4498
        %v4500 = vand.u32 %v4499, 4294901760
        %v4501 = vsub.f32 %v4499, %v4500
        %v4502 = vand.u32 %v4501, 4294901760
        %4503 = vmatprep.subr.mxu0 %v4502
        %v4504 = vand.u32 %v4373, 4294901760
        %v4505 = vsub.f32 %v4373, %v4504
        %v4506 = vand.u32 %v4505, 4294901760
        %v4507 = vsub.f32 %v4505, %v4506
        %v4508 = vand.u32 %v4507, 4294901760
        %4509 = vmatpush1.msra.mxu0 %v4508
        %v4510 = vand.u32 %v4388, 4294901760
        %v4511 = vsub.f32 %v4388, %v4510
        %v4512 = vand.u32 %v4511, 4294901760
        %v4513 = vsub.f32 %v4511, %v4512
        %v4514 = vand.u32 %v4513, 4294901760
        %4515 = vmatprep.subr.mxu0 %v4514
        %v4516 = vand.u32 %v4385, 4294901760
        %v4517 = vsub.f32 %v4385, %v4516
        %v4518 = vand.u32 %v4517, 4294901760
        %v4519 = vsub.f32 %v4517, %v4518
        %v4520 = vand.u32 %v4519, 4294901760
        %4521 = vmatpush1.msra.mxu0 %v4520
        %4522 = vmatprep.subr.mxu0 0.0
        %4523 = vmatpush1.msra.mxu0 0.0
        %4524 = vmatprep.subr.mxu0 0.0
        %4525 = vmatpush1.msra.mxu0 0.0
        %4526 = vmatprep.subr.mxu0 0.0
        %4527 = vmatpush1.msra.mxu0 0.0
        %4528 = vmatprep.subr.mxu0 0.0
        %4529 = vmatpush1.msra.mxu0 0.0
        %4530 = vmatprep.subr.mxu0 0.0
        %4531 = vmatpush1.msra.mxu0 0.0
        %4532 = vmatprep.subr.mxu0 0.0
        %4533 = vmatpush1.msra.mxu0 0.0
        %4534 = vmatprep.subr.mxu0 0.0
        %4535 = vmatpush1.msra.mxu0 0.0
        %4536 = vmatprep.subr.mxu0 0.0
        %4537 = vmatpush1.msra.mxu0 0.0
        %4538 = vmatprep.subr.mxu0 0.0
        %4539 = vmatpush1.msra.mxu0 0.0
        %4540 = vmatprep.subr.mxu0 0.0
        %4541 = vmatpush1.msra.mxu0 0.0
        %4542 = vmatprep.subr.mxu0 0.0
        %4543 = vmatpush1.msra.mxu0 0.0
        %4544 = vmatprep.subr.mxu0 0.0
        %4545 = vmatpush1.msra.mxu0 0.0
        %4546 = vmatprep.subr.mxu0 0.0
        %4547 = vmatpush1.msra.mxu0 0.0
        %4548 = vmatprep.subr.mxu0 0.0
        %4549 = vmatpush1.msra.mxu0 0.0
        %4550 = vmatprep.subr.mxu0 0.0
        %4551 = vmatpush1.msra.mxu0 0.0
        %4552 = vmatprep.subr.mxu0 0.0
        %4553 = vmatpush1.msra.mxu0 0.0
        %4554 = vmatprep.subr.mxu0 0.0
        %4555 = vmatpush1.msra.mxu0 0.0
        %4556 = vmatprep.subr.mxu0 0.0
        %4557 = vmatpush1.msra.mxu0 0.0
        %4558 = vmatprep.subr.mxu0 0.0
        %4559 = vmatpush1.msra.mxu0 0.0
        %4560 = vmatprep.subr.mxu0 0.0
        %4561 = vmatpush1.msra.mxu0 0.0
        %4562 = vmatprep.subr.mxu0 0.0
        %4563 = vmatpush1.msra.mxu0 0.0
        %4564 = vmatprep.subr.mxu0 0.0
        %4565 = vmatpush1.msra.mxu0 0.0
        %4566 = vmatprep.subr.mxu0 0.0
        %4567 = vmatpush1.msra.mxu0 0.0
        %4568 = vmatprep.subr.mxu0 0.0
        %4569 = vmatpush1.msra.mxu0 0.0
        %4570 = vmatprep.subr.mxu0 0.0
        %4571 = vmatpush1.msra.mxu0 0.0
        %4572 = vmatprep.subr.mxu0 0.0
        %4573 = vmatpush1.msra.mxu0 0.0
        %4574 = vmatprep.subr.mxu0 0.0
        %4575 = vmatpush1.msra.mxu0 0.0
        %4576 = vmatprep.subr.mxu0 0.0
        %4577 = vmatpush1.msra.mxu0 0.0
        %4578 = vmatprep.mubr.f32.mxu0 0.0
        %v4579 = vand.u32 %v4382, 4294901760
        %4580 = vmatmul.mubr.f32.gmra.mrb[0].mxu0 %v4579
        %v4581 = vpop.f32.mrb[0].mxu0
        %v4582 = vadd.f32 %v4470, %v4581
        %v4583 = vpop.f32.mrb[0].mxu0
        %v4584 = vadd.f32 %v4472, %v4583
        %4585 = vdwg.mxu0
        %v4586 = vand.u32 %v4375, 4294901760
        %v4587 = vsub.f32 %v4375, %v4586
        %4588 = vmatprep.subr.mxu0 %v4587
        %v4589 = vand.u32 %v4371, 4294901760
        %v4590 = vsub.f32 %v4371, %v4589
        %4591 = vmatpush1.msra.mxu0 %v4590
        %v4592 = vand.u32 %v4376, 4294901760
        %v4593 = vsub.f32 %v4376, %v4592
        %4594 = vmatprep.subr.mxu0 %v4593
        %v4595 = vand.u32 %v4372, 4294901760
        %v4596 = vsub.f32 %v4372, %v4595
        %4597 = vmatpush1.msra.mxu0 %v4596
        %v4598 = vand.u32 %v4377, 4294901760
        %v4599 = vsub.f32 %v4377, %v4598
        %4600 = vmatprep.subr.mxu0 %v4599
        %v4601 = vand.u32 %v4373, 4294901760
        %v4602 = vsub.f32 %v4373, %v4601
        %4603 = vmatpush1.msra.mxu0 %v4602
        %v4604 = vand.u32 %v4388, 4294901760
        %v4605 = vsub.f32 %v4388, %v4604
        %4606 = vmatprep.subr.mxu0 %v4605
        %v4607 = vand.u32 %v4385, 4294901760
        %v4608 = vsub.f32 %v4385, %v4607
        %4609 = vmatpush1.msra.mxu0 %v4608
        %4610 = vmatprep.subr.mxu0 0.0
        %4611 = vmatpush1.msra.mxu0 0.0
        %4612 = vmatprep.subr.mxu0 0.0
        %4613 = vmatpush1.msra.mxu0 0.0
        %4614 = vmatprep.subr.mxu0 0.0
        %4615 = vmatpush1.msra.mxu0 0.0
        %4616 = vmatprep.subr.mxu0 0.0
        %4617 = vmatpush1.msra.mxu0 0.0
        %4618 = vmatprep.subr.mxu0 0.0
        %4619 = vmatpush1.msra.mxu0 0.0
        %4620 = vmatprep.subr.mxu0 0.0
        %4621 = vmatpush1.msra.mxu0 0.0
        %4622 = vmatprep.subr.mxu0 0.0
        %4623 = vmatpush1.msra.mxu0 0.0
        %4624 = vmatprep.subr.mxu0 0.0
        %4625 = vmatpush1.msra.mxu0 0.0
        %4626 = vmatprep.subr.mxu0 0.0
        %4627 = vmatpush1.msra.mxu0 0.0
        %4628 = vmatprep.subr.mxu0 0.0
        %4629 = vmatpush1.msra.mxu0 0.0
        %4630 = vmatprep.subr.mxu0 0.0
        %4631 = vmatpush1.msra.mxu0 0.0
        %4632 = vmatprep.subr.mxu0 0.0
        %4633 = vmatpush1.msra.mxu0 0.0
        %4634 = vmatprep.subr.mxu0 0.0
        %4635 = vmatpush1.msra.mxu0 0.0
        %4636 = vmatprep.subr.mxu0 0.0
        %4637 = vmatpush1.msra.mxu0 0.0
        %4638 = vmatprep.subr.mxu0 0.0
        %4639 = vmatpush1.msra.mxu0 0.0
        %4640 = vmatprep.subr.mxu0 0.0
        %4641 = vmatpush1.msra.mxu0 0.0
        %4642 = vmatprep.subr.mxu0 0.0
        %4643 = vmatpush1.msra.mxu0 0.0
        %4644 = vmatprep.subr.mxu0 0.0
        %4645 = vmatpush1.msra.mxu0 0.0
        %4646 = vmatprep.subr.mxu0 0.0
        %4647 = vmatpush1.msra.mxu0 0.0
        %4648 = vmatprep.subr.mxu0 0.0
        %4649 = vmatpush1.msra.mxu0 0.0
        %4650 = vmatprep.subr.mxu0 0.0
        %4651 = vmatpush1.msra.mxu0 0.0
        %4652 = vmatprep.subr.mxu0 0.0
        %4653 = vmatpush1.msra.mxu0 0.0
        %4654 = vmatprep.subr.mxu0 0.0
        %4655 = vmatpush1.msra.mxu0 0.0
        %4656 = vmatprep.subr.mxu0 0.0
        %4657 = vmatpush1.msra.mxu0 0.0
        %4658 = vmatprep.subr.mxu0 0.0
        %4659 = vmatpush1.msra.mxu0 0.0
        %4660 = vmatprep.subr.mxu0 0.0
        %4661 = vmatpush1.msra.mxu0 0.0
        %4662 = vmatprep.subr.mxu0 0.0
        %4663 = vmatpush1.msra.mxu0 0.0
        %4664 = vmatprep.subr.mxu0 0.0
        %4665 = vmatpush1.msra.mxu0 0.0
        %4666 = vmatprep.mubr.f32.mxu0 0.0
        %v4667 = vand.u32 %v4382, 4294901760
        %v4668 = vsub.f32 %v4382, %v4667
        %4669 = vmatmul.mubr.f32.gmra.mrb[0].mxu0 %v4668
        %v4670 = vpop.f32.mrb[0].mxu0
        %v4671 = vadd.f32 %v4582, %v4670
        %v4672 = vpop.f32.mrb[0].mxu0
        %v4673 = vadd.f32 %v4584, %v4672
        %4674 = vdwg.mxu0
        %v4675 = vand.u32 %v4375, 4294901760
        %4676 = vmatprep.subr.mxu0 %v4675
        %v4677 = vand.u32 %v4371, 4294901760
        %4678 = vmatpush1.msra.mxu0 %v4677
        %v4679 = vand.u32 %v4376, 4294901760
        %4680 = vmatprep.subr.mxu0 %v4679
        %v4681 = vand.u32 %v4372, 4294901760
        %4682 = vmatpush1.msra.mxu0 %v4681
        %v4683 = vand.u32 %v4377, 4294901760
        %4684 = vmatprep.subr.mxu0 %v4683
        %v4685 = vand.u32 %v4373, 4294901760
        %4686 = vmatpush1.msra.mxu0 %v4685
        %v4687 = vand.u32 %v4388, 4294901760
        %4688 = vmatprep.subr.mxu0 %v4687
        %v4689 = vand.u32 %v4385, 4294901760
        %4690 = vmatpush1.msra.mxu0 %v4689
        %4691 = vmatprep.subr.mxu0 0.0
        %4692 = vmatpush1.msra.mxu0 0.0
        %4693 = vmatprep.subr.mxu0 0.0
        %4694 = vmatpush1.msra.mxu0 0.0
        %4695 = vmatprep.subr.mxu0 0.0
        %4696 = vmatpush1.msra.mxu0 0.0
        %4697 = vmatprep.subr.mxu0 0.0
        %4698 = vmatpush1.msra.mxu0 0.0
        %4699 = vmatprep.subr.mxu0 0.0
        %4700 = vmatpush1.msra.mxu0 0.0
        %4701 = vmatprep.subr.mxu0 0.0
        %4702 = vmatpush1.msra.mxu0 0.0
        %4703 = vmatprep.subr.mxu0 0.0
        %4704 = vmatpush1.msra.mxu0 0.0
        %4705 = vmatprep.subr.mxu0 0.0
        %4706 = vmatpush1.msra.mxu0 0.0
        %4707 = vmatprep.subr.mxu0 0.0
        %4708 = vmatpush1.msra.mxu0 0.0
        %4709 = vmatprep.subr.mxu0 0.0
        %4710 = vmatpush1.msra.mxu0 0.0
        %4711 = vmatprep.subr.mxu0 0.0
        %4712 = vmatpush1.msra.mxu0 0.0
        %4713 = vmatprep.subr.mxu0 0.0
        %4714 = vmatpush1.msra.mxu0 0.0
        %4715 = vmatprep.subr.mxu0 0.0
        %4716 = vmatpush1.msra.mxu0 0.0
        %4717 = vmatprep.subr.mxu0 0.0
        %4718 = vmatpush1.msra.mxu0 0.0
        %4719 = vmatprep.subr.mxu0 0.0
        %4720 = vmatpush1.msra.mxu0 0.0
        %4721 = vmatprep.subr.mxu0 0.0
        %4722 = vmatpush1.msra.mxu0 0.0
        %4723 = vmatprep.subr.mxu0 0.0
        %4724 = vmatpush1.msra.mxu0 0.0
        %4725 = vmatprep.subr.mxu0 0.0
        %4726 = vmatpush1.msra.mxu0 0.0
        %4727 = vmatprep.subr.mxu0 0.0
        %4728 = vmatpush1.msra.mxu0 0.0
        %4729 = vmatprep.subr.mxu0 0.0
        %4730 = vmatpush1.msra.mxu0 0.0
        %4731 = vmatprep.subr.mxu0 0.0
        %4732 = vmatpush1.msra.mxu0 0.0
        %4733 = vmatprep.subr.mxu0 0.0
        %4734 = vmatpush1.msra.mxu0 0.0
        %4735 = vmatprep.subr.mxu0 0.0
        %4736 = vmatpush1.msra.mxu0 0.0
        %4737 = vmatprep.subr.mxu0 0.0
        %4738 = vmatpush1.msra.mxu0 0.0
        %4739 = vmatprep.subr.mxu0 0.0
        %4740 = vmatpush1.msra.mxu0 0.0
        %4741 = vmatprep.subr.mxu0 0.0
        %4742 = vmatpush1.msra.mxu0 0.0
        %4743 = vmatprep.subr.mxu0 0.0
        %4744 = vmatpush1.msra.mxu0 0.0
        %4745 = vmatprep.subr.mxu0 0.0
        %4746 = vmatpush1.msra.mxu0 0.0
        %4747 = vmatprep.mubr.f32.mxu0 0.0
        %v4748 = vand.u32 %v4382, 4294901760
        %v4749 = vsub.f32 %v4382, %v4748
        %v4750 = vand.u32 %v4749, 4294901760
        %4751 = vmatmul.mubr.f32.gmra.mrb[0].mxu0 %v4750
        %v4752 = vpop.f32.mrb[0].mxu0
        %v4753 = vadd.f32 %v4671, %v4752
        %v4754 = vpop.f32.mrb[0].mxu0
        %v4755 = vadd.f32 %v4673, %v4754
        %4756 = vdwg.mxu0
        %v4757 = vand.u32 %v4375, 4294901760
        %v4758 = vsub.f32 %v4375, %v4757
        %v4759 = vand.u32 %v4758, 4294901760
        %4760 = vmatprep.subr.mxu0 %v4759
        %v4761 = vand.u32 %v4371, 4294901760
        %v4762 = vsub.f32 %v4371, %v4761
        %v4763 = vand.u32 %v4762, 4294901760
        %4764 = vmatpush1.msra.mxu0 %v4763
        %v4765 = vand.u32 %v4376, 4294901760
        %v4766 = vsub.f32 %v4376, %v4765
        %v4767 = vand.u32 %v4766, 4294901760
        %4768 = vmatprep.subr.mxu0 %v4767
        %v4769 = vand.u32 %v4372, 4294901760
        %v4770 = vsub.f32 %v4372, %v4769
        %v4771 = vand.u32 %v4770, 4294901760
        %4772 = vmatpush1.msra.mxu0 %v4771
        %v4773 = vand.u32 %v4377, 4294901760
        %v4774 = vsub.f32 %v4377, %v4773
        %v4775 = vand.u32 %v4774, 4294901760
        %4776 = vmatprep.subr.mxu0 %v4775
        %v4777 = vand.u32 %v4373, 4294901760
        %v4778 = vsub.f32 %v4373, %v4777
        %v4779 = vand.u32 %v4778, 4294901760
        %4780 = vmatpush1.msra.mxu0 %v4779
        %v4781 = vand.u32 %v4388, 4294901760
        %v4782 = vsub.f32 %v4388, %v4781
        %v4783 = vand.u32 %v4782, 4294901760
        %4784 = vmatprep.subr.mxu0 %v4783
        %v4785 = vand.u32 %v4385, 4294901760
        %v4786 = vsub.f32 %v4385, %v4785
        %v4787 = vand.u32 %v4786, 4294901760
        %4788 = vmatpush1.msra.mxu0 %v4787
        %4789 = vmatprep.subr.mxu0 0.0
        %4790 = vmatpush1.msra.mxu0 0.0
        %4791 = vmatprep.subr.mxu0 0.0
        %4792 = vmatpush1.msra.mxu0 0.0
        %4793 = vmatprep.subr.mxu0 0.0
        %4794 = vmatpush1.msra.mxu0 0.0
        %4795 = vmatprep.subr.mxu0 0.0
        %4796 = vmatpush1.msra.mxu0 0.0
        %4797 = vmatprep.subr.mxu0 0.0
        %4798 = vmatpush1.msra.mxu0 0.0
        %4799 = vmatprep.subr.mxu0 0.0
        %4800 = vmatpush1.msra.mxu0 0.0
        %4801 = vmatprep.subr.mxu0 0.0
        %4802 = vmatpush1.msra.mxu0 0.0
        %4803 = vmatprep.subr.mxu0 0.0
        %4804 = vmatpush1.msra.mxu0 0.0
        %4805 = vmatprep.subr.mxu0 0.0
        %4806 = vmatpush1.msra.mxu0 0.0
        %4807 = vmatprep.subr.mxu0 0.0
        %4808 = vmatpush1.msra.mxu0 0.0
        %4809 = vmatprep.subr.mxu0 0.0
        %4810 = vmatpush1.msra.mxu0 0.0
        %4811 = vmatprep.subr.mxu0 0.0
        %4812 = vmatpush1.msra.mxu0 0.0
        %4813 = vmatprep.subr.mxu0 0.0
        %4814 = vmatpush1.msra.mxu0 0.0
        %4815 = vmatprep.subr.mxu0 0.0
        %4816 = vmatpush1.msra.mxu0 0.0
        %4817 = vmatprep.subr.mxu0 0.0
        %4818 = vmatpush1.msra.mxu0 0.0
        %4819 = vmatprep.subr.mxu0 0.0
        %4820 = vmatpush1.msra.mxu0 0.0
        %4821 = vmatprep.subr.mxu0 0.0
        %4822 = vmatpush1.msra.mxu0 0.0
        %4823 = vmatprep.subr.mxu0 0.0
        %4824 = vmatpush1.msra.mxu0 0.0
        %4825 = vmatprep.subr.mxu0 0.0
        %4826 = vmatpush1.msra.mxu0 0.0
        %4827 = vmatprep.subr.mxu0 0.0
        %4828 = vmatpush1.msra.mxu0 0.0
        %4829 = vmatprep.subr.mxu0 0.0
        %4830 = vmatpush1.msra.mxu0 0.0
        %4831 = vmatprep.subr.mxu0 0.0
        %4832 = vmatpush1.msra.mxu0 0.0
        %4833 = vmatprep.subr.mxu0 0.0
        %4834 = vmatpush1.msra.mxu0 0.0
        %4835 = vmatprep.subr.mxu0 0.0
        %4836 = vmatpush1.msra.mxu0 0.0
        %4837 = vmatprep.subr.mxu0 0.0
        %4838 = vmatpush1.msra.mxu0 0.0
        %4839 = vmatprep.subr.mxu0 0.0
        %4840 = vmatpush1.msra.mxu0 0.0
        %4841 = vmatprep.subr.mxu0 0.0
        %4842 = vmatpush1.msra.mxu0 0.0
        %4843 = vmatprep.subr.mxu0 0.0
        %4844 = vmatpush1.msra.mxu0 0.0
        %4845 = vmatprep.mubr.f32.mxu0 0.0
        %v4846 = vand.u32 %v4382, 4294901760
        %4847 = vmatmul.mubr.f32.gmra.mrb[0].mxu0 %v4846
        %v4848 = vpop.f32.mrb[0].mxu0
        %v4849 = vadd.f32 %v4753, %v4848
        %v4850 = vpop.f32.mrb[0].mxu0
        %v4851 = vadd.f32 %v4755, %v4850
        %4852 = vdwg.mxu0
        %v4853 = vand.u32 %v4375, 4294901760
        %4854 = vmatprep.subr.mxu0 %v4853
        %v4855 = vand.u32 %v4371, 4294901760
        %4856 = vmatpush1.msra.mxu0 %v4855
        %v4857 = vand.u32 %v4376, 4294901760
        %4858 = vmatprep.subr.mxu0 %v4857
        %v4859 = vand.u32 %v4372, 4294901760
        %4860 = vmatpush1.msra.mxu0 %v4859
        %v4861 = vand.u32 %v4377, 4294901760
        %4862 = vmatprep.subr.mxu0 %v4861
        %v4863 = vand.u32 %v4373, 4294901760
        %4864 = vmatpush1.msra.mxu0 %v4863
        %v4865 = vand.u32 %v4388, 4294901760
        %4866 = vmatprep.subr.mxu0 %v4865
        %v4867 = vand.u32 %v4385, 4294901760
        %4868 = vmatpush1.msra.mxu0 %v4867
        %4869 = vmatprep.subr.mxu0 0.0
        %4870 = vmatpush1.msra.mxu0 0.0
        %4871 = vmatprep.subr.mxu0 0.0
        %4872 = vmatpush1.msra.mxu0 0.0
        %4873 = vmatprep.subr.mxu0 0.0
        %4874 = vmatpush1.msra.mxu0 0.0
        %4875 = vmatprep.subr.mxu0 0.0
        %4876 = vmatpush1.msra.mxu0 0.0
        %4877 = vmatprep.subr.mxu0 0.0
        %4878 = vmatpush1.msra.mxu0 0.0
        %4879 = vmatprep.subr.mxu0 0.0
        %4880 = vmatpush1.msra.mxu0 0.0
        %4881 = vmatprep.subr.mxu0 0.0
        %4882 = vmatpush1.msra.mxu0 0.0
        %4883 = vmatprep.subr.mxu0 0.0
        %4884 = vmatpush1.msra.mxu0 0.0
        %4885 = vmatprep.subr.mxu0 0.0
        %4886 = vmatpush1.msra.mxu0 0.0
        %4887 = vmatprep.subr.mxu0 0.0
        %4888 = vmatpush1.msra.mxu0 0.0
        %4889 = vmatprep.subr.mxu0 0.0
        %4890 = vmatpush1.msra.mxu0 0.0
        %4891 = vmatprep.subr.mxu0 0.0
        %4892 = vmatpush1.msra.mxu0 0.0
        %4893 = vmatprep.subr.mxu0 0.0
        %4894 = vmatpush1.msra.mxu0 0.0
        %4895 = vmatprep.subr.mxu0 0.0
        %4896 = vmatpush1.msra.mxu0 0.0
        %4897 = vmatprep.subr.mxu0 0.0
        %4898 = vmatpush1.msra.mxu0 0.0
        %4899 = vmatprep.subr.mxu0 0.0
        %4900 = vmatpush1.msra.mxu0 0.0
        %4901 = vmatprep.subr.mxu0 0.0
        %4902 = vmatpush1.msra.mxu0 0.0
        %4903 = vmatprep.subr.mxu0 0.0
        %4904 = vmatpush1.msra.mxu0 0.0
        %4905 = vmatprep.subr.mxu0 0.0
        %4906 = vmatpush1.msra.mxu0 0.0
        %4907 = vmatprep.subr.mxu0 0.0
        %4908 = vmatpush1.msra.mxu0 0.0
        %4909 = vmatprep.subr.mxu0 0.0
        %4910 = vmatpush1.msra.mxu0 0.0
        %4911 = vmatprep.subr.mxu0 0.0
        %4912 = vmatpush1.msra.mxu0 0.0
        %4913 = vmatprep.subr.mxu0 0.0
        %4914 = vmatpush1.msra.mxu0 0.0
        %4915 = vmatprep.subr.mxu0 0.0
        %4916 = vmatpush1.msra.mxu0 0.0
        %4917 = vmatprep.subr.mxu0 0.0
        %4918 = vmatpush1.msra.mxu0 0.0
        %4919 = vmatprep.subr.mxu0 0.0
        %4920 = vmatpush1.msra.mxu0 0.0
        %4921 = vmatprep.subr.mxu0 0.0
        %4922 = vmatpush1.msra.mxu0 0.0
        %4923 = vmatprep.subr.mxu0 0.0
        %4924 = vmatpush1.msra.mxu0 0.0
        %4925 = vmatprep.mubr.f32.mxu0 0.0
        %v4926 = vand.u32 %v4382, 4294901760
        %4927 = vmatmul.mubr.f32.gmra.mrb[0].mxu0 %v4926
        %v4928 = vpop.f32.mrb[0].mxu0
        %v4929 = vadd.f32 %v4849, %v4928
        %v4930 = vpop.f32.mrb[0].mxu0
        %v4931 = vadd.f32 %v4851, %v4930
        %4932 = vdwg.mxu0
        %s4933 = scalar_lea.vmem %s2, 7
        %v4934 = vld [vmem:[%s4933] ss:$8 sm:$0x3]
        %v4936 = vlaneseq
        %v4937 = vshrl.u32 %v4936, 7
        %v4938 = vsub.s32 0, %v4937
        %v4939 = vrot.slane %v4934, %v4938
        %v4940 = vlaneseq
        %v4941 = vshrl.u32 %v4940, 7
        %v4942 = vsub.s32 1, %v4941
        %v4943 = vrot.slane %v4934, %v4942
        %v4946 = vmul.f32 %v4929, %v4939
        %v4947 = vmul.f32 %v4931, %v4943
        %v4948 = vadd.f32 %v4352, %v4946
        %v4949 = vadd.f32 %v4353, %v4947
        %4950 = vrot.lane.b32.xlu0 %v212, 111
        %v4951 = vpop.permute.xlu0 %4950
        %4952 = vrot.lane.b32.xlu0 %v214, 111
        %v4953 = vpop.permute.xlu0 %4952
        %4954 = vrot.lane.b32.xlu0 %v216, 111
        %v4955 = vpop.permute.xlu0 %4954
        %4956 = vrot.lane.b32.xlu0 %v218, 111
        %v4957 = vpop.permute.xlu0 %4956
        %4958 = vrot.lane.b32.xlu0 %v213, 111
        %v4959 = vpop.permute.xlu0 %4958
        %4960 = vrot.lane.b32.xlu0 %v215, 111
        %v4961 = vpop.permute.xlu0 %4960
        %4962 = vrot.lane.b32.xlu0 %v217, 111
        %v4963 = vpop.permute.xlu0 %4962
        %4964 = vrot.lane.b32.xlu0 %v219, 111
        %v4965 = vpop.permute.xlu0 %4964
        %vm4966 = vcmp.lt.s32.totalorder %v237, 111
        %v4967 = vsel %vm4966, %v4951, %v4959
        %v4968 = vsel %vm4966, %v4953, %v4961
        %v4969 = vsel %vm4966, %v4955, %v4963
        %v4970 = vsel %vm4966, %v4957, %v4965
        %v4971 = vsel %vm4966, %v4959, %v4951
        %v4972 = vsel %vm4966, %v4961, %v4953
        %v4973 = vsel %vm4966, %v4963, %v4955
        %v4974 = vsel %vm4966, %v4965, %v4957
        %s4975 = scalar_lea.vmem %s1, 64
        %v4976 = vld [vmem:[%s4975] sm:$0xff]
        %v4978 = vsel %vm248, %v4976, 0
        %v4981 = vsel %vm252, %v4970, 0
        %v4984 = vsel %vm252, %v4974, 0
        %v4986 = vand.u32 %v4971, 4294901760
        %4987 = vmatprep.subr.mxu0 %v4986
        %v4988 = vand.u32 %v4967, 4294901760
        %4989 = vmatpush1.msra.mxu0 %v4988
        %v4990 = vand.u32 %v4972, 4294901760
        %4991 = vmatprep.subr.mxu0 %v4990
        %v4992 = vand.u32 %v4968, 4294901760
        %4993 = vmatpush1.msra.mxu0 %v4992
        %v4994 = vand.u32 %v4973, 4294901760
        %4995 = vmatprep.subr.mxu0 %v4994
        %v4996 = vand.u32 %v4969, 4294901760
        %4997 = vmatpush1.msra.mxu0 %v4996
        %v4998 = vand.u32 %v4984, 4294901760
        %4999 = vmatprep.subr.mxu0 %v4998
        %v5000 = vand.u32 %v4981, 4294901760
        %5001 = vmatpush1.msra.mxu0 %v5000
        %5002 = vmatprep.subr.mxu0 0.0
        %5003 = vmatpush1.msra.mxu0 0.0
        %5004 = vmatprep.subr.mxu0 0.0
        %5005 = vmatpush1.msra.mxu0 0.0
        %5006 = vmatprep.subr.mxu0 0.0
        %5007 = vmatpush1.msra.mxu0 0.0
        %5008 = vmatprep.subr.mxu0 0.0
        %5009 = vmatpush1.msra.mxu0 0.0
        %5010 = vmatprep.subr.mxu0 0.0
        %5011 = vmatpush1.msra.mxu0 0.0
        %5012 = vmatprep.subr.mxu0 0.0
        %5013 = vmatpush1.msra.mxu0 0.0
        %5014 = vmatprep.subr.mxu0 0.0
        %5015 = vmatpush1.msra.mxu0 0.0
        %5016 = vmatprep.subr.mxu0 0.0
        %5017 = vmatpush1.msra.mxu0 0.0
        %5018 = vmatprep.subr.mxu0 0.0
        %5019 = vmatpush1.msra.mxu0 0.0
        %5020 = vmatprep.subr.mxu0 0.0
        %5021 = vmatpush1.msra.mxu0 0.0
        %5022 = vmatprep.subr.mxu0 0.0
        %5023 = vmatpush1.msra.mxu0 0.0
        %5024 = vmatprep.subr.mxu0 0.0
        %5025 = vmatpush1.msra.mxu0 0.0
        %5026 = vmatprep.subr.mxu0 0.0
        %5027 = vmatpush1.msra.mxu0 0.0
        %5028 = vmatprep.subr.mxu0 0.0
        %5029 = vmatpush1.msra.mxu0 0.0
        %5030 = vmatprep.subr.mxu0 0.0
        %5031 = vmatpush1.msra.mxu0 0.0
        %5032 = vmatprep.subr.mxu0 0.0
        %5033 = vmatpush1.msra.mxu0 0.0
        %5034 = vmatprep.subr.mxu0 0.0
        %5035 = vmatpush1.msra.mxu0 0.0
        %5036 = vmatprep.subr.mxu0 0.0
        %5037 = vmatpush1.msra.mxu0 0.0
        %5038 = vmatprep.subr.mxu0 0.0
        %5039 = vmatpush1.msra.mxu0 0.0
        %5040 = vmatprep.subr.mxu0 0.0
        %5041 = vmatpush1.msra.mxu0 0.0
        %5042 = vmatprep.subr.mxu0 0.0
        %5043 = vmatpush1.msra.mxu0 0.0
        %5044 = vmatprep.subr.mxu0 0.0
        %5045 = vmatpush1.msra.mxu0 0.0
        %5046 = vmatprep.subr.mxu0 0.0
        %5047 = vmatpush1.msra.mxu0 0.0
        %5048 = vmatprep.subr.mxu0 0.0
        %5049 = vmatpush1.msra.mxu0 0.0
        %5050 = vmatprep.subr.mxu0 0.0
        %5051 = vmatpush1.msra.mxu0 0.0
        %5052 = vmatprep.subr.mxu0 0.0
        %5053 = vmatpush1.msra.mxu0 0.0
        %5054 = vmatprep.subr.mxu0 0.0
        %5055 = vmatpush1.msra.mxu0 0.0
        %5056 = vmatprep.subr.mxu0 0.0
        %5057 = vmatpush1.msra.mxu0 0.0
        %5058 = vmatprep.mubr.f32.mxu0 0.0
        %v5059 = vand.u32 %v4978, 4294901760
        %v5060 = vsub.f32 %v4978, %v5059
        %v5061 = vand.u32 %v5060, 4294901760
        %v5062 = vsub.f32 %v5060, %v5061
        %v5063 = vand.u32 %v5062, 4294901760
        %5064 = vmatmul.mubr.f32.gmra.mrb[0].mxu0 %v5063
        %v5065 = vpop.f32.mrb[0].mxu0
        %v5066 = vadd.f32 0.0, %v5065
        %v5067 = vpop.f32.mrb[0].mxu0
        %v5068 = vadd.f32 0.0, %v5067
        %5069 = vdwg.mxu0
        %v5070 = vand.u32 %v4971, 4294901760
        %v5071 = vsub.f32 %v4971, %v5070
        %v5072 = vand.u32 %v5071, 4294901760
        %v5073 = vsub.f32 %v5071, %v5072
        %v5074 = vand.u32 %v5073, 4294901760
        %5075 = vmatprep.subr.mxu0 %v5074
        %v5076 = vand.u32 %v4967, 4294901760
        %v5077 = vsub.f32 %v4967, %v5076
        %v5078 = vand.u32 %v5077, 4294901760
        %v5079 = vsub.f32 %v5077, %v5078
        %v5080 = vand.u32 %v5079, 4294901760
        %5081 = vmatpush1.msra.mxu0 %v5080
        %v5082 = vand.u32 %v4972, 4294901760
        %v5083 = vsub.f32 %v4972, %v5082
        %v5084 = vand.u32 %v5083, 4294901760
        %v5085 = vsub.f32 %v5083, %v5084
        %v5086 = vand.u32 %v5085, 4294901760
        %5087 = vmatprep.subr.mxu0 %v5086
        %v5088 = vand.u32 %v4968, 4294901760
        %v5089 = vsub.f32 %v4968, %v5088
        %v5090 = vand.u32 %v5089, 4294901760
        %v5091 = vsub.f32 %v5089, %v5090
        %v5092 = vand.u32 %v5091, 4294901760
        %5093 = vmatpush1.msra.mxu0 %v5092
        %v5094 = vand.u32 %v4973, 4294901760
        %v5095 = vsub.f32 %v4973, %v5094
        %v5096 = vand.u32 %v5095, 4294901760
        %v5097 = vsub.f32 %v5095, %v5096
        %v5098 = vand.u32 %v5097, 4294901760
        %5099 = vmatprep.subr.mxu0 %v5098
        %v5100 = vand.u32 %v4969, 4294901760
        %v5101 = vsub.f32 %v4969, %v5100
        %v5102 = vand.u32 %v5101, 4294901760
        %v5103 = vsub.f32 %v5101, %v5102
        %v5104 = vand.u32 %v5103, 4294901760
        %5105 = vmatpush1.msra.mxu0 %v5104
        %v5106 = vand.u32 %v4984, 4294901760
        %v5107 = vsub.f32 %v4984, %v5106
        %v5108 = vand.u32 %v5107, 4294901760
        %v5109 = vsub.f32 %v5107, %v5108
        %v5110 = vand.u32 %v5109, 4294901760
        %5111 = vmatprep.subr.mxu0 %v5110
        %v5112 = vand.u32 %v4981, 4294901760
        %v5113 = vsub.f32 %v4981, %v5112
        %v5114 = vand.u32 %v5113, 4294901760
        %v5115 = vsub.f32 %v5113, %v5114
        %v5116 = vand.u32 %v5115, 4294901760
        %5117 = vmatpush1.msra.mxu0 %v5116
        %5118 = vmatprep.subr.mxu0 0.0
        %5119 = vmatpush1.msra.mxu0 0.0
        %5120 = vmatprep.subr.mxu0 0.0
        %5121 = vmatpush1.msra.mxu0 0.0
        %5122 = vmatprep.subr.mxu0 0.0
        %5123 = vmatpush1.msra.mxu0 0.0
        %5124 = vmatprep.subr.mxu0 0.0
        %5125 = vmatpush1.msra.mxu0 0.0
        %5126 = vmatprep.subr.mxu0 0.0
        %5127 = vmatpush1.msra.mxu0 0.0
        %5128 = vmatprep.subr.mxu0 0.0
        %5129 = vmatpush1.msra.mxu0 0.0
        %5130 = vmatprep.subr.mxu0 0.0
        %5131 = vmatpush1.msra.mxu0 0.0
        %5132 = vmatprep.subr.mxu0 0.0
        %5133 = vmatpush1.msra.mxu0 0.0
        %5134 = vmatprep.subr.mxu0 0.0
        %5135 = vmatpush1.msra.mxu0 0.0
        %5136 = vmatprep.subr.mxu0 0.0
        %5137 = vmatpush1.msra.mxu0 0.0
        %5138 = vmatprep.subr.mxu0 0.0
        %5139 = vmatpush1.msra.mxu0 0.0
        %5140 = vmatprep.subr.mxu0 0.0
        %5141 = vmatpush1.msra.mxu0 0.0
        %5142 = vmatprep.subr.mxu0 0.0
        %5143 = vmatpush1.msra.mxu0 0.0
        %5144 = vmatprep.subr.mxu0 0.0
        %5145 = vmatpush1.msra.mxu0 0.0
        %5146 = vmatprep.subr.mxu0 0.0
        %5147 = vmatpush1.msra.mxu0 0.0
        %5148 = vmatprep.subr.mxu0 0.0
        %5149 = vmatpush1.msra.mxu0 0.0
        %5150 = vmatprep.subr.mxu0 0.0
        %5151 = vmatpush1.msra.mxu0 0.0
        %5152 = vmatprep.subr.mxu0 0.0
        %5153 = vmatpush1.msra.mxu0 0.0
        %5154 = vmatprep.subr.mxu0 0.0
        %5155 = vmatpush1.msra.mxu0 0.0
        %5156 = vmatprep.subr.mxu0 0.0
        %5157 = vmatpush1.msra.mxu0 0.0
        %5158 = vmatprep.subr.mxu0 0.0
        %5159 = vmatpush1.msra.mxu0 0.0
        %5160 = vmatprep.subr.mxu0 0.0
        %5161 = vmatpush1.msra.mxu0 0.0
        %5162 = vmatprep.subr.mxu0 0.0
        %5163 = vmatpush1.msra.mxu0 0.0
        %5164 = vmatprep.subr.mxu0 0.0
        %5165 = vmatpush1.msra.mxu0 0.0
        %5166 = vmatprep.subr.mxu0 0.0
        %5167 = vmatpush1.msra.mxu0 0.0
        %5168 = vmatprep.subr.mxu0 0.0
        %5169 = vmatpush1.msra.mxu0 0.0
        %5170 = vmatprep.subr.mxu0 0.0
        %5171 = vmatpush1.msra.mxu0 0.0
        %5172 = vmatprep.subr.mxu0 0.0
        %5173 = vmatpush1.msra.mxu0 0.0
        %5174 = vmatprep.mubr.f32.mxu0 0.0
        %v5175 = vand.u32 %v4978, 4294901760
        %5176 = vmatmul.mubr.f32.gmra.mrb[0].mxu0 %v5175
        %v5177 = vpop.f32.mrb[0].mxu0
        %v5178 = vadd.f32 %v5066, %v5177
        %v5179 = vpop.f32.mrb[0].mxu0
        %v5180 = vadd.f32 %v5068, %v5179
        %5181 = vdwg.mxu0
        %v5182 = vand.u32 %v4971, 4294901760
        %v5183 = vsub.f32 %v4971, %v5182
        %5184 = vmatprep.subr.mxu0 %v5183
        %v5185 = vand.u32 %v4967, 4294901760
        %v5186 = vsub.f32 %v4967, %v5185
        %5187 = vmatpush1.msra.mxu0 %v5186
        %v5188 = vand.u32 %v4972, 4294901760
        %v5189 = vsub.f32 %v4972, %v5188
        %5190 = vmatprep.subr.mxu0 %v5189
        %v5191 = vand.u32 %v4968, 4294901760
        %v5192 = vsub.f32 %v4968, %v5191
        %5193 = vmatpush1.msra.mxu0 %v5192
        %v5194 = vand.u32 %v4973, 4294901760
        %v5195 = vsub.f32 %v4973, %v5194
        %5196 = vmatprep.subr.mxu0 %v5195
        %v5197 = vand.u32 %v4969, 4294901760
        %v5198 = vsub.f32 %v4969, %v5197
        %5199 = vmatpush1.msra.mxu0 %v5198
        %v5200 = vand.u32 %v4984, 4294901760
        %v5201 = vsub.f32 %v4984, %v5200
        %5202 = vmatprep.subr.mxu0 %v5201
        %v5203 = vand.u32 %v4981, 4294901760
        %v5204 = vsub.f32 %v4981, %v5203
        %5205 = vmatpush1.msra.mxu0 %v5204
        %5206 = vmatprep.subr.mxu0 0.0
        %5207 = vmatpush1.msra.mxu0 0.0
        %5208 = vmatprep.subr.mxu0 0.0
        %5209 = vmatpush1.msra.mxu0 0.0
        %5210 = vmatprep.subr.mxu0 0.0
        %5211 = vmatpush1.msra.mxu0 0.0
        %5212 = vmatprep.subr.mxu0 0.0
        %5213 = vmatpush1.msra.mxu0 0.0
        %5214 = vmatprep.subr.mxu0 0.0
        %5215 = vmatpush1.msra.mxu0 0.0
        %5216 = vmatprep.subr.mxu0 0.0
        %5217 = vmatpush1.msra.mxu0 0.0
        %5218 = vmatprep.subr.mxu0 0.0
        %5219 = vmatpush1.msra.mxu0 0.0
        %5220 = vmatprep.subr.mxu0 0.0
        %5221 = vmatpush1.msra.mxu0 0.0
        %5222 = vmatprep.subr.mxu0 0.0
        %5223 = vmatpush1.msra.mxu0 0.0
        %5224 = vmatprep.subr.mxu0 0.0
        %5225 = vmatpush1.msra.mxu0 0.0
        %5226 = vmatprep.subr.mxu0 0.0
        %5227 = vmatpush1.msra.mxu0 0.0
        %5228 = vmatprep.subr.mxu0 0.0
        %5229 = vmatpush1.msra.mxu0 0.0
        %5230 = vmatprep.subr.mxu0 0.0
        %5231 = vmatpush1.msra.mxu0 0.0
        %5232 = vmatprep.subr.mxu0 0.0
        %5233 = vmatpush1.msra.mxu0 0.0
        %5234 = vmatprep.subr.mxu0 0.0
        %5235 = vmatpush1.msra.mxu0 0.0
        %5236 = vmatprep.subr.mxu0 0.0
        %5237 = vmatpush1.msra.mxu0 0.0
        %5238 = vmatprep.subr.mxu0 0.0
        %5239 = vmatpush1.msra.mxu0 0.0
        %5240 = vmatprep.subr.mxu0 0.0
        %5241 = vmatpush1.msra.mxu0 0.0
        %5242 = vmatprep.subr.mxu0 0.0
        %5243 = vmatpush1.msra.mxu0 0.0
        %5244 = vmatprep.subr.mxu0 0.0
        %5245 = vmatpush1.msra.mxu0 0.0
        %5246 = vmatprep.subr.mxu0 0.0
        %5247 = vmatpush1.msra.mxu0 0.0
        %5248 = vmatprep.subr.mxu0 0.0
        %5249 = vmatpush1.msra.mxu0 0.0
        %5250 = vmatprep.subr.mxu0 0.0
        %5251 = vmatpush1.msra.mxu0 0.0
        %5252 = vmatprep.subr.mxu0 0.0
        %5253 = vmatpush1.msra.mxu0 0.0
        %5254 = vmatprep.subr.mxu0 0.0
        %5255 = vmatpush1.msra.mxu0 0.0
        %5256 = vmatprep.subr.mxu0 0.0
        %5257 = vmatpush1.msra.mxu0 0.0
        %5258 = vmatprep.subr.mxu0 0.0
        %5259 = vmatpush1.msra.mxu0 0.0
        %5260 = vmatprep.subr.mxu0 0.0
        %5261 = vmatpush1.msra.mxu0 0.0
        %5262 = vmatprep.mubr.f32.mxu0 0.0
        %v5263 = vand.u32 %v4978, 4294901760
        %v5264 = vsub.f32 %v4978, %v5263
        %5265 = vmatmul.mubr.f32.gmra.mrb[0].mxu0 %v5264
        %v5266 = vpop.f32.mrb[0].mxu0
        %v5267 = vadd.f32 %v5178, %v5266
        %v5268 = vpop.f32.mrb[0].mxu0
        %v5269 = vadd.f32 %v5180, %v5268
        %5270 = vdwg.mxu0
        %v5271 = vand.u32 %v4971, 4294901760
        %5272 = vmatprep.subr.mxu0 %v5271
        %v5273 = vand.u32 %v4967, 4294901760
        %5274 = vmatpush1.msra.mxu0 %v5273
        %v5275 = vand.u32 %v4972, 4294901760
        %5276 = vmatprep.subr.mxu0 %v5275
        %v5277 = vand.u32 %v4968, 4294901760
        %5278 = vmatpush1.msra.mxu0 %v5277
        %v5279 = vand.u32 %v4973, 4294901760
        %5280 = vmatprep.subr.mxu0 %v5279
        %v5281 = vand.u32 %v4969, 4294901760
        %5282 = vmatpush1.msra.mxu0 %v5281
        %v5283 = vand.u32 %v4984, 4294901760
        %5284 = vmatprep.subr.mxu0 %v5283
        %v5285 = vand.u32 %v4981, 4294901760
        %5286 = vmatpush1.msra.mxu0 %v5285
        %5287 = vmatprep.subr.mxu0 0.0
        %5288 = vmatpush1.msra.mxu0 0.0
        %5289 = vmatprep.subr.mxu0 0.0
        %5290 = vmatpush1.msra.mxu0 0.0
        %5291 = vmatprep.subr.mxu0 0.0
        %5292 = vmatpush1.msra.mxu0 0.0
        %5293 = vmatprep.subr.mxu0 0.0
        %5294 = vmatpush1.msra.mxu0 0.0
        %5295 = vmatprep.subr.mxu0 0.0
        %5296 = vmatpush1.msra.mxu0 0.0
        %5297 = vmatprep.subr.mxu0 0.0
        %5298 = vmatpush1.msra.mxu0 0.0
        %5299 = vmatprep.subr.mxu0 0.0
        %5300 = vmatpush1.msra.mxu0 0.0
        %5301 = vmatprep.subr.mxu0 0.0
        %5302 = vmatpush1.msra.mxu0 0.0
        %5303 = vmatprep.subr.mxu0 0.0
        %5304 = vmatpush1.msra.mxu0 0.0
        %5305 = vmatprep.subr.mxu0 0.0
        %5306 = vmatpush1.msra.mxu0 0.0
        %5307 = vmatprep.subr.mxu0 0.0
        %5308 = vmatpush1.msra.mxu0 0.0
        %5309 = vmatprep.subr.mxu0 0.0
        %5310 = vmatpush1.msra.mxu0 0.0
        %5311 = vmatprep.subr.mxu0 0.0
        %5312 = vmatpush1.msra.mxu0 0.0
        %5313 = vmatprep.subr.mxu0 0.0
        %5314 = vmatpush1.msra.mxu0 0.0
        %5315 = vmatprep.subr.mxu0 0.0
        %5316 = vmatpush1.msra.mxu0 0.0
        %5317 = vmatprep.subr.mxu0 0.0
        %5318 = vmatpush1.msra.mxu0 0.0
        %5319 = vmatprep.subr.mxu0 0.0
        %5320 = vmatpush1.msra.mxu0 0.0
        %5321 = vmatprep.subr.mxu0 0.0
        %5322 = vmatpush1.msra.mxu0 0.0
        %5323 = vmatprep.subr.mxu0 0.0
        %5324 = vmatpush1.msra.mxu0 0.0
        %5325 = vmatprep.subr.mxu0 0.0
        %5326 = vmatpush1.msra.mxu0 0.0
        %5327 = vmatprep.subr.mxu0 0.0
        %5328 = vmatpush1.msra.mxu0 0.0
        %5329 = vmatprep.subr.mxu0 0.0
        %5330 = vmatpush1.msra.mxu0 0.0
        %5331 = vmatprep.subr.mxu0 0.0
        %5332 = vmatpush1.msra.mxu0 0.0
        %5333 = vmatprep.subr.mxu0 0.0
        %5334 = vmatpush1.msra.mxu0 0.0
        %5335 = vmatprep.subr.mxu0 0.0
        %5336 = vmatpush1.msra.mxu0 0.0
        %5337 = vmatprep.subr.mxu0 0.0
        %5338 = vmatpush1.msra.mxu0 0.0
        %5339 = vmatprep.subr.mxu0 0.0
        %5340 = vmatpush1.msra.mxu0 0.0
        %5341 = vmatprep.subr.mxu0 0.0
        %5342 = vmatpush1.msra.mxu0 0.0
        %5343 = vmatprep.mubr.f32.mxu0 0.0
        %v5344 = vand.u32 %v4978, 4294901760
        %v5345 = vsub.f32 %v4978, %v5344
        %v5346 = vand.u32 %v5345, 4294901760
        %5347 = vmatmul.mubr.f32.gmra.mrb[0].mxu0 %v5346
        %v5348 = vpop.f32.mrb[0].mxu0
        %v5349 = vadd.f32 %v5267, %v5348
        %v5350 = vpop.f32.mrb[0].mxu0
        %v5351 = vadd.f32 %v5269, %v5350
        %5352 = vdwg.mxu0
        %v5353 = vand.u32 %v4971, 4294901760
        %v5354 = vsub.f32 %v4971, %v5353
        %v5355 = vand.u32 %v5354, 4294901760
        %5356 = vmatprep.subr.mxu0 %v5355
        %v5357 = vand.u32 %v4967, 4294901760
        %v5358 = vsub.f32 %v4967, %v5357
        %v5359 = vand.u32 %v5358, 4294901760
        %5360 = vmatpush1.msra.mxu0 %v5359
        %v5361 = vand.u32 %v4972, 4294901760
        %v5362 = vsub.f32 %v4972, %v5361
        %v5363 = vand.u32 %v5362, 4294901760
        %5364 = vmatprep.subr.mxu0 %v5363
        %v5365 = vand.u32 %v4968, 4294901760
        %v5366 = vsub.f32 %v4968, %v5365
        %v5367 = vand.u32 %v5366, 4294901760
        %5368 = vmatpush1.msra.mxu0 %v5367
        %v5369 = vand.u32 %v4973, 4294901760
        %v5370 = vsub.f32 %v4973, %v5369
        %v5371 = vand.u32 %v5370, 4294901760
        %5372 = vmatprep.subr.mxu0 %v5371
        %v5373 = vand.u32 %v4969, 4294901760
        %v5374 = vsub.f32 %v4969, %v5373
        %v5375 = vand.u32 %v5374, 4294901760
        %5376 = vmatpush1.msra.mxu0 %v5375
        %v5377 = vand.u32 %v4984, 4294901760
        %v5378 = vsub.f32 %v4984, %v5377
        %v5379 = vand.u32 %v5378, 4294901760
        %5380 = vmatprep.subr.mxu0 %v5379
        %v5381 = vand.u32 %v4981, 4294901760
        %v5382 = vsub.f32 %v4981, %v5381
        %v5383 = vand.u32 %v5382, 4294901760
        %5384 = vmatpush1.msra.mxu0 %v5383
        %5385 = vmatprep.subr.mxu0 0.0
        %5386 = vmatpush1.msra.mxu0 0.0
        %5387 = vmatprep.subr.mxu0 0.0
        %5388 = vmatpush1.msra.mxu0 0.0
        %5389 = vmatprep.subr.mxu0 0.0
        %5390 = vmatpush1.msra.mxu0 0.0
        %5391 = vmatprep.subr.mxu0 0.0
        %5392 = vmatpush1.msra.mxu0 0.0
        %5393 = vmatprep.subr.mxu0 0.0
        %5394 = vmatpush1.msra.mxu0 0.0
        %5395 = vmatprep.subr.mxu0 0.0
        %5396 = vmatpush1.msra.mxu0 0.0
        %5397 = vmatprep.subr.mxu0 0.0
        %5398 = vmatpush1.msra.mxu0 0.0
        %5399 = vmatprep.subr.mxu0 0.0
        %5400 = vmatpush1.msra.mxu0 0.0
        %5401 = vmatprep.subr.mxu0 0.0
        %5402 = vmatpush1.msra.mxu0 0.0
        %5403 = vmatprep.subr.mxu0 0.0
        %5404 = vmatpush1.msra.mxu0 0.0
        %5405 = vmatprep.subr.mxu0 0.0
        %5406 = vmatpush1.msra.mxu0 0.0
        %5407 = vmatprep.subr.mxu0 0.0
        %5408 = vmatpush1.msra.mxu0 0.0
        %5409 = vmatprep.subr.mxu0 0.0
        %5410 = vmatpush1.msra.mxu0 0.0
        %5411 = vmatprep.subr.mxu0 0.0
        %5412 = vmatpush1.msra.mxu0 0.0
        %5413 = vmatprep.subr.mxu0 0.0
        %5414 = vmatpush1.msra.mxu0 0.0
        %5415 = vmatprep.subr.mxu0 0.0
        %5416 = vmatpush1.msra.mxu0 0.0
        %5417 = vmatprep.subr.mxu0 0.0
        %5418 = vmatpush1.msra.mxu0 0.0
        %5419 = vmatprep.subr.mxu0 0.0
        %5420 = vmatpush1.msra.mxu0 0.0
        %5421 = vmatprep.subr.mxu0 0.0
        %5422 = vmatpush1.msra.mxu0 0.0
        %5423 = vmatprep.subr.mxu0 0.0
        %5424 = vmatpush1.msra.mxu0 0.0
        %5425 = vmatprep.subr.mxu0 0.0
        %5426 = vmatpush1.msra.mxu0 0.0
        %5427 = vmatprep.subr.mxu0 0.0
        %5428 = vmatpush1.msra.mxu0 0.0
        %5429 = vmatprep.subr.mxu0 0.0
        %5430 = vmatpush1.msra.mxu0 0.0
        %5431 = vmatprep.subr.mxu0 0.0
        %5432 = vmatpush1.msra.mxu0 0.0
        %5433 = vmatprep.subr.mxu0 0.0
        %5434 = vmatpush1.msra.mxu0 0.0
        %5435 = vmatprep.subr.mxu0 0.0
        %5436 = vmatpush1.msra.mxu0 0.0
        %5437 = vmatprep.subr.mxu0 0.0
        %5438 = vmatpush1.msra.mxu0 0.0
        %5439 = vmatprep.subr.mxu0 0.0
        %5440 = vmatpush1.msra.mxu0 0.0
        %5441 = vmatprep.mubr.f32.mxu0 0.0
        %v5442 = vand.u32 %v4978, 4294901760
        %5443 = vmatmul.mubr.f32.gmra.mrb[0].mxu0 %v5442
        %v5444 = vpop.f32.mrb[0].mxu0
        %v5445 = vadd.f32 %v5349, %v5444
        %v5446 = vpop.f32.mrb[0].mxu0
        %v5447 = vadd.f32 %v5351, %v5446
        %5448 = vdwg.mxu0
        %v5449 = vand.u32 %v4971, 4294901760
        %5450 = vmatprep.subr.mxu0 %v5449
        %v5451 = vand.u32 %v4967, 4294901760
        %5452 = vmatpush1.msra.mxu0 %v5451
        %v5453 = vand.u32 %v4972, 4294901760
        %5454 = vmatprep.subr.mxu0 %v5453
        %v5455 = vand.u32 %v4968, 4294901760
        %5456 = vmatpush1.msra.mxu0 %v5455
        %v5457 = vand.u32 %v4973, 4294901760
        %5458 = vmatprep.subr.mxu0 %v5457
        %v5459 = vand.u32 %v4969, 4294901760
        %5460 = vmatpush1.msra.mxu0 %v5459
        %v5461 = vand.u32 %v4984, 4294901760
        %5462 = vmatprep.subr.mxu0 %v5461
        %v5463 = vand.u32 %v4981, 4294901760
        %5464 = vmatpush1.msra.mxu0 %v5463
        %5465 = vmatprep.subr.mxu0 0.0
        %5466 = vmatpush1.msra.mxu0 0.0
        %5467 = vmatprep.subr.mxu0 0.0
        %5468 = vmatpush1.msra.mxu0 0.0
        %5469 = vmatprep.subr.mxu0 0.0
        %5470 = vmatpush1.msra.mxu0 0.0
        %5471 = vmatprep.subr.mxu0 0.0
        %5472 = vmatpush1.msra.mxu0 0.0
        %5473 = vmatprep.subr.mxu0 0.0
        %5474 = vmatpush1.msra.mxu0 0.0
        %5475 = vmatprep.subr.mxu0 0.0
        %5476 = vmatpush1.msra.mxu0 0.0
        %5477 = vmatprep.subr.mxu0 0.0
        %5478 = vmatpush1.msra.mxu0 0.0
        %5479 = vmatprep.subr.mxu0 0.0
        %5480 = vmatpush1.msra.mxu0 0.0
        %5481 = vmatprep.subr.mxu0 0.0
        %5482 = vmatpush1.msra.mxu0 0.0
        %5483 = vmatprep.subr.mxu0 0.0
        %5484 = vmatpush1.msra.mxu0 0.0
        %5485 = vmatprep.subr.mxu0 0.0
        %5486 = vmatpush1.msra.mxu0 0.0
        %5487 = vmatprep.subr.mxu0 0.0
        %5488 = vmatpush1.msra.mxu0 0.0
        %5489 = vmatprep.subr.mxu0 0.0
        %5490 = vmatpush1.msra.mxu0 0.0
        %5491 = vmatprep.subr.mxu0 0.0
        %5492 = vmatpush1.msra.mxu0 0.0
        %5493 = vmatprep.subr.mxu0 0.0
        %5494 = vmatpush1.msra.mxu0 0.0
        %5495 = vmatprep.subr.mxu0 0.0
        %5496 = vmatpush1.msra.mxu0 0.0
        %5497 = vmatprep.subr.mxu0 0.0
        %5498 = vmatpush1.msra.mxu0 0.0
        %5499 = vmatprep.subr.mxu0 0.0
        %5500 = vmatpush1.msra.mxu0 0.0
        %5501 = vmatprep.subr.mxu0 0.0
        %5502 = vmatpush1.msra.mxu0 0.0
        %5503 = vmatprep.subr.mxu0 0.0
        %5504 = vmatpush1.msra.mxu0 0.0
        %5505 = vmatprep.subr.mxu0 0.0
        %5506 = vmatpush1.msra.mxu0 0.0
        %5507 = vmatprep.subr.mxu0 0.0
        %5508 = vmatpush1.msra.mxu0 0.0
        %5509 = vmatprep.subr.mxu0 0.0
        %5510 = vmatpush1.msra.mxu0 0.0
        %5511 = vmatprep.subr.mxu0 0.0
        %5512 = vmatpush1.msra.mxu0 0.0
        %5513 = vmatprep.subr.mxu0 0.0
        %5514 = vmatpush1.msra.mxu0 0.0
        %5515 = vmatprep.subr.mxu0 0.0
        %5516 = vmatpush1.msra.mxu0 0.0
        %5517 = vmatprep.subr.mxu0 0.0
        %5518 = vmatpush1.msra.mxu0 0.0
        %5519 = vmatprep.subr.mxu0 0.0
        %5520 = vmatpush1.msra.mxu0 0.0
        %5521 = vmatprep.mubr.f32.mxu0 0.0
        %v5522 = vand.u32 %v4978, 4294901760
        %5523 = vmatmul.mubr.f32.gmra.mrb[0].mxu0 %v5522
        %v5524 = vpop.f32.mrb[0].mxu0
        %v5525 = vadd.f32 %v5445, %v5524
        %v5526 = vpop.f32.mrb[0].mxu0
        %v5527 = vadd.f32 %v5447, %v5526
        %5528 = vdwg.mxu0
        %s5529 = scalar_lea.vmem %s2, 16
        %v5530 = vld [vmem:[%s5529] ss:$8 sm:$0x3]
        %v5532 = vlaneseq
        %v5533 = vshrl.u32 %v5532, 7
        %v5534 = vsub.s32 0, %v5533
        %v5535 = vrot.slane %v5530, %v5534
        %v5536 = vlaneseq
        %v5537 = vshrl.u32 %v5536, 7
        %v5538 = vsub.s32 1, %v5537
        %v5539 = vrot.slane %v5530, %v5538
        %v5542 = vmul.f32 %v5525, %v5535
        %v5543 = vmul.f32 %v5527, %v5539
        %v5544 = vadd.f32 %v4948, %v5542
        %v5545 = vadd.f32 %v4949, %v5543
        %s5546 = sld [smem:[#allocation2]]
        %v5547 = vstv %s5546
        %v5548 = vadd.f32 %v5544, %v5547
        %v5549 = vadd.f32 %v5545, %v5547
        %v5550 = vxor.u32 %v5548, 2147483648
        %v5551 = vxor.u32 %v5549, 2147483648
        %v5552 = vmul.f32 %v5550, 1.442695
        %v5553 = vpow.pop %v5552
        %v5554 = vmul.f32 %v5551, 1.442695
        %v5555 = vpow.pop %v5554
        %v5556 = vadd.f32 %v5553, 1.0
        %v5557 = vadd.f32 %v5555, 1.0
        %v5558 = vrcp.pop %v5556
        %v5559 = vmul.f32 1.0, %v5558
        %v5560 = vrcp.pop %v5557
        %v5561 = vmul.f32 1.0, %v5560
        %v5564 = vcombine.low %v5559, %v5561
        %v5566 = vunpack.c.l.s4 1966171168
        %v5567 = vunpack.c.0.s8 %v5566
        %v5568 = vlaneseq
        %v5569 = vshrl.u32 %v5568, 7
        %v5570 = vsub.s32 %v5567, %v5569
        %v5571 = vrot.slane %v5564, %v5570
        %v5573 = vunpack.c.l.s4 1966171168
        %v5574 = vunpack.c.0.s8 %v5573
        %v5575 = vlaneseq
        %v5576 = vshrl.u32 %v5575, 7
        %v5577 = vsub.s32 %v5574, %v5576
        %v5578 = vrot.slane %v5571, %v5577
        %v5580 = vlaneseq
        %vm5581 = vcmp.ge.s32.totalorder %v5580, 0
        %vm5582 = vcmp.lt.s32.totalorder %v5580, 256
        %vm5583 = vmand %vm5581, %vm5582
        %5584 = vst.msk [vmem:[%s211] ss:$2 sm:$0x3] %vm5583, %v5578
        %s5585 = sld [smem:[#allocation2 + $0x1]]
        %v5586 = vstv %s5585
        %v5587 = vadd.f32 %v5544, %v5586
        %v5588 = vadd.f32 %v5545, %v5586
        %v5591 = vcombine.low %v5587, %v5588
        %v5593 = vunpack.c.l.s4 1966171168
        %v5594 = vunpack.c.0.s8 %v5593
        %v5595 = vlaneseq
        %v5596 = vshrl.u32 %v5595, 7
        %v5597 = vsub.s32 %v5594, %v5596
        %v5598 = vrot.slane %v5591, %v5597
        %v5599 = vcombine.high %v5598, %v5598
        %v5601 = vunpack.c.l.s4 1966171168
        %v5602 = vunpack.c.0.s8 %v5601
        %v5603 = vlaneseq
        %v5604 = vshrl.u32 %v5603, 7
        %v5605 = vsub.s32 %v5602, %v5604
        %v5606 = vrot.slane %v5599, %v5605
        %s5608 = scalar_lea.vmem %s211, 1
        %5609 = vst.msk [vmem:[%s5608] ss:$2 sm:$0x3] %vm5583, %v5606
        %p5610 = scmp.lt.s32.totalorder %s16, 1
        %s5611 = scalar_select %p5610, %s16, 1
        %s5612 = smul.addr %s5611, 2
        %s5613 = smul.addr %s5612, 2
        %s5614 = scalar_lea.vmem %s4, %s5613
        // Predicated region
        $region41: #{ddff_fgbg_coc_forward.1} parent=35 // pred_check
          %p5615 = pneg %p123
        $region42: #{ddff_fgbg_coc_forward.1} parent=35 // pred_check_branch
          %5617 = sbr.rel (%p5615) target = $region44
        $region43: #{ddff_fgbg_coc_forward.1} parent=35 // pred_region
          _
        $region44: #{ddff_fgbg_coc_forward.1} parent=35 // pred_fallthru
          _
      $region36: #{ddff_fgbg_coc_forward.1} parent=5 // pred_fallthru
        _
      %p5618 = scmp.le.s32.totalorder 2, %s11
      // Predicated region
      $region45: #{ddff_fgbg_coc_forward.1} parent=5 // pred_check
        %p5619 = pneg %p5618
      $region46: #{ddff_fgbg_coc_forward.1} parent=5 // pred_check_branch
        %5621 = sbr.rel (%p5619) target = $region48
      $region47: #{ddff_fgbg_coc_forward.1} parent=5 // pred_region
        %s5622 = ssub.s32 %s11, 2
        // Predicated region
        $region49: #{ddff_fgbg_coc_forward.1} parent=47 // pred_check
          %p5623 = pneg %p129
        $region50: #{ddff_fgbg_coc_forward.1} parent=47 // pred_check_branch
          %5625 = sbr.rel (%p5623) target = $region52
        $region51: #{ddff_fgbg_coc_forward.1} parent=47 // pred_region
          %p5626 = scmp.lt.s32.totalorder %s17, 1
          %s5627 = scalar_select %p5626, %s17, 1
          %s5628 = smul.addr %s5627, 2
          %s5629 = smul.addr %s5628, 2
          %s5630 = scalar_lea.vmem %s4, %s5629
        $region52: #{ddff_fgbg_coc_forward.1} parent=47 // pred_fallthru
          _
      $region48: #{ddff_fgbg_coc_forward.1} parent=5 // pred_fallthru
        _
    $region6: #{ddff_fgbg_coc_forward.1} parent=1 // loop_footer
      %s15 = sadd.s32 1, %s11
    $region7: #{ddff_fgbg_coc_forward.1} parent=1 // loop_footer_branch
      %10 = sbr.rel target = $region3
    $region8: #{ddff_fgbg_coc_forward.1} parent=1 // loop_exit
      _
    %5631 = vsyncpa [#allocation3], 1
    %s5632 = scalar_lea.sflag [#allocation3], 1
    %5633 = vsyncpa %s5632, 1

</llo_original>
